<compile_context>
chip_gen: v6e
topology: v6e:2x2x1
jax: 0.10.0
libtpu: 0.0.40
codegen_flags: <defaults>
</compile_context>

<pallas_src>
import jax
import jax.numpy as jnp
from jax.experimental import pallas as pl
from jax.experimental.pallas import tpu as pltpu


# ----------------------------------------------------------------------------
# Fused kernel: deconv+ReLU -> conv3x3+ReLU -> conv3x3+BN+ReLU  (one batch elem)
# ----------------------------------------------------------------------------
def _make_fused_kernel(L, OFF, starts_deconv, starts_3x3):
    """All activations are flat (C, HS*WS) with spatial in lanes.

    A KxK conv is computed "wide" over the strip of flat rows that contains the valid
    output: gather K*K shifted flat slices -> concat into an im2col matrix
    (K*K*Cin, L) -> one MXU matmul with the packed (Cout, K*K*Cin) weight.  The
    structurally-wrong pad columns of the strip are zeroed with a precomputed lane
    mask before the strip is written back into the (zeroed) padded scratch of the
    next layer, so the next layer always reads exact zero padding.
    """

    def kernel(x_ref, w1_ref, b1_ref, w2_ref, b2_ref, w3_ref, s3_ref, b3_ref,
               mask_ref, o_ref, act1_ref, act2_ref):
        mask = mask_ref[...]                                     # (1, L)

        # Padded VMEM intermediates: pad rows/cols must be zero before being read.
        act1_ref[...] = jnp.zeros_like(act1_ref)
        act2_ref[...] = jnp.zeros_like(act2_ref)

        # ---- layer 1: ConvTranspose2d(4, 2, 1) as a 4x4 conv on the pre-dilated
        #      input, + bias + ReLU.   (Cmid, 16*Cin) x (16*Cin, L) single matmul.
        p1 = jnp.concatenate([x_ref[0, :, s:s + L] for s in starts_deconv], axis=0)
        y1 = jax.lax.dot_general(w1_ref[...], p1, (((1,), (0,)), ((), ())),
                                 preferred_element_type=jnp.float32)
        act1_ref[:, OFF:OFF + L] = jnp.maximum(y1 + b1_ref[...], 0.0) * mask

        # ---- layer 2: Conv2d 3x3, pad 1, + bias + ReLU.
        p2 = jnp.concatenate([act1_ref[:, s:s + L] for s in starts_3x3], axis=0)
        y2 = jax.lax.dot_general(w2_ref[...], p2, (((1,), (0,)), ((), ())),
                                 preferred_element_type=jnp.float32)
        act2_ref[:, OFF:OFF + L] = jnp.maximum(y2 + b2_ref[...], 0.0) * mask

        # ---- layer 3: Conv2d 3x3, pad 1 (no bias) + folded eval-mode BN + ReLU.
        #      Stored lane-dense; the structural pad columns are sliced off in XLA.
        p3 = jnp.concatenate([act2_ref[:, s:s + L] for s in starts_3x3], axis=0)
        y3 = jax.lax.dot_general(w3_ref[...], p3, (((1,), (0,)), ((), ())),
                                 preferred_element_type=jnp.float32)
        o_ref[0] = jnp.maximum(y3 * s3_ref[...] + b3_ref[...], 0.0)

    return kernel


# ----------------------------------------------------------------------------
# ConvUp forward (parameters passed explicitly, PyTorch layouts)
# ----------------------------------------------------------------------------
def conv_up_forward(x_nchw, params):
    """x_nchw: (N, Cin, H, W) -> (N, Cout, 2H, 2W), matching the PyTorch module."""
    N, Cin, H, W = x_nchw.shape
    w_t = params["deconv1_w"]                      # (Cin, Cmid, 4, 4)  ConvTranspose2d
    Cmid = w_t.shape[1]
    Cout = params["conv2_w"].shape[0]
    Ho, Wo = 2 * H, 2 * W

    # Shared flat geometry: every buffer is (C, HS, WS) flattened to (C, HS*WS).
    #   layer-1 input : dilated x (2H-1, 2W-1) placed at rows >= 2, cols >= 3
    #   act1/act2/out : valid (2H, 2W) data placed at rows [2, 2H+2), cols [1, 2W+1)
    HS, WS = Ho + 4, Wo + 4
    SZ = HS * WS
    L = Ho * WS                    # flat length of the computed output strip
    OFF = 2 * WS                   # flat offset of that strip inside a padded buffer

    x = x_nchw.astype(jnp.float32)

    # Zero-dilated, zero-padded, flattened input (channel-major, spatial in lanes).
    xd = jnp.zeros((N, Cin, HS, WS), jnp.float32)
    xd = xd.at[:, :, 2:2 + Ho:2, 3:3 + Wo:2].set(x)
    xd = xd.reshape(N, Cin, SZ)

    # Packed weights: (Cout, n_taps*Cin), tap-major then input channel, matching the
    # order in which the kernel concatenates the shifted slices.
    w_dec = jnp.transpose(w_t, (1, 0, 2, 3))[:, :, ::-1, ::-1]   # flip -> forward conv
    w1p = jnp.transpose(w_dec, (0, 2, 3, 1)).reshape(Cmid, 16 * Cin)
    w2p = jnp.transpose(params["conv2_w"], (0, 2, 3, 1)).reshape(Cout, 9 * Cmid)
    w3p = jnp.transpose(params["conv3_w"], (0, 2, 3, 1)).reshape(Cout, 9 * Cout)

    b1 = params["deconv1_b"].reshape(Cmid, 1).astype(jnp.float32)
    b2 = params["conv2_b"].reshape(Cout, 1).astype(jnp.float32)
    eps = 1e-5
    s3v = params["bn_gamma"] / jnp.sqrt(params["bn_var"] + eps)  # folded eval-mode BN
    b3v = params["bn_beta"] - params["bn_mean"] * s3v
    s3 = s3v.reshape(Cout, 1).astype(jnp.float32)
    b3 = b3v.reshape(Cout, 1).astype(jnp.float32)

    # Lane mask zeroing the structurally-wrong pad columns of a computed strip.
    cols = jnp.arange(L, dtype=jnp.int32) % WS
    mask = ((cols >= 1) & (cols <= Wo)).astype(jnp.float32).reshape(1, L)

    # Flat shift offsets of the im2col taps (derived from the shared geometry).
    starts_deconv = tuple(kh * WS + kw for kh in range(4) for kw in range(4))
    starts_3x3 = tuple((dh + 1) * WS + (dw - 1) for dh in range(3) for dw in range(3))

    kernel = _make_fused_kernel(L, OFF, starts_deconv, starts_3x3)

    out_flat = pl.pallas_call(
        kernel,
        out_shape=jax.ShapeDtypeStruct((N, Cout, L), jnp.float32),
        grid=(N,),
        in_specs=[
            pl.BlockSpec((1, Cin, SZ), lambda n: (n, 0, 0)),
            pl.BlockSpec((Cmid, 16 * Cin), lambda n: (0, 0)),
            pl.BlockSpec((Cmid, 1), lambda n: (0, 0)),
            pl.BlockSpec((Cout, 9 * Cmid), lambda n: (0, 0)),
            pl.BlockSpec((Cout, 1), lambda n: (0, 0)),
            pl.BlockSpec((Cout, 9 * Cout), lambda n: (0, 0)),
            pl.BlockSpec((Cout, 1), lambda n: (0, 0)),
            pl.BlockSpec((Cout, 1), lambda n: (0, 0)),
            pl.BlockSpec((1, L), lambda n: (0, 0)),
        ],
        out_specs=pl.BlockSpec((1, Cout, L), lambda n: (n, 0, 0)),
        scratch_shapes=[
            pltpu.VMEM((Cmid, SZ), jnp.float32),   # act1 (padded, VMEM-resident)
            pltpu.VMEM((Cout, SZ), jnp.float32),   # act2 (padded, VMEM-resident)
        ],
        compiler_params=pltpu.CompilerParams(
            dimension_semantics=("parallel",)),    # batch splits across TCs on v7x
    )(xd, w1p, b1, w2p, b2, w3p, s3, b3, mask)

    # Drop the structural pad columns (cheap reshape + slice in XLA), keep NCHW.
    return out_flat.reshape(N, Cout, Ho, WS)[:, :, :, 1:1 + Wo]


# ----------------------------------------------------------------------------
# Pure-JAX reference (independent path via lax.conv_general_dilated)
# ----------------------------------------------------------------------------
def conv_up_reference(x, params):
    dn = ("NCHW", "OIHW", "NCHW")
    w_t = params["deconv1_w"]
    w_dec = jnp.transpose(w_t, (1, 0, 2, 3))[:, :, ::-1, ::-1]
    y = jax.lax.conv_general_dilated(
        x.astype(jnp.float32), w_dec, window_strides=(1, 1),
        padding=((2, 2), (2, 2)), lhs_dilation=(2, 2), dimension_numbers=dn)
    y = jnp.maximum(y + params["deconv1_b"][None, :, None, None], 0.0)
    y = jax.lax.conv_general_dilated(y, params["conv2_w"], (1, 1),
                                     ((1, 1), (1, 1)), dimension_numbers=dn)
    y = jnp.maximum(y + params["conv2_b"][None, :, None, None], 0.0)
    y = jax.lax.conv_general_dilated(y, params["conv3_w"], (1, 1),
                                     ((1, 1), (1, 1)), dimension_numbers=dn)
    eps = 1e-5
    scale = params["bn_gamma"] / jnp.sqrt(params["bn_var"] + eps)
    shift = params["bn_beta"] - params["bn_mean"] * scale
    return jnp.maximum(y * scale[None, :, None, None] + shift[None, :, None, None], 0.0)


# ----------------------------------------------------------------------------
def make_params(key, in_dim, mid_dim, out_dim):
    ks = jax.random.split(key, 9)
    return {
        # ConvTranspose2d weight: (in_dim, mid_dim, 4, 4)
        "deconv1_w": 0.1 * jax.random.normal(ks[0], (in_dim, mid_dim, 4, 4), jnp.float32),
        "deconv1_b": 0.1 * jax.random.normal(ks[1], (mid_dim,), jnp.float32),
        # Conv2d weights: OIHW
        "conv2_w": 0.1 * jax.random.normal(ks[2], (out_dim, mid_dim, 3, 3), jnp.float32),
        "conv2_b": 0.1 * jax.random.normal(ks[3], (out_dim,), jnp.float32),
        "conv3_w": 0.1 * jax.random.normal(ks[4], (out_dim, out_dim, 3, 3), jnp.float32),
        # BatchNorm2d (eval mode) with non-trivial stats to exercise the fold.
        "bn_gamma": 1.0 + 0.1 * jax.random.normal(ks[5], (out_dim,), jnp.float32),
        "bn_beta": 0.1 * jax.random.normal(ks[6], (out_dim,), jnp.float32),
        "bn_mean": 0.1 * jax.random.normal(ks[7], (out_dim,), jnp.float32),
        "bn_var": jax.random.uniform(ks[8], (out_dim,), jnp.float32, 0.5, 1.5),
    }


if __name__ == "__main__":
    key = jax.random.PRNGKey(0)
    k_x, k_p = jax.random.split(key)

    N, in_dim, mid_dim, out_dim, H, W = 2, 4, 8, 8, 16, 16
    x = jax.random.normal(k_x, (N, in_dim, H, W), jnp.float32)       # NCHW input
    params = make_params(k_p, in_dim, mid_dim, out_dim)

    fwd = jax.jit(conv_up_forward)
    out = jax.block_until_ready(fwd(x, params))
    assert out.shape == (N, out_dim, 2 * H, 2 * W), out.shape

    ref = jax.block_until_ready(jax.jit(conv_up_reference)(x, params))
    max_err = float(jnp.max(jnp.abs(out - ref)))
    assert jnp.allclose(out, ref, atol=2e-3, rtol=2e-3), max_err

    print("KERNEL_OK")
</pallas_src>

<mosaic_0001>
module attributes {stable_mosaic.version = 11 : i64} {
  func.func @kernel(%arg0: i32, %arg1: memref<1x4x1296xf32, #tpu.memory_space<vmem>>, %arg2: memref<8x64xf32, #tpu.memory_space<vmem>>, %arg3: memref<8x1xf32, #tpu.memory_space<vmem>>, %arg4: memref<8x72xf32, #tpu.memory_space<vmem>>, %arg5: memref<8x1xf32, #tpu.memory_space<vmem>>, %arg6: memref<8x72xf32, #tpu.memory_space<vmem>>, %arg7: memref<8x1xf32, #tpu.memory_space<vmem>>, %arg8: memref<8x1xf32, #tpu.memory_space<vmem>>, %arg9: memref<1x1152xf32, #tpu.memory_space<vmem>>, %arg10: memref<1x8x1152xf32, #tpu.memory_space<vmem>>, %arg11: memref<8x1296xf32, #tpu.memory_space<vmem>>, %arg12: memref<8x1296xf32, #tpu.memory_space<vmem>>) attributes {dimension_semantics = [#tpu.dimension_semantics<parallel>], iteration_bounds = array<i64: 2>, scalar_prefetch = 0 : i64, scratch_operands = 2 : i64, tpu.core_type = #tpu.core_type<tc>, window_params = [{transform_indices = @transform_0, window_bounds = array<i64: 1, 4, 1296>}, {pipeline_mode = #tpu.pipeline_mode<synchronous>, transform_indices = @transform_1, window_bounds = array<i64: 8, 64>}, {pipeline_mode = #tpu.pipeline_mode<synchronous>, transform_indices = @transform_2, window_bounds = array<i64: 8, 1>}, {pipeline_mode = #tpu.pipeline_mode<synchronous>, transform_indices = @transform_3, window_bounds = array<i64: 8, 72>}, {pipeline_mode = #tpu.pipeline_mode<synchronous>, transform_indices = @transform_4, window_bounds = array<i64: 8, 1>}, {pipeline_mode = #tpu.pipeline_mode<synchronous>, transform_indices = @transform_5, window_bounds = array<i64: 8, 72>}, {pipeline_mode = #tpu.pipeline_mode<synchronous>, transform_indices = @transform_6, window_bounds = array<i64: 8, 1>}, {pipeline_mode = #tpu.pipeline_mode<synchronous>, transform_indices = @transform_7, window_bounds = array<i64: 8, 1>}, {pipeline_mode = #tpu.pipeline_mode<synchronous>, transform_indices = @transform_8, window_bounds = array<i64: 1, 1152>}, {transform_indices = @transform_9, window_bounds = array<i64: 1, 8, 1152>}]} {
    %c0 = arith.constant 0 : index
    %c0_0 = arith.constant 0 : index
    %0 = vector.load %arg9[%c0, %c0_0] : memref<1x1152xf32, #tpu.memory_space<vmem>>, vector<1x1152xf32>
    %cst = arith.constant 0.000000e+00 : f32
    %1 = vector.broadcast %cst : f32 to vector<8x1296xf32>
    %c0_1 = arith.constant 0 : index
    %c0_2 = arith.constant 0 : index
    %2 = vector.load %arg11[%c0_1, %c0_2] : memref<8x1296xf32, #tpu.memory_space<vmem>>, vector<8x1296xf32>
    tpu.vector_store %arg11[%c0_1, %c0_2], %1 {strides = array<i32>} : memref<8x1296xf32, #tpu.memory_space<vmem>>, vector<8x1296xf32>,
    %cst_3 = arith.constant 0.000000e+00 : f32
    %3 = vector.broadcast %cst_3 : f32 to vector<8x1296xf32>
    %c0_4 = arith.constant 0 : index
    %c0_5 = arith.constant 0 : index
    %4 = vector.load %arg12[%c0_4, %c0_5] : memref<8x1296xf32, #tpu.memory_space<vmem>>, vector<8x1296xf32>
    tpu.vector_store %arg12[%c0_4, %c0_5], %3 {strides = array<i32>} : memref<8x1296xf32, #tpu.memory_space<vmem>>, vector<8x1296xf32>,
    %c0_6 = arith.constant 0 : index
    %c0_7 = arith.constant 0 : index
    %c0_8 = arith.constant 0 : index
    %5 = vector.load %arg1[%c0_6, %c0_7, %c0_8] : memref<1x4x1296xf32, #tpu.memory_space<vmem>>, vector<1x4x1152xf32>
    %6 = vector.shape_cast %5 : vector<1x4x1152xf32> to vector<4x1152xf32>
    %c0_9 = arith.constant 0 : index
    %c0_10 = arith.constant 0 : index
    %c1 = arith.constant 1 : index
    %7 = vector.load %arg1[%c0_9, %c0_10, %c1] : memref<1x4x1296xf32, #tpu.memory_space<vmem>>, vector<1x4x1152xf32>
    %8 = vector.shape_cast %7 : vector<1x4x1152xf32> to vector<4x1152xf32>
    %c0_11 = arith.constant 0 : index
    %c0_12 = arith.constant 0 : index
    %c2 = arith.constant 2 : index
    %9 = vector.load %arg1[%c0_11, %c0_12, %c2] : memref<1x4x1296xf32, #tpu.memory_space<vmem>>, vector<1x4x1152xf32>
    %10 = vector.shape_cast %9 : vector<1x4x1152xf32> to vector<4x1152xf32>
    %c0_13 = arith.constant 0 : index
    %c0_14 = arith.constant 0 : index
    %c3 = arith.constant 3 : index
    %11 = vector.load %arg1[%c0_13, %c0_14, %c3] : memref<1x4x1296xf32, #tpu.memory_space<vmem>>, vector<1x4x1152xf32>
    %12 = vector.shape_cast %11 : vector<1x4x1152xf32> to vector<4x1152xf32>
    %c0_15 = arith.constant 0 : index
    %c0_16 = arith.constant 0 : index
    %c36 = arith.constant 36 : index
    %13 = vector.load %arg1[%c0_15, %c0_16, %c36] : memref<1x4x1296xf32, #tpu.memory_space<vmem>>, vector<1x4x1152xf32>
    %14 = vector.shape_cast %13 : vector<1x4x1152xf32> to vector<4x1152xf32>
    %c0_17 = arith.constant 0 : index
    %c0_18 = arith.constant 0 : index
    %c37 = arith.constant 37 : index
    %15 = vector.load %arg1[%c0_17, %c0_18, %c37] : memref<1x4x1296xf32, #tpu.memory_space<vmem>>, vector<1x4x1152xf32>
    %16 = vector.shape_cast %15 : vector<1x4x1152xf32> to vector<4x1152xf32>
    %c0_19 = arith.constant 0 : index
    %c0_20 = arith.constant 0 : index
    %c38 = arith.constant 38 : index
    %17 = vector.load %arg1[%c0_19, %c0_20, %c38] : memref<1x4x1296xf32, #tpu.memory_space<vmem>>, vector<1x4x1152xf32>
    %18 = vector.shape_cast %17 : vector<1x4x1152xf32> to vector<4x1152xf32>
    %c0_21 = arith.constant 0 : index
    %c0_22 = arith.constant 0 : index
    %c39 = arith.constant 39 : index
    %19 = vector.load %arg1[%c0_21, %c0_22, %c39] : memref<1x4x1296xf32, #tpu.memory_space<vmem>>, vector<1x4x1152xf32>
    %20 = vector.shape_cast %19 : vector<1x4x1152xf32> to vector<4x1152xf32>
    %c0_23 = arith.constant 0 : index
    %c0_24 = arith.constant 0 : index
    %c72 = arith.constant 72 : index
    %21 = vector.load %arg1[%c0_23, %c0_24, %c72] : memref<1x4x1296xf32, #tpu.memory_space<vmem>>, vector<1x4x1152xf32>
    %22 = vector.shape_cast %21 : vector<1x4x1152xf32> to vector<4x1152xf32>
    %c0_25 = arith.constant 0 : index
    %c0_26 = arith.constant 0 : index
    %c73 = arith.constant 73 : index
    %23 = vector.load %arg1[%c0_25, %c0_26, %c73] : memref<1x4x1296xf32, #tpu.memory_space<vmem>>, vector<1x4x1152xf32>
    %24 = vector.shape_cast %23 : vector<1x4x1152xf32> to vector<4x1152xf32>
    %c0_27 = arith.constant 0 : index
    %c0_28 = arith.constant 0 : index
    %c74 = arith.constant 74 : index
    %25 = vector.load %arg1[%c0_27, %c0_28, %c74] : memref<1x4x1296xf32, #tpu.memory_space<vmem>>, vector<1x4x1152xf32>
    %26 = vector.shape_cast %25 : vector<1x4x1152xf32> to vector<4x1152xf32>
    %c0_29 = arith.constant 0 : index
    %c0_30 = arith.constant 0 : index
    %c75 = arith.constant 75 : index
    %27 = vector.load %arg1[%c0_29, %c0_30, %c75] : memref<1x4x1296xf32, #tpu.memory_space<vmem>>, vector<1x4x1152xf32>
    %28 = vector.shape_cast %27 : vector<1x4x1152xf32> to vector<4x1152xf32>
    %c0_31 = arith.constant 0 : index
    %c0_32 = arith.constant 0 : index
    %c108 = arith.constant 108 : index
    %29 = vector.load %arg1[%c0_31, %c0_32, %c108] : memref<1x4x1296xf32, #tpu.memory_space<vmem>>, vector<1x4x1152xf32>
    %30 = vector.shape_cast %29 : vector<1x4x1152xf32> to vector<4x1152xf32>
    %c0_33 = arith.constant 0 : index
    %c0_34 = arith.constant 0 : index
    %c109 = arith.constant 109 : index
    %31 = vector.load %arg1[%c0_33, %c0_34, %c109] : memref<1x4x1296xf32, #tpu.memory_space<vmem>>, vector<1x4x1152xf32>
    %32 = vector.shape_cast %31 : vector<1x4x1152xf32> to vector<4x1152xf32>
    %c0_35 = arith.constant 0 : index
    %c0_36 = arith.constant 0 : index
    %c110 = arith.constant 110 : index
    %33 = vector.load %arg1[%c0_35, %c0_36, %c110] : memref<1x4x1296xf32, #tpu.memory_space<vmem>>, vector<1x4x1152xf32>
    %34 = vector.shape_cast %33 : vector<1x4x1152xf32> to vector<4x1152xf32>
    %c0_37 = arith.constant 0 : index
    %c0_38 = arith.constant 0 : index
    %c111 = arith.constant 111 : index
    %35 = vector.load %arg1[%c0_37, %c0_38, %c111] : memref<1x4x1296xf32, #tpu.memory_space<vmem>>, vector<1x4x1152xf32>
    %36 = vector.shape_cast %35 : vector<1x4x1152xf32> to vector<4x1152xf32>
    %37 = tpu.concatenate %6, %8, %10, %12, %14, %16, %18, %20, %22, %24, %26, %28, %30, %32, %34, %36 in 0 : vector<4x1152xf32>, vector<4x1152xf32>, vector<4x1152xf32>, vector<4x1152xf32>, vector<4x1152xf32>, vector<4x1152xf32>, vector<4x1152xf32>, vector<4x1152xf32>, vector<4x1152xf32>, vector<4x1152xf32>, vector<4x1152xf32>, vector<4x1152xf32>, vector<4x1152xf32>, vector<4x1152xf32>, vector<4x1152xf32>, vector<4x1152xf32> -> vector<64x1152xf32>
    %c0_39 = arith.constant 0 : index
    %c0_40 = arith.constant 0 : index
    %38 = vector.load %arg2[%c0_39, %c0_40] : memref<8x64xf32, #tpu.memory_space<vmem>>, vector<8x64xf32>
    %cst_41 = arith.constant dense<0.000000e+00> : vector<8x1152xf32>
    %39 = tpu.matmul %38, %37, %cst_41 {dimension_numbers = #tpu.dot_dimension_numbers<[1], [0], [0], [1], [0, 0, 1, 1], [], []>} : vector<8x64xf32>, vector<64x1152xf32>, vector<8x1152xf32> -> vector<8x1152xf32>
    %c0_42 = arith.constant 0 : index
    %c0_43 = arith.constant 0 : index
    %40 = vector.load %arg3[%c0_42, %c0_43] : memref<8x1xf32, #tpu.memory_space<vmem>>, vector<8x1xf32>
    %41 = vector.broadcast %40 : vector<8x1xf32> to vector<8x1152xf32>
    %42 = arith.addf %39, %41 : vector<8x1152xf32>
    %cst_44 = arith.constant 0.000000e+00 : f32
    %43 = vector.broadcast %cst_44 : f32 to vector<8x1152xf32>
    %44 = arith.maximumf %42, %43 : vector<8x1152xf32>
    %45 = vector.broadcast %0 : vector<1x1152xf32> to vector<8x1152xf32>
    %46 = arith.mulf %44, %45 : vector<8x1152xf32>
    %c0_45 = arith.constant 0 : index
    %c72_46 = arith.constant 72 : index
    %47 = vector.load %arg11[%c0_45, %c72_46] : memref<8x1296xf32, #tpu.memory_space<vmem>>, vector<8x1152xf32>
    tpu.vector_store %arg11[%c0_45, %c72_46], %46 {strides = array<i32>} : memref<8x1296xf32, #tpu.memory_space<vmem>>, vector<8x1152xf32>,
    %c0_47 = arith.constant 0 : index
    %c35 = arith.constant 35 : index
    %48 = vector.load %arg11[%c0_47, %c35] : memref<8x1296xf32, #tpu.memory_space<vmem>>, vector<8x1152xf32>
    %c0_48 = arith.constant 0 : index
    %c36_49 = arith.constant 36 : index
    %49 = vector.load %arg11[%c0_48, %c36_49] : memref<8x1296xf32, #tpu.memory_space<vmem>>, vector<8x1152xf32>
    %c0_50 = arith.constant 0 : index
    %c37_51 = arith.constant 37 : index
    %50 = vector.load %arg11[%c0_50, %c37_51] : memref<8x1296xf32, #tpu.memory_space<vmem>>, vector<8x1152xf32>
    %c0_52 = arith.constant 0 : index
    %c71 = arith.constant 71 : index
    %51 = vector.load %arg11[%c0_52, %c71] : memref<8x1296xf32, #tpu.memory_space<vmem>>, vector<8x1152xf32>
    %c0_53 = arith.constant 0 : index
    %c72_54 = arith.constant 72 : index
    %52 = vector.load %arg11[%c0_53, %c72_54] : memref<8x1296xf32, #tpu.memory_space<vmem>>, vector<8x1152xf32>
    %c0_55 = arith.constant 0 : index
    %c73_56 = arith.constant 73 : index
    %53 = vector.load %arg11[%c0_55, %c73_56] : memref<8x1296xf32, #tpu.memory_space<vmem>>, vector<8x1152xf32>
    %c0_57 = arith.constant 0 : index
    %c107 = arith.constant 107 : index
    %54 = vector.load %arg11[%c0_57, %c107] : memref<8x1296xf32, #tpu.memory_space<vmem>>, vector<8x1152xf32>
    %c0_58 = arith.constant 0 : index
    %c108_59 = arith.constant 108 : index
    %55 = vector.load %arg11[%c0_58, %c108_59] : memref<8x1296xf32, #tpu.memory_space<vmem>>, vector<8x1152xf32>
    %c0_60 = arith.constant 0 : index
    %c109_61 = arith.constant 109 : index
    %56 = vector.load %arg11[%c0_60, %c109_61] : memref<8x1296xf32, #tpu.memory_space<vmem>>, vector<8x1152xf32>
    %57 = tpu.concatenate %48, %49, %50, %51, %52, %53, %54, %55, %56 in 0 : vector<8x1152xf32>, vector<8x1152xf32>, vector<8x1152xf32>, vector<8x1152xf32>, vector<8x1152xf32>, vector<8x1152xf32>, vector<8x1152xf32>, vector<8x1152xf32>, vector<8x1152xf32> -> vector<72x1152xf32>
    %c0_62 = arith.constant 0 : index
    %c0_63 = arith.constant 0 : index
    %58 = vector.load %arg4[%c0_62, %c0_63] : memref<8x72xf32, #tpu.memory_space<vmem>>, vector<8x72xf32>
    %cst_64 = arith.constant dense<0.000000e+00> : vector<8x1152xf32>
    %59 = tpu.matmul %58, %57, %cst_64 {dimension_numbers = #tpu.dot_dimension_numbers<[1], [0], [0], [1], [0, 0, 1, 1], [], []>} : vector<8x72xf32>, vector<72x1152xf32>, vector<8x1152xf32> -> vector<8x1152xf32>
    %c0_65 = arith.constant 0 : index
    %c0_66 = arith.constant 0 : index
    %60 = vector.load %arg5[%c0_65, %c0_66] : memref<8x1xf32, #tpu.memory_space<vmem>>, vector<8x1xf32>
    %61 = vector.broadcast %60 : vector<8x1xf32> to vector<8x1152xf32>
    %62 = arith.addf %59, %61 : vector<8x1152xf32>
    %cst_67 = arith.constant 0.000000e+00 : f32
    %63 = vector.broadcast %cst_67 : f32 to vector<8x1152xf32>
    %64 = arith.maximumf %62, %63 : vector<8x1152xf32>
    %65 = vector.broadcast %0 : vector<1x1152xf32> to vector<8x1152xf32>
    %66 = arith.mulf %64, %65 : vector<8x1152xf32>
    %c0_68 = arith.constant 0 : index
    %c72_69 = arith.constant 72 : index
    %67 = vector.load %arg12[%c0_68, %c72_69] : memref<8x1296xf32, #tpu.memory_space<vmem>>, vector<8x1152xf32>
    tpu.vector_store %arg12[%c0_68, %c72_69], %66 {strides = array<i32>} : memref<8x1296xf32, #tpu.memory_space<vmem>>, vector<8x1152xf32>,
    %c0_70 = arith.constant 0 : index
    %c35_71 = arith.constant 35 : index
    %68 = vector.load %arg12[%c0_70, %c35_71] : memref<8x1296xf32, #tpu.memory_space<vmem>>, vector<8x1152xf32>
    %c0_72 = arith.constant 0 : index
    %c36_73 = arith.constant 36 : index
    %69 = vector.load %arg12[%c0_72, %c36_73] : memref<8x1296xf32, #tpu.memory_space<vmem>>, vector<8x1152xf32>
    %c0_74 = arith.constant 0 : index
    %c37_75 = arith.constant 37 : index
    %70 = vector.load %arg12[%c0_74, %c37_75] : memref<8x1296xf32, #tpu.memory_space<vmem>>, vector<8x1152xf32>
    %c0_76 = arith.constant 0 : index
    %c71_77 = arith.constant 71 : index
    %71 = vector.load %arg12[%c0_76, %c71_77] : memref<8x1296xf32, #tpu.memory_space<vmem>>, vector<8x1152xf32>
    %c0_78 = arith.constant 0 : index
    %c72_79 = arith.constant 72 : index
    %72 = vector.load %arg12[%c0_78, %c72_79] : memref<8x1296xf32, #tpu.memory_space<vmem>>, vector<8x1152xf32>
    %c0_80 = arith.constant 0 : index
    %c73_81 = arith.constant 73 : index
    %73 = vector.load %arg12[%c0_80, %c73_81] : memref<8x1296xf32, #tpu.memory_space<vmem>>, vector<8x1152xf32>
    %c0_82 = arith.constant 0 : index
    %c107_83 = arith.constant 107 : index
    %74 = vector.load %arg12[%c0_82, %c107_83] : memref<8x1296xf32, #tpu.memory_space<vmem>>, vector<8x1152xf32>
    %c0_84 = arith.constant 0 : index
    %c108_85 = arith.constant 108 : index
    %75 = vector.load %arg12[%c0_84, %c108_85] : memref<8x1296xf32, #tpu.memory_space<vmem>>, vector<8x1152xf32>
    %c0_86 = arith.constant 0 : index
    %c109_87 = arith.constant 109 : index
    %76 = vector.load %arg12[%c0_86, %c109_87] : memref<8x1296xf32, #tpu.memory_space<vmem>>, vector<8x1152xf32>
    %77 = tpu.concatenate %68, %69, %70, %71, %72, %73, %74, %75, %76 in 0 : vector<8x1152xf32>, vector<8x1152xf32>, vector<8x1152xf32>, vector<8x1152xf32>, vector<8x1152xf32>, vector<8x1152xf32>, vector<8x1152xf32>, vector<8x1152xf32>, vector<8x1152xf32> -> vector<72x1152xf32>
    %c0_88 = arith.constant 0 : index
    %c0_89 = arith.constant 0 : index
    %78 = vector.load %arg6[%c0_88, %c0_89] : memref<8x72xf32, #tpu.memory_space<vmem>>, vector<8x72xf32>
    %cst_90 = arith.constant dense<0.000000e+00> : vector<8x1152xf32>
    %79 = tpu.matmul %78, %77, %cst_90 {dimension_numbers = #tpu.dot_dimension_numbers<[1], [0], [0], [1], [0, 0, 1, 1], [], []>} : vector<8x72xf32>, vector<72x1152xf32>, vector<8x1152xf32> -> vector<8x1152xf32>
    %c0_91 = arith.constant 0 : index
    %c0_92 = arith.constant 0 : index
    %80 = vector.load %arg7[%c0_91, %c0_92] : memref<8x1xf32, #tpu.memory_space<vmem>>, vector<8x1xf32>
    %81 = vector.broadcast %80 : vector<8x1xf32> to vector<8x1152xf32>
    %82 = arith.mulf %79, %81 : vector<8x1152xf32>
    %c0_93 = arith.constant 0 : index
    %c0_94 = arith.constant 0 : index
    %83 = vector.load %arg8[%c0_93, %c0_94] : memref<8x1xf32, #tpu.memory_space<vmem>>, vector<8x1xf32>
    %84 = vector.broadcast %83 : vector<8x1xf32> to vector<8x1152xf32>
    %85 = arith.addf %82, %84 : vector<8x1152xf32>
    %cst_95 = arith.constant 0.000000e+00 : f32
    %86 = vector.broadcast %cst_95 : f32 to vector<8x1152xf32>
    %87 = arith.maximumf %85, %86 : vector<8x1152xf32>
    %c0_96 = arith.constant 0 : index
    %c0_97 = arith.constant 0 : index
    %c0_98 = arith.constant 0 : index
    %88 = vector.load %arg10[%c0_96, %c0_97, %c0_98] : memref<1x8x1152xf32, #tpu.memory_space<vmem>>, vector<1x8x1152xf32>
    %89 = vector.shape_cast %88 : vector<1x8x1152xf32> to vector<8x1152xf32>
    %90 = vector.shape_cast %87 : vector<8x1152xf32> to vector<1x8x1152xf32>
    tpu.vector_store %arg10[%c0_96, %c0_97, %c0_98], %90 {strides = array<i32>} : memref<1x8x1152xf32, #tpu.memory_space<vmem>>, vector<1x8x1152xf32>,
    return
  }
  func.func @transform_0(%arg0: i32) -> (i32, i32, i32) {
    %c0_i32 = arith.constant 0 : i32
    %c0_i32_0 = arith.constant 0 : i32
    %c0_i32_1 = arith.constant 0 : i32
    return %arg0, %c0_i32, %c0_i32_0 : i32, i32, i32
  }
  func.func @transform_1(%arg0: i32) -> (i32, i32) {
    %c0_i32 = arith.constant 0 : i32
    %c0_i32_0 = arith.constant 0 : i32
    %c0_i32_1 = arith.constant 0 : i32
    return %c0_i32, %c0_i32_0 : i32, i32
  }
  func.func @transform_2(%arg0: i32) -> (i32, i32) {
    %c0_i32 = arith.constant 0 : i32
    %c0_i32_0 = arith.constant 0 : i32
    %c0_i32_1 = arith.constant 0 : i32
    return %c0_i32, %c0_i32_0 : i32, i32
  }
  func.func @transform_3(%arg0: i32) -> (i32, i32) {
    %c0_i32 = arith.constant 0 : i32
    %c0_i32_0 = arith.constant 0 : i32
    %c0_i32_1 = arith.constant 0 : i32
    return %c0_i32, %c0_i32_0 : i32, i32
  }
  func.func @transform_4(%arg0: i32) -> (i32, i32) {
    %c0_i32 = arith.constant 0 : i32
    %c0_i32_0 = arith.constant 0 : i32
    %c0_i32_1 = arith.constant 0 : i32
    return %c0_i32, %c0_i32_0 : i32, i32
  }
  func.func @transform_5(%arg0: i32) -> (i32, i32) {
    %c0_i32 = arith.constant 0 : i32
    %c0_i32_0 = arith.constant 0 : i32
    %c0_i32_1 = arith.constant 0 : i32
    return %c0_i32, %c0_i32_0 : i32, i32
  }
  func.func @transform_6(%arg0: i32) -> (i32, i32) {
    %c0_i32 = arith.constant 0 : i32
    %c0_i32_0 = arith.constant 0 : i32
    %c0_i32_1 = arith.constant 0 : i32
    return %c0_i32, %c0_i32_0 : i32, i32
  }
  func.func @transform_7(%arg0: i32) -> (i32, i32) {
    %c0_i32 = arith.constant 0 : i32
    %c0_i32_0 = arith.constant 0 : i32
    %c0_i32_1 = arith.constant 0 : i32
    return %c0_i32, %c0_i32_0 : i32, i32
  }
  func.func @transform_8(%arg0: i32) -> (i32, i32) {
    %c0_i32 = arith.constant 0 : i32
    %c0_i32_0 = arith.constant 0 : i32
    %c0_i32_1 = arith.constant 0 : i32
    return %c0_i32, %c0_i32_0 : i32, i32
  }
  func.func @transform_9(%arg0: i32) -> (i32, i32, i32) {
    %c0_i32 = arith.constant 0 : i32
    %c0_i32_0 = arith.constant 0 : i32
    %c0_i32_1 = arith.constant 0 : i32
    return %arg0, %c0_i32, %c0_i32_0 : i32, i32, i32
  }
}

</mosaic_0001>

<llo_original>
// kernel: conv_up_forward.1
$region0: #{conv_up_forward.1}
  #allocation0 [shape = 'u32[]', space=smem, size = 0x4, offset = 0x4, fixed_abs, tag = 'smem constant byte address 0x4 - core index']
  #allocation1 [shape = 'u32[144,128]{1,0:T(1,128)}', space=vmem, size = 0x12000, scoped, tag = 'internal scratch']
  #allocation2 [shape = 'f32[8,1296]{1,0:T(8,128)}', space=vmem, size = 0xb000, scoped, tag = 'scratch operand']
  #allocation3 [shape = 'f32[8,1296]{1,0:T(8,128)}', space=vmem, size = 0xb000, scoped, tag = 'scratch operand']
  %s0 = inlined_call_operand.vmem [shape: f32[2,4,1296], index: 0, kind: input, shape index: {}]
  %s1 = inlined_call_operand.vmem [shape: f32[8,64], index: 1, kind: input, shape index: {}]
  %s2 = inlined_call_operand.vmem [shape: f32[8,1], index: 2, kind: input, shape index: {}]
  %s3 = inlined_call_operand.vmem [shape: f32[8,72], index: 3, kind: input, shape index: {}]
  %s4 = inlined_call_operand.vmem [shape: f32[8,1], index: 4, kind: input, shape index: {}]
  %s5 = inlined_call_operand.vmem [shape: f32[8,72], index: 5, kind: input, shape index: {}]
  %s6 = inlined_call_operand.vmem [shape: f32[8,1], index: 6, kind: input, shape index: {}]
  %s7 = inlined_call_operand.vmem [shape: f32[8,1], index: 7, kind: input, shape index: {}]
  %s8 = inlined_call_operand.vmem [shape: f32[1,1152], index: 8, kind: input, shape index: {}]
  %s9 = inlined_call_operand.vmem [shape: f32[2,8,1152], index: 9, kind: output, shape index: {}]
  %s10 = sld [smem:[#allocation0]]
  $region69: #{conv_up_forward.1} parent=0
    _
  %s12 = ssub.s32 1, %s10
  %s13 = scalar_select 0, %s12, %s10
  loop: start=0, step=1, limit=4
  $region2: #{conv_up_forward.1} parent=0 // loop_pre_header
    _
  $region3: #{conv_up_forward.1} parent=0 // loop_header
    %s15 = sphi 0, %s19
    %p16 = scmp.ge.s32.totalorder %s15, 4
    %s25 = sphi 0, %s27
    %s28 = sphi 0, %s25
    %s29 = sphi 0, %s28
    %s45 = sphi 0, %s29
    %s49 = sphi 0, %s49
    %s51 = sphi 0, %s49
    %s52 = sphi 0, %s51
    %s66 = sphi 0, %s52
    %s70 = sphi 0, %s70
    %s72 = sphi 0, %s70
    %s73 = sphi 0, %s72
    %s87 = sphi 0, %s73
    %s91 = sphi 0, %s91
    %s93 = sphi 0, %s91
    %s94 = sphi 0, %s93
    %s108 = sphi 0, %s94
    %s112 = sphi 0, %s112
    %s114 = sphi 0, %s112
    %s115 = sphi 0, %s114
    %s129 = sphi 0, %s115
    %s133 = sphi 0, %s133
    %s135 = sphi 0, %s133
    %s136 = sphi 0, %s135
    %s150 = sphi 0, %s136
    %s154 = sphi 0, %s154
    %s156 = sphi 0, %s154
    %s157 = sphi 0, %s156
    %s171 = sphi 0, %s157
    %s175 = sphi 0, %s175
    %s177 = sphi 0, %s175
    %s178 = sphi 0, %s177
    %s192 = sphi 0, %s178
    %s196 = sphi 0, %s196
    %s198 = sphi 0, %s196
    %s199 = sphi 0, %s198
    %s213 = sphi 0, %s199
    %s219 = sphi 0, %s221
    %s222 = sphi 0, %s219
    %s223 = sphi 0, %s222
    %s239 = sphi 0, %s223
  $region4: #{conv_up_forward.1} parent=0 // loop_header_branch
    %18 = sbr.rel (%p16) target = $region8
  $region5: #{conv_up_forward.1} parent=0 // loop_body
    %s20 = ssub.s32 %s15, 1
    %s21 = ssub.s32 %s15, 2
    %s22 = sadd.s32 %s15, 1
    %s23 = ssub.s32 %s15, %s22
    %p24 = scmp.eq.s32.totalorder %s23, 0
    %s26 = sadd.s32 %s25, 1
    %s27 = scalar_select %p24, %s25, %s26
    %p30 = pneg %p24
    %p31 = scmp.eq.s32.totalorder %s15, 1
    %p32 = por %p30, %p31
    %p33 = scmp.ne.s32.totalorder %s25, %s28
    %p34 = scmp.eq.s32.totalorder %s15, 0
    %p35 = por %p33, %p34
    %p36 = scmp.ne.s32.totalorder %s25, %s28
    %p37 = scmp.eq.s32.totalorder %s20, 1
    %p38 = por %p36, %p37
    %p39 = scmp.ne.s32.totalorder %s28, %s29
    %p40 = scmp.eq.s32.totalorder %s20, 0
    %p41 = por %p39, %p40
    %p42 = scmp.ne.s32.totalorder %s28, %s29
    %p43 = scmp.eq.s32.totalorder %s21, 1
    %p44 = por %p42, %p43
    %p46 = scmp.ne.s32.totalorder %s29, %s45
    %p47 = scmp.eq.s32.totalorder %s21, 0
    %p48 = por %p46, %p47
    %s50 = sadd.s32 %s49, 1
    %p53 = scmp.eq.s32.totalorder %s15, 1
    %p54 = scmp.ne.s32.totalorder %s49, %s51
    %p55 = scmp.eq.s32.totalorder %s15, 0
    %p56 = por %p54, %p55
    %p57 = scmp.ne.s32.totalorder %s49, %s51
    %p58 = scmp.eq.s32.totalorder %s20, 1
    %p59 = por %p57, %p58
    %p60 = scmp.ne.s32.totalorder %s51, %s52
    %p61 = scmp.eq.s32.totalorder %s20, 0
    %p62 = por %p60, %p61
    %p63 = scmp.ne.s32.totalorder %s51, %s52
    %p64 = scmp.eq.s32.totalorder %s21, 1
    %p65 = por %p63, %p64
    %p67 = scmp.ne.s32.totalorder %s52, %s66
    %p68 = scmp.eq.s32.totalorder %s21, 0
    %p69 = por %p67, %p68
    %s71 = sadd.s32 %s70, 1
    %p74 = scmp.eq.s32.totalorder %s15, 1
    %p75 = scmp.ne.s32.totalorder %s70, %s72
    %p76 = scmp.eq.s32.totalorder %s15, 0
    %p77 = por %p75, %p76
    %p78 = scmp.ne.s32.totalorder %s70, %s72
    %p79 = scmp.eq.s32.totalorder %s20, 1
    %p80 = por %p78, %p79
    %p81 = scmp.ne.s32.totalorder %s72, %s73
    %p82 = scmp.eq.s32.totalorder %s20, 0
    %p83 = por %p81, %p82
    %p84 = scmp.ne.s32.totalorder %s72, %s73
    %p85 = scmp.eq.s32.totalorder %s21, 1
    %p86 = por %p84, %p85
    %p88 = scmp.ne.s32.totalorder %s73, %s87
    %p89 = scmp.eq.s32.totalorder %s21, 0
    %p90 = por %p88, %p89
    %s92 = sadd.s32 %s91, 1
    %p95 = scmp.eq.s32.totalorder %s15, 1
    %p96 = scmp.ne.s32.totalorder %s91, %s93
    %p97 = scmp.eq.s32.totalorder %s15, 0
    %p98 = por %p96, %p97
    %p99 = scmp.ne.s32.totalorder %s91, %s93
    %p100 = scmp.eq.s32.totalorder %s20, 1
    %p101 = por %p99, %p100
    %p102 = scmp.ne.s32.totalorder %s93, %s94
    %p103 = scmp.eq.s32.totalorder %s20, 0
    %p104 = por %p102, %p103
    %p105 = scmp.ne.s32.totalorder %s93, %s94
    %p106 = scmp.eq.s32.totalorder %s21, 1
    %p107 = por %p105, %p106
    %p109 = scmp.ne.s32.totalorder %s94, %s108
    %p110 = scmp.eq.s32.totalorder %s21, 0
    %p111 = por %p109, %p110
    %s113 = sadd.s32 %s112, 1
    %p116 = scmp.eq.s32.totalorder %s15, 1
    %p117 = scmp.ne.s32.totalorder %s112, %s114
    %p118 = scmp.eq.s32.totalorder %s15, 0
    %p119 = por %p117, %p118
    %p120 = scmp.ne.s32.totalorder %s112, %s114
    %p121 = scmp.eq.s32.totalorder %s20, 1
    %p122 = por %p120, %p121
    %p123 = scmp.ne.s32.totalorder %s114, %s115
    %p124 = scmp.eq.s32.totalorder %s20, 0
    %p125 = por %p123, %p124
    %p126 = scmp.ne.s32.totalorder %s114, %s115
    %p127 = scmp.eq.s32.totalorder %s21, 1
    %p128 = por %p126, %p127
    %p130 = scmp.ne.s32.totalorder %s115, %s129
    %p131 = scmp.eq.s32.totalorder %s21, 0
    %p132 = por %p130, %p131
    %s134 = sadd.s32 %s133, 1
    %p137 = scmp.eq.s32.totalorder %s15, 1
    %p138 = scmp.ne.s32.totalorder %s133, %s135
    %p139 = scmp.eq.s32.totalorder %s15, 0
    %p140 = por %p138, %p139
    %p141 = scmp.ne.s32.totalorder %s133, %s135
    %p142 = scmp.eq.s32.totalorder %s20, 1
    %p143 = por %p141, %p142
    %p144 = scmp.ne.s32.totalorder %s135, %s136
    %p145 = scmp.eq.s32.totalorder %s20, 0
    %p146 = por %p144, %p145
    %p147 = scmp.ne.s32.totalorder %s135, %s136
    %p148 = scmp.eq.s32.totalorder %s21, 1
    %p149 = por %p147, %p148
    %p151 = scmp.ne.s32.totalorder %s136, %s150
    %p152 = scmp.eq.s32.totalorder %s21, 0
    %p153 = por %p151, %p152
    %s155 = sadd.s32 %s154, 1
    %p158 = scmp.eq.s32.totalorder %s15, 1
    %p159 = scmp.ne.s32.totalorder %s154, %s156
    %p160 = scmp.eq.s32.totalorder %s15, 0
    %p161 = por %p159, %p160
    %p162 = scmp.ne.s32.totalorder %s154, %s156
    %p163 = scmp.eq.s32.totalorder %s20, 1
    %p164 = por %p162, %p163
    %p165 = scmp.ne.s32.totalorder %s156, %s157
    %p166 = scmp.eq.s32.totalorder %s20, 0
    %p167 = por %p165, %p166
    %p168 = scmp.ne.s32.totalorder %s156, %s157
    %p169 = scmp.eq.s32.totalorder %s21, 1
    %p170 = por %p168, %p169
    %p172 = scmp.ne.s32.totalorder %s157, %s171
    %p173 = scmp.eq.s32.totalorder %s21, 0
    %p174 = por %p172, %p173
    %s176 = sadd.s32 %s175, 1
    %p179 = scmp.eq.s32.totalorder %s15, 1
    %p180 = scmp.ne.s32.totalorder %s175, %s177
    %p181 = scmp.eq.s32.totalorder %s15, 0
    %p182 = por %p180, %p181
    %p183 = scmp.ne.s32.totalorder %s175, %s177
    %p184 = scmp.eq.s32.totalorder %s20, 1
    %p185 = por %p183, %p184
    %p186 = scmp.ne.s32.totalorder %s177, %s178
    %p187 = scmp.eq.s32.totalorder %s20, 0
    %p188 = por %p186, %p187
    %p189 = scmp.ne.s32.totalorder %s177, %s178
    %p190 = scmp.eq.s32.totalorder %s21, 1
    %p191 = por %p189, %p190
    %p193 = scmp.ne.s32.totalorder %s178, %s192
    %p194 = scmp.eq.s32.totalorder %s21, 0
    %p195 = por %p193, %p194
    %s197 = sadd.s32 %s196, 1
    %p200 = scmp.eq.s32.totalorder %s15, 1
    %p201 = scmp.ne.s32.totalorder %s196, %s198
    %p202 = scmp.eq.s32.totalorder %s15, 0
    %p203 = por %p201, %p202
    %p204 = scmp.ne.s32.totalorder %s196, %s198
    %p205 = scmp.eq.s32.totalorder %s20, 1
    %p206 = por %p204, %p205
    %p207 = scmp.ne.s32.totalorder %s198, %s199
    %p208 = scmp.eq.s32.totalorder %s20, 0
    %p209 = por %p207, %p208
    %p210 = scmp.ne.s32.totalorder %s198, %s199
    %p211 = scmp.eq.s32.totalorder %s21, 1
    %p212 = por %p210, %p211
    %p214 = scmp.ne.s32.totalorder %s199, %s213
    %p215 = scmp.eq.s32.totalorder %s21, 0
    %p216 = por %p214, %p215
    %s217 = ssub.s32 %s15, %s22
    %p218 = scmp.eq.s32.totalorder %s217, 0
    %s220 = sadd.s32 %s219, 1
    %s221 = scalar_select %p218, %s219, %s220
    %p224 = pneg %p218
    %p225 = scmp.eq.s32.totalorder %s15, 1
    %p226 = por %p224, %p225
    %p227 = scmp.ne.s32.totalorder %s219, %s222
    %p228 = scmp.eq.s32.totalorder %s15, 0
    %p229 = por %p227, %p228
    %p230 = scmp.ne.s32.totalorder %s219, %s222
    %p231 = scmp.eq.s32.totalorder %s20, 1
    %p232 = por %p230, %p231
    %p233 = scmp.ne.s32.totalorder %s222, %s223
    %p234 = scmp.eq.s32.totalorder %s20, 0
    %p235 = por %p233, %p234
    %p236 = scmp.ne.s32.totalorder %s222, %s223
    %p237 = scmp.eq.s32.totalorder %s21, 1
    %p238 = por %p236, %p237
    %p240 = scmp.ne.s32.totalorder %s223, %s239
    %p241 = scmp.eq.s32.totalorder %s21, 0
    %p242 = por %p240, %p241
    %p243 = scmp.le.s32.totalorder 1, %s15
    %p244 = scmp.lt.s32.totalorder %s15, 3
    %p245 = pnand %p243, %p244
    %p246 = pneg %p245
    // Predicated region
    $region9: #{conv_up_forward.1} parent=5 // pred_check
      _
    $region10: #{conv_up_forward.1} parent=5 // pred_check_branch
      %248 = sbr.rel (%p245) target = $region12
    $region11: #{conv_up_forward.1} parent=5 // pred_region
      %s249 = ssub.s32 %s15, 1
      // Predicated region
      $region13: #{conv_up_forward.1} parent=11 // pred_check
        %p250 = pneg %p62
      $region14: #{conv_up_forward.1} parent=11 // pred_check_branch
        %252 = sbr.rel (%p250) target = $region16
      $region15: #{conv_up_forward.1} parent=11 // pred_region
        _
      $region16: #{conv_up_forward.1} parent=11 // pred_fallthru
        _
      // Predicated region
      $region17: #{conv_up_forward.1} parent=11 // pred_check
        %p253 = pneg %p83
      $region18: #{conv_up_forward.1} parent=11 // pred_check_branch
        %255 = sbr.rel (%p253) target = $region20
      $region19: #{conv_up_forward.1} parent=11 // pred_region
        _
      $region20: #{conv_up_forward.1} parent=11 // pred_fallthru
        _
      // Predicated region
      $region21: #{conv_up_forward.1} parent=11 // pred_check
        %p256 = pneg %p104
      $region22: #{conv_up_forward.1} parent=11 // pred_check_branch
        %258 = sbr.rel (%p256) target = $region24
      $region23: #{conv_up_forward.1} parent=11 // pred_region
        _
      $region24: #{conv_up_forward.1} parent=11 // pred_fallthru
        _
      // Predicated region
      $region25: #{conv_up_forward.1} parent=11 // pred_check
        %p259 = pneg %p125
      $region26: #{conv_up_forward.1} parent=11 // pred_check_branch
        %261 = sbr.rel (%p259) target = $region28
      $region27: #{conv_up_forward.1} parent=11 // pred_region
        _
      $region28: #{conv_up_forward.1} parent=11 // pred_fallthru
        _
      // Predicated region
      $region29: #{conv_up_forward.1} parent=11 // pred_check
        %p262 = pneg %p146
      $region30: #{conv_up_forward.1} parent=11 // pred_check_branch
        %264 = sbr.rel (%p262) target = $region32
      $region31: #{conv_up_forward.1} parent=11 // pred_region
        _
      $region32: #{conv_up_forward.1} parent=11 // pred_fallthru
        _
      // Predicated region
      $region33: #{conv_up_forward.1} parent=11 // pred_check
        %p265 = pneg %p167
      $region34: #{conv_up_forward.1} parent=11 // pred_check_branch
        %267 = sbr.rel (%p265) target = $region36
      $region35: #{conv_up_forward.1} parent=11 // pred_region
        _
      $region36: #{conv_up_forward.1} parent=11 // pred_fallthru
        _
      // Predicated region
      $region37: #{conv_up_forward.1} parent=11 // pred_check
        %p268 = pneg %p188
      $region38: #{conv_up_forward.1} parent=11 // pred_check_branch
        %270 = sbr.rel (%p268) target = $region40
      $region39: #{conv_up_forward.1} parent=11 // pred_region
        _
      $region40: #{conv_up_forward.1} parent=11 // pred_fallthru
        _
      // Predicated region
      $region41: #{conv_up_forward.1} parent=11 // pred_check
        %p271 = pneg %p209
      $region42: #{conv_up_forward.1} parent=11 // pred_check_branch
        %273 = sbr.rel (%p271) target = $region44
      $region43: #{conv_up_forward.1} parent=11 // pred_region
        _
      $region44: #{conv_up_forward.1} parent=11 // pred_fallthru
        _
    $region12: #{conv_up_forward.1} parent=5 // pred_fallthru
      _
    %p274 = scmp.lt.s32.totalorder %s15, 2
    // Predicated region
    $region45: #{conv_up_forward.1} parent=5 // pred_check
      %p275 = pneg %p274
    $region46: #{conv_up_forward.1} parent=5 // pred_check_branch
      %277 = sbr.rel (%p275) target = $region48
    $region47: #{conv_up_forward.1} parent=5 // pred_region
      // Predicated region
      $region49: #{conv_up_forward.1} parent=47 // pred_check
        %p278 = pneg %p35
      $region50: #{conv_up_forward.1} parent=47 // pred_check_branch
        %280 = sbr.rel (%p278) target = $region52
      $region51: #{conv_up_forward.1} parent=47 // pred_region
        %p281 = scmp.lt.s32.totalorder %s15, 1
        %s282 = scalar_select %p281, %s15, 1
        %s283 = smul.addr %s282, 11
        %s284 = smul.addr %s283, 4
        %s285 = scalar_lea.vmem %s0, %s284
      $region52: #{conv_up_forward.1} parent=47 // pred_fallthru
        _
    $region48: #{conv_up_forward.1} parent=5 // pred_fallthru
      _
    %p286 = scmp.le.s32.totalorder 1, %s15
    %p287 = scmp.lt.s32.totalorder %s15, 3
    %p288 = pnand %p286, %p287
    %p289 = pneg %p288
    // Predicated region
    $region53: #{conv_up_forward.1} parent=5 // pred_check
      _
    $region54: #{conv_up_forward.1} parent=5 // pred_check_branch
      %291 = sbr.rel (%p288) target = $region56
    $region55: #{conv_up_forward.1} parent=5 // pred_region
      %s292 = ssub.s32 %s15, 1
      %p293 = scmp.lt.s32.totalorder %s20, 1
      %s294 = scalar_select %p293, %s20, 1
      %s295 = smul.addr %s294, 11
      %s296 = smul.addr %s295, 4
      %s297 = scalar_lea.vmem %s0, %s296
      %p298 = pneg %p41
      %p299 = pneg %p38
      %p300 = pneg %p62
      %p301 = pneg %p59
      %p302 = pneg %p83
      %p303 = pneg %p80
      %p304 = pneg %p104
      %p305 = pneg %p101
      %p306 = pneg %p125
      %p307 = pneg %p122
      %p308 = pneg %p146
      %p309 = pneg %p143
      %p310 = pneg %p167
      %p311 = pneg %p164
      %p312 = pneg %p188
      %p313 = pneg %p185
      %p314 = pneg %p209
      %p315 = pneg %p206
      %p316 = pneg %p235
      %p317 = pneg %p232
      %p318 = scmp.lt.s32.totalorder %s20, 1
      %s319 = scalar_select %p318, %s20, 1
      %s320 = smul.addr %s319, 9
      %s321 = smul.addr %s320, 8
      %s322 = scalar_lea.vmem %s9, %s321
      %p323 = scmp.lt.s32.totalorder %s20, 1
      %s324 = scalar_select %p323, %s20, 1
      %s325 = smul.addr %s324, 11
      %s326 = smul.addr %s325, 4
      %s327 = scalar_lea.vmem %s0, %s326
      %p328 = scmp.lt.s32.totalorder %s20, 1
      %s329 = scalar_select %p328, %s20, 1
      %s330 = smul.addr %s329, 9
      %s331 = smul.addr %s330, 8
      %s332 = scalar_lea.vmem %s9, %s331
      %v333 = vld [vmem:[%s8] sm:$0xff]
      %v334 = vld [vmem:[%s8 + $0x8] sm:$0x1]
      %335 = vst [vmem:[#allocation2] sm:$0xff] 0.0
      %336 = vst [vmem:[#allocation2 + $0x8] sm:$0xff] 0.0
      %337 = vst [vmem:[#allocation2 + $0x10] sm:$0xff] 0.0
      %338 = vst [vmem:[#allocation2 + $0x18] sm:$0xff] 0.0
      %339 = vst [vmem:[#allocation2 + $0x20] sm:$0xff] 0.0
      %340 = vst [vmem:[#allocation2 + $0x28] sm:$0xff] 0.0
      %341 = vst [vmem:[#allocation2 + $0x30] sm:$0xff] 0.0
      %342 = vst [vmem:[#allocation2 + $0x38] sm:$0xff] 0.0
      %343 = vst [vmem:[#allocation2 + $0x40] sm:$0xff] 0.0
      %344 = vst [vmem:[#allocation2 + $0x48] sm:$0xff] 0.0
      %vm345 = vcmask 130048
      %346 = vst.msk [vmem:[#allocation2 + $0x50] sm:$0xff] %vm345, 0.0
      %347 = vst [vmem:[#allocation3] sm:$0xff] 0.0
      %348 = vst [vmem:[#allocation3 + $0x8] sm:$0xff] 0.0
      %349 = vst [vmem:[#allocation3 + $0x10] sm:$0xff] 0.0
      %350 = vst [vmem:[#allocation3 + $0x18] sm:$0xff] 0.0
      %351 = vst [vmem:[#allocation3 + $0x20] sm:$0xff] 0.0
      %352 = vst [vmem:[#allocation3 + $0x28] sm:$0xff] 0.0
      %353 = vst [vmem:[#allocation3 + $0x30] sm:$0xff] 0.0
      %354 = vst [vmem:[#allocation3 + $0x38] sm:$0xff] 0.0
      %355 = vst [vmem:[#allocation3 + $0x40] sm:$0xff] 0.0
      %356 = vst [vmem:[#allocation3 + $0x48] sm:$0xff] 0.0
      %357 = vst.msk [vmem:[#allocation3 + $0x50] sm:$0xff] %vm345, 0.0
      %v358 = vld [vmem:[%s327] sm:$0xff]
      %v359 = vld [vmem:[%s327 + $0x8] sm:$0xff]
      %v360 = vld [vmem:[%s327 + $0x10] sm:$0xff]
      %v361 = vld [vmem:[%s327 + $0x18] sm:$0xff]
      %v362 = vld [vmem:[%s327 + $0x20] sm:$0xf]
      %v363 = vld [vmem:[%s327 + $0x20] sm:$0xff]
      %v368 = vcombine.high %v358, %v358
      %v369 = vcombine.high %v359, %v359
      %v370 = vcombine.high %v360, %v360
      %v371 = vcombine.high %v361, %v361
      %v377 = vcombine.low %v358, %v358
      %v378 = vcombine.low %v359, %v359
      %v379 = vcombine.low %v360, %v360
      %v380 = vcombine.low %v361, %v361
      %v381 = vcombine.low %v363, %v363
      %382 = vrot.lane.b32.xlu0 %v377, 127
      %v383 = vpop.permute.xlu0 %382
      %384 = vrot.lane.b32.xlu0 %v358, 127
      %v385 = vpop.permute.xlu0 %384
      %386 = vrot.lane.b32.xlu0 %v378, 127
      %v387 = vpop.permute.xlu0 %386
      %388 = vrot.lane.b32.xlu0 %v359, 127
      %v389 = vpop.permute.xlu0 %388
      %390 = vrot.lane.b32.xlu0 %v379, 127
      %v391 = vpop.permute.xlu0 %390
      %392 = vrot.lane.b32.xlu0 %v360, 127
      %v393 = vpop.permute.xlu0 %392
      %394 = vrot.lane.b32.xlu0 %v380, 127
      %v395 = vpop.permute.xlu0 %394
      %396 = vrot.lane.b32.xlu0 %v361, 127
      %v397 = vpop.permute.xlu0 %396
      %398 = vrot.lane.b32.xlu0 %v381, 127
      %v399 = vpop.permute.xlu0 %398
      %400 = vrot.lane.b32.xlu0 %v363, 127
      %v401 = vpop.permute.xlu0 %400
      %vm402 = vcmask 1039360
      %v403 = vsel %vm402, %v383, %v385
      %v404 = vsel %vm402, %v385, %v387
      %v405 = vsel %vm402, %v387, %v389
      %v406 = vsel %vm402, %v389, %v391
      %v407 = vsel %vm402, %v391, %v393
      %v408 = vsel %vm402, %v393, %v395
      %v409 = vsel %vm402, %v395, %v397
      %v410 = vsel %vm402, %v397, %v399
      %v411 = vsel %vm402, %v399, %v401
      %v421 = vcombine.high %v363, %v363
      %422 = vrot.lane.b32.xlu0 %v358, 126
      %v423 = vpop.permute.xlu0 %422
      %424 = vrot.lane.b32.xlu0 %v368, 126
      %v425 = vpop.permute.xlu0 %424
      %426 = vrot.lane.b32.xlu0 %v359, 126
      %v427 = vpop.permute.xlu0 %426
      %428 = vrot.lane.b32.xlu0 %v369, 126
      %v429 = vpop.permute.xlu0 %428
      %430 = vrot.lane.b32.xlu0 %v360, 126
      %v431 = vpop.permute.xlu0 %430
      %432 = vrot.lane.b32.xlu0 %v370, 126
      %v433 = vpop.permute.xlu0 %432
      %434 = vrot.lane.b32.xlu0 %v361, 126
      %v435 = vpop.permute.xlu0 %434
      %436 = vrot.lane.b32.xlu0 %v371, 126
      %v437 = vpop.permute.xlu0 %436
      %438 = vrot.lane.b32.xlu0 %v363, 126
      %v439 = vpop.permute.xlu0 %438
      %440 = vrot.lane.b32.xlu0 %v421, 126
      %v441 = vpop.permute.xlu0 %440
      %vm442 = vcmask 1031168
      %v443 = vsel %vm442, %v423, %v425
      %v444 = vsel %vm442, %v425, %v427
      %v445 = vsel %vm442, %v427, %v429
      %v446 = vsel %vm442, %v429, %v431
      %v447 = vsel %vm442, %v431, %v433
      %v448 = vsel %vm442, %v433, %v435
      %v449 = vsel %vm442, %v435, %v437
      %v450 = vsel %vm442, %v437, %v439
      %v451 = vsel %vm442, %v439, %v441
      %461 = vrot.lane.b32.xlu0 %v377, 125
      %v462 = vpop.permute.xlu0 %461
      %463 = vrot.lane.b32.xlu0 %v358, 125
      %v464 = vpop.permute.xlu0 %463
      %465 = vrot.lane.b32.xlu0 %v378, 125
      %v466 = vpop.permute.xlu0 %465
      %467 = vrot.lane.b32.xlu0 %v359, 125
      %v468 = vpop.permute.xlu0 %467
      %469 = vrot.lane.b32.xlu0 %v379, 125
      %v470 = vpop.permute.xlu0 %469
      %471 = vrot.lane.b32.xlu0 %v360, 125
      %v472 = vpop.permute.xlu0 %471
      %473 = vrot.lane.b32.xlu0 %v380, 125
      %v474 = vpop.permute.xlu0 %473
      %475 = vrot.lane.b32.xlu0 %v361, 125
      %v476 = vpop.permute.xlu0 %475
      %477 = vrot.lane.b32.xlu0 %v381, 125
      %v478 = vpop.permute.xlu0 %477
      %479 = vrot.lane.b32.xlu0 %v363, 125
      %v480 = vpop.permute.xlu0 %479
      %vm481 = vcmask 1022976
      %v482 = vsel %vm481, %v462, %v464
      %v483 = vsel %vm481, %v464, %v466
      %v484 = vsel %vm481, %v466, %v468
      %v485 = vsel %vm481, %v468, %v470
      %v486 = vsel %vm481, %v470, %v472
      %v487 = vsel %vm481, %v472, %v474
      %v488 = vsel %vm481, %v474, %v476
      %v489 = vsel %vm481, %v476, %v478
      %v490 = vsel %vm481, %v478, %v480
      %500 = vrot.lane.b32.xlu0 %v358, 92
      %v501 = vpop.permute.xlu0 %500
      %502 = vrot.lane.b32.xlu0 %v368, 92
      %v503 = vpop.permute.xlu0 %502
      %504 = vrot.lane.b32.xlu0 %v359, 92
      %v505 = vpop.permute.xlu0 %504
      %506 = vrot.lane.b32.xlu0 %v369, 92
      %v507 = vpop.permute.xlu0 %506
      %508 = vrot.lane.b32.xlu0 %v360, 92
      %v509 = vpop.permute.xlu0 %508
      %510 = vrot.lane.b32.xlu0 %v370, 92
      %v511 = vpop.permute.xlu0 %510
      %512 = vrot.lane.b32.xlu0 %v361, 92
      %v513 = vpop.permute.xlu0 %512
      %514 = vrot.lane.b32.xlu0 %v371, 92
      %v515 = vpop.permute.xlu0 %514
      %516 = vrot.lane.b32.xlu0 %v363, 92
      %v517 = vpop.permute.xlu0 %516
      %518 = vrot.lane.b32.xlu0 %v421, 92
      %v519 = vpop.permute.xlu0 %518
      %vm520 = vcmask 752640
      %v521 = vsel %vm520, %v501, %v503
      %v522 = vsel %vm520, %v503, %v505
      %v523 = vsel %vm520, %v505, %v507
      %v524 = vsel %vm520, %v507, %v509
      %v525 = vsel %vm520, %v509, %v511
      %v526 = vsel %vm520, %v511, %v513
      %v527 = vsel %vm520, %v513, %v515
      %v528 = vsel %vm520, %v515, %v517
      %v529 = vsel %vm520, %v517, %v519
      %539 = vrot.lane.b32.xlu0 %v377, 91
      %v540 = vpop.permute.xlu0 %539
      %541 = vrot.lane.b32.xlu0 %v358, 91
      %v542 = vpop.permute.xlu0 %541
      %543 = vrot.lane.b32.xlu0 %v378, 91
      %v544 = vpop.permute.xlu0 %543
      %545 = vrot.lane.b32.xlu0 %v359, 91
      %v546 = vpop.permute.xlu0 %545
      %547 = vrot.lane.b32.xlu0 %v379, 91
      %v548 = vpop.permute.xlu0 %547
      %549 = vrot.lane.b32.xlu0 %v360, 91
      %v550 = vpop.permute.xlu0 %549
      %551 = vrot.lane.b32.xlu0 %v380, 91
      %v552 = vpop.permute.xlu0 %551
      %553 = vrot.lane.b32.xlu0 %v361, 91
      %v554 = vpop.permute.xlu0 %553
      %555 = vrot.lane.b32.xlu0 %v381, 91
      %v556 = vpop.permute.xlu0 %555
      %557 = vrot.lane.b32.xlu0 %v363, 91
      %v558 = vpop.permute.xlu0 %557
      %vm559 = vcmask 744448
      %v560 = vsel %vm559, %v540, %v542
      %v561 = vsel %vm559, %v542, %v544
      %v562 = vsel %vm559, %v544, %v546
      %v563 = vsel %vm559, %v546, %v548
      %v564 = vsel %vm559, %v548, %v550
      %v565 = vsel %vm559, %v550, %v552
      %v566 = vsel %vm559, %v552, %v554
      %v567 = vsel %vm559, %v554, %v556
      %v568 = vsel %vm559, %v556, %v558
      %578 = vrot.lane.b32.xlu0 %v358, 90
      %v579 = vpop.permute.xlu0 %578
      %580 = vrot.lane.b32.xlu0 %v368, 90
      %v581 = vpop.permute.xlu0 %580
      %582 = vrot.lane.b32.xlu0 %v359, 90
      %v583 = vpop.permute.xlu0 %582
      %584 = vrot.lane.b32.xlu0 %v369, 90
      %v585 = vpop.permute.xlu0 %584
      %586 = vrot.lane.b32.xlu0 %v360, 90
      %v587 = vpop.permute.xlu0 %586
      %588 = vrot.lane.b32.xlu0 %v370, 90
      %v589 = vpop.permute.xlu0 %588
      %590 = vrot.lane.b32.xlu0 %v361, 90
      %v591 = vpop.permute.xlu0 %590
      %592 = vrot.lane.b32.xlu0 %v371, 90
      %v593 = vpop.permute.xlu0 %592
      %594 = vrot.lane.b32.xlu0 %v363, 90
      %v595 = vpop.permute.xlu0 %594
      %596 = vrot.lane.b32.xlu0 %v421, 90
      %v597 = vpop.permute.xlu0 %596
      %vm598 = vcmask 736256
      %v599 = vsel %vm598, %v579, %v581
      %v600 = vsel %vm598, %v581, %v583
      %v601 = vsel %vm598, %v583, %v585
      %v602 = vsel %vm598, %v585, %v587
      %v603 = vsel %vm598, %v587, %v589
      %v604 = vsel %vm598, %v589, %v591
      %v605 = vsel %vm598, %v591, %v593
      %v606 = vsel %vm598, %v593, %v595
      %v607 = vsel %vm598, %v595, %v597
      %617 = vrot.lane.b32.xlu0 %v377, 89
      %v618 = vpop.permute.xlu0 %617
      %619 = vrot.lane.b32.xlu0 %v358, 89
      %v620 = vpop.permute.xlu0 %619
      %621 = vrot.lane.b32.xlu0 %v378, 89
      %v622 = vpop.permute.xlu0 %621
      %623 = vrot.lane.b32.xlu0 %v359, 89
      %v624 = vpop.permute.xlu0 %623
      %625 = vrot.lane.b32.xlu0 %v379, 89
      %v626 = vpop.permute.xlu0 %625
      %627 = vrot.lane.b32.xlu0 %v360, 89
      %v628 = vpop.permute.xlu0 %627
      %629 = vrot.lane.b32.xlu0 %v380, 89
      %v630 = vpop.permute.xlu0 %629
      %631 = vrot.lane.b32.xlu0 %v361, 89
      %v632 = vpop.permute.xlu0 %631
      %633 = vrot.lane.b32.xlu0 %v381, 89
      %v634 = vpop.permute.xlu0 %633
      %635 = vrot.lane.b32.xlu0 %v363, 89
      %v636 = vpop.permute.xlu0 %635
      %vm637 = vcmask 728064
      %v638 = vsel %vm637, %v618, %v620
      %v639 = vsel %vm637, %v620, %v622
      %v640 = vsel %vm637, %v622, %v624
      %v641 = vsel %vm637, %v624, %v626
      %v642 = vsel %vm637, %v626, %v628
      %v643 = vsel %vm637, %v628, %v630
      %v644 = vsel %vm637, %v630, %v632
      %v645 = vsel %vm637, %v632, %v634
      %v646 = vsel %vm637, %v634, %v636
      %656 = vrot.lane.b32.xlu0 %v358, 56
      %v657 = vpop.permute.xlu0 %656
      %658 = vrot.lane.b32.xlu0 %v368, 56
      %v659 = vpop.permute.xlu0 %658
      %660 = vrot.lane.b32.xlu0 %v359, 56
      %v661 = vpop.permute.xlu0 %660
      %662 = vrot.lane.b32.xlu0 %v369, 56
      %v663 = vpop.permute.xlu0 %662
      %664 = vrot.lane.b32.xlu0 %v360, 56
      %v665 = vpop.permute.xlu0 %664
      %666 = vrot.lane.b32.xlu0 %v370, 56
      %v667 = vpop.permute.xlu0 %666
      %668 = vrot.lane.b32.xlu0 %v361, 56
      %v669 = vpop.permute.xlu0 %668
      %670 = vrot.lane.b32.xlu0 %v371, 56
      %v671 = vpop.permute.xlu0 %670
      %672 = vrot.lane.b32.xlu0 %v363, 56
      %v673 = vpop.permute.xlu0 %672
      %674 = vrot.lane.b32.xlu0 %v421, 56
      %v675 = vpop.permute.xlu0 %674
      %vm676 = vcmask 457728
      %v677 = vsel %vm676, %v657, %v659
      %v678 = vsel %vm676, %v659, %v661
      %v679 = vsel %vm676, %v661, %v663
      %v680 = vsel %vm676, %v663, %v665
      %v681 = vsel %vm676, %v665, %v667
      %v682 = vsel %vm676, %v667, %v669
      %v683 = vsel %vm676, %v669, %v671
      %v684 = vsel %vm676, %v671, %v673
      %v685 = vsel %vm676, %v673, %v675
      %695 = vrot.lane.b32.xlu0 %v377, 55
      %v696 = vpop.permute.xlu0 %695
      %697 = vrot.lane.b32.xlu0 %v358, 55
      %v698 = vpop.permute.xlu0 %697
      %699 = vrot.lane.b32.xlu0 %v378, 55
      %v700 = vpop.permute.xlu0 %699
      %701 = vrot.lane.b32.xlu0 %v359, 55
      %v702 = vpop.permute.xlu0 %701
      %703 = vrot.lane.b32.xlu0 %v379, 55
      %v704 = vpop.permute.xlu0 %703
      %705 = vrot.lane.b32.xlu0 %v360, 55
      %v706 = vpop.permute.xlu0 %705
      %707 = vrot.lane.b32.xlu0 %v380, 55
      %v708 = vpop.permute.xlu0 %707
      %709 = vrot.lane.b32.xlu0 %v361, 55
      %v710 = vpop.permute.xlu0 %709
      %711 = vrot.lane.b32.xlu0 %v381, 55
      %v712 = vpop.permute.xlu0 %711
      %713 = vrot.lane.b32.xlu0 %v363, 55
      %v714 = vpop.permute.xlu0 %713
      %vm715 = vcmask 449536
      %v716 = vsel %vm715, %v696, %v698
      %v717 = vsel %vm715, %v698, %v700
      %v718 = vsel %vm715, %v700, %v702
      %v719 = vsel %vm715, %v702, %v704
      %v720 = vsel %vm715, %v704, %v706
      %v721 = vsel %vm715, %v706, %v708
      %v722 = vsel %vm715, %v708, %v710
      %v723 = vsel %vm715, %v710, %v712
      %v724 = vsel %vm715, %v712, %v714
      %734 = vrot.lane.b32.xlu0 %v358, 54
      %v735 = vpop.permute.xlu0 %734
      %736 = vrot.lane.b32.xlu0 %v368, 54
      %v737 = vpop.permute.xlu0 %736
      %738 = vrot.lane.b32.xlu0 %v359, 54
      %v739 = vpop.permute.xlu0 %738
      %740 = vrot.lane.b32.xlu0 %v369, 54
      %v741 = vpop.permute.xlu0 %740
      %742 = vrot.lane.b32.xlu0 %v360, 54
      %v743 = vpop.permute.xlu0 %742
      %744 = vrot.lane.b32.xlu0 %v370, 54
      %v745 = vpop.permute.xlu0 %744
      %746 = vrot.lane.b32.xlu0 %v361, 54
      %v747 = vpop.permute.xlu0 %746
      %748 = vrot.lane.b32.xlu0 %v371, 54
      %v749 = vpop.permute.xlu0 %748
      %750 = vrot.lane.b32.xlu0 %v363, 54
      %v751 = vpop.permute.xlu0 %750
      %752 = vrot.lane.b32.xlu0 %v421, 54
      %v753 = vpop.permute.xlu0 %752
      %vm754 = vcmask 441344
      %v755 = vsel %vm754, %v735, %v737
      %v756 = vsel %vm754, %v737, %v739
      %v757 = vsel %vm754, %v739, %v741
      %v758 = vsel %vm754, %v741, %v743
      %v759 = vsel %vm754, %v743, %v745
      %v760 = vsel %vm754, %v745, %v747
      %v761 = vsel %vm754, %v747, %v749
      %v762 = vsel %vm754, %v749, %v751
      %v763 = vsel %vm754, %v751, %v753
      %773 = vrot.lane.b32.xlu0 %v377, 53
      %v774 = vpop.permute.xlu0 %773
      %775 = vrot.lane.b32.xlu0 %v358, 53
      %v776 = vpop.permute.xlu0 %775
      %777 = vrot.lane.b32.xlu0 %v378, 53
      %v778 = vpop.permute.xlu0 %777
      %779 = vrot.lane.b32.xlu0 %v359, 53
      %v780 = vpop.permute.xlu0 %779
      %781 = vrot.lane.b32.xlu0 %v379, 53
      %v782 = vpop.permute.xlu0 %781
      %783 = vrot.lane.b32.xlu0 %v360, 53
      %v784 = vpop.permute.xlu0 %783
      %785 = vrot.lane.b32.xlu0 %v380, 53
      %v786 = vpop.permute.xlu0 %785
      %787 = vrot.lane.b32.xlu0 %v361, 53
      %v788 = vpop.permute.xlu0 %787
      %789 = vrot.lane.b32.xlu0 %v381, 53
      %v790 = vpop.permute.xlu0 %789
      %791 = vrot.lane.b32.xlu0 %v363, 53
      %v792 = vpop.permute.xlu0 %791
      %vm793 = vcmask 433152
      %v794 = vsel %vm793, %v774, %v776
      %v795 = vsel %vm793, %v776, %v778
      %v796 = vsel %vm793, %v778, %v780
      %v797 = vsel %vm793, %v780, %v782
      %v798 = vsel %vm793, %v782, %v784
      %v799 = vsel %vm793, %v784, %v786
      %v800 = vsel %vm793, %v786, %v788
      %v801 = vsel %vm793, %v788, %v790
      %v802 = vsel %vm793, %v790, %v792
      %812 = vrot.lane.b32.xlu0 %v358, 20
      %v813 = vpop.permute.xlu0 %812
      %814 = vrot.lane.b32.xlu0 %v368, 20
      %v815 = vpop.permute.xlu0 %814
      %816 = vrot.lane.b32.xlu0 %v359, 20
      %v817 = vpop.permute.xlu0 %816
      %818 = vrot.lane.b32.xlu0 %v369, 20
      %v819 = vpop.permute.xlu0 %818
      %820 = vrot.lane.b32.xlu0 %v360, 20
      %v821 = vpop.permute.xlu0 %820
      %822 = vrot.lane.b32.xlu0 %v370, 20
      %v823 = vpop.permute.xlu0 %822
      %824 = vrot.lane.b32.xlu0 %v361, 20
      %v825 = vpop.permute.xlu0 %824
      %826 = vrot.lane.b32.xlu0 %v371, 20
      %v827 = vpop.permute.xlu0 %826
      %828 = vrot.lane.b32.xlu0 %v363, 20
      %v829 = vpop.permute.xlu0 %828
      %830 = vrot.lane.b32.xlu0 %v421, 20
      %v831 = vpop.permute.xlu0 %830
      %vm832 = vcmask 162816
      %v833 = vsel %vm832, %v813, %v815
      %v834 = vsel %vm832, %v815, %v817
      %v835 = vsel %vm832, %v817, %v819
      %v836 = vsel %vm832, %v819, %v821
      %v837 = vsel %vm832, %v821, %v823
      %v838 = vsel %vm832, %v823, %v825
      %v839 = vsel %vm832, %v825, %v827
      %v840 = vsel %vm832, %v827, %v829
      %v841 = vsel %vm832, %v829, %v831
      %851 = vrot.lane.b32.xlu0 %v377, 19
      %v852 = vpop.permute.xlu0 %851
      %853 = vrot.lane.b32.xlu0 %v358, 19
      %v854 = vpop.permute.xlu0 %853
      %855 = vrot.lane.b32.xlu0 %v378, 19
      %v856 = vpop.permute.xlu0 %855
      %857 = vrot.lane.b32.xlu0 %v359, 19
      %v858 = vpop.permute.xlu0 %857
      %859 = vrot.lane.b32.xlu0 %v379, 19
      %v860 = vpop.permute.xlu0 %859
      %861 = vrot.lane.b32.xlu0 %v360, 19
      %v862 = vpop.permute.xlu0 %861
      %863 = vrot.lane.b32.xlu0 %v380, 19
      %v864 = vpop.permute.xlu0 %863
      %865 = vrot.lane.b32.xlu0 %v361, 19
      %v866 = vpop.permute.xlu0 %865
      %867 = vrot.lane.b32.xlu0 %v381, 19
      %v868 = vpop.permute.xlu0 %867
      %869 = vrot.lane.b32.xlu0 %v363, 19
      %v870 = vpop.permute.xlu0 %869
      %vm871 = vcmask 154624
      %v872 = vsel %vm871, %v852, %v854
      %v873 = vsel %vm871, %v854, %v856
      %v874 = vsel %vm871, %v856, %v858
      %v875 = vsel %vm871, %v858, %v860
      %v876 = vsel %vm871, %v860, %v862
      %v877 = vsel %vm871, %v862, %v864
      %v878 = vsel %vm871, %v864, %v866
      %v879 = vsel %vm871, %v866, %v868
      %v880 = vsel %vm871, %v868, %v870
      %890 = vrot.lane.b32.xlu0 %v358, 18
      %v891 = vpop.permute.xlu0 %890
      %892 = vrot.lane.b32.xlu0 %v368, 18
      %v893 = vpop.permute.xlu0 %892
      %894 = vrot.lane.b32.xlu0 %v359, 18
      %v895 = vpop.permute.xlu0 %894
      %896 = vrot.lane.b32.xlu0 %v369, 18
      %v897 = vpop.permute.xlu0 %896
      %898 = vrot.lane.b32.xlu0 %v360, 18
      %v899 = vpop.permute.xlu0 %898
      %900 = vrot.lane.b32.xlu0 %v370, 18
      %v901 = vpop.permute.xlu0 %900
      %902 = vrot.lane.b32.xlu0 %v361, 18
      %v903 = vpop.permute.xlu0 %902
      %904 = vrot.lane.b32.xlu0 %v371, 18
      %v905 = vpop.permute.xlu0 %904
      %906 = vrot.lane.b32.xlu0 %v363, 18
      %v907 = vpop.permute.xlu0 %906
      %908 = vrot.lane.b32.xlu0 %v421, 18
      %v909 = vpop.permute.xlu0 %908
      %vm910 = vcmask 146432
      %v911 = vsel %vm910, %v891, %v893
      %v912 = vsel %vm910, %v893, %v895
      %v913 = vsel %vm910, %v895, %v897
      %v914 = vsel %vm910, %v897, %v899
      %v915 = vsel %vm910, %v899, %v901
      %v916 = vsel %vm910, %v901, %v903
      %v917 = vsel %vm910, %v903, %v905
      %v918 = vsel %vm910, %v905, %v907
      %v919 = vsel %vm910, %v907, %v909
      %929 = vrot.lane.b32.xlu0 %v377, 17
      %v930 = vpop.permute.xlu0 %929
      %931 = vrot.lane.b32.xlu0 %v358, 17
      %v932 = vpop.permute.xlu0 %931
      %933 = vrot.lane.b32.xlu0 %v378, 17
      %v934 = vpop.permute.xlu0 %933
      %935 = vrot.lane.b32.xlu0 %v359, 17
      %v936 = vpop.permute.xlu0 %935
      %937 = vrot.lane.b32.xlu0 %v379, 17
      %v938 = vpop.permute.xlu0 %937
      %939 = vrot.lane.b32.xlu0 %v360, 17
      %v940 = vpop.permute.xlu0 %939
      %941 = vrot.lane.b32.xlu0 %v380, 17
      %v942 = vpop.permute.xlu0 %941
      %943 = vrot.lane.b32.xlu0 %v361, 17
      %v944 = vpop.permute.xlu0 %943
      %945 = vrot.lane.b32.xlu0 %v381, 17
      %v946 = vpop.permute.xlu0 %945
      %947 = vrot.lane.b32.xlu0 %v363, 17
      %v948 = vpop.permute.xlu0 %947
      %vm949 = vcmask 138240
      %v950 = vsel %vm949, %v930, %v932
      %v951 = vsel %vm949, %v932, %v934
      %v952 = vsel %vm949, %v934, %v936
      %v953 = vsel %vm949, %v936, %v938
      %v954 = vsel %vm949, %v938, %v940
      %v955 = vsel %vm949, %v940, %v942
      %v956 = vsel %vm949, %v942, %v944
      %v957 = vsel %vm949, %v944, %v946
      %v958 = vsel %vm949, %v946, %v948
      %vm968 = vcmask 1043456
      %v969 = vsel %vm968, %v358, %v403
      %v970 = vsel %vm968, %v368, %v404
      %v971 = vsel %vm968, %v359, %v405
      %v972 = vsel %vm968, %v369, %v406
      %v973 = vsel %vm968, %v360, %v407
      %v974 = vsel %vm968, %v370, %v408
      %v975 = vsel %vm968, %v361, %v409
      %v976 = vsel %vm968, %v371, %v410
      %v977 = vsel %vm968, %v362, %v411
      %v978 = vsel %vm968, %v443, %v482
      %v979 = vsel %vm968, %v444, %v483
      %v980 = vsel %vm968, %v445, %v484
      %v981 = vsel %vm968, %v446, %v485
      %v982 = vsel %vm968, %v447, %v486
      %v983 = vsel %vm968, %v448, %v487
      %v984 = vsel %vm968, %v449, %v488
      %v985 = vsel %vm968, %v450, %v489
      %v986 = vsel %vm968, %v451, %v490
      %v987 = vsel %vm968, %v521, %v560
      %v988 = vsel %vm968, %v522, %v561
      %v989 = vsel %vm968, %v523, %v562
      %v990 = vsel %vm968, %v524, %v563
      %v991 = vsel %vm968, %v525, %v564
      %v992 = vsel %vm968, %v526, %v565
      %v993 = vsel %vm968, %v527, %v566
      %v994 = vsel %vm968, %v528, %v567
      %v995 = vsel %vm968, %v529, %v568
      %v996 = vsel %vm968, %v599, %v638
      %v997 = vsel %vm968, %v600, %v639
      %v998 = vsel %vm968, %v601, %v640
      %v999 = vsel %vm968, %v602, %v641
      %v1000 = vsel %vm968, %v603, %v642
      %v1001 = vsel %vm968, %v604, %v643
      %v1002 = vsel %vm968, %v605, %v644
      %v1003 = vsel %vm968, %v606, %v645
      %v1004 = vsel %vm968, %v607, %v646
      %v1005 = vsel %vm968, %v677, %v716
      %v1006 = vsel %vm968, %v678, %v717
      %v1007 = vsel %vm968, %v679, %v718
      %v1008 = vsel %vm968, %v680, %v719
      %v1009 = vsel %vm968, %v681, %v720
      %v1010 = vsel %vm968, %v682, %v721
      %v1011 = vsel %vm968, %v683, %v722
      %v1012 = vsel %vm968, %v684, %v723
      %v1013 = vsel %vm968, %v685, %v724
      %v1014 = vsel %vm968, %v755, %v794
      %v1015 = vsel %vm968, %v756, %v795
      %v1016 = vsel %vm968, %v757, %v796
      %v1017 = vsel %vm968, %v758, %v797
      %v1018 = vsel %vm968, %v759, %v798
      %v1019 = vsel %vm968, %v760, %v799
      %v1020 = vsel %vm968, %v761, %v800
      %v1021 = vsel %vm968, %v762, %v801
      %v1022 = vsel %vm968, %v763, %v802
      %v1023 = vsel %vm968, %v833, %v872
      %v1024 = vsel %vm968, %v834, %v873
      %v1025 = vsel %vm968, %v835, %v874
      %v1026 = vsel %vm968, %v836, %v875
      %v1027 = vsel %vm968, %v837, %v876
      %v1028 = vsel %vm968, %v838, %v877
      %v1029 = vsel %vm968, %v839, %v878
      %v1030 = vsel %vm968, %v840, %v879
      %v1031 = vsel %vm968, %v841, %v880
      %v1032 = vsel %vm968, %v911, %v950
      %v1033 = vsel %vm968, %v912, %v951
      %v1034 = vsel %vm968, %v913, %v952
      %v1035 = vsel %vm968, %v914, %v953
      %v1036 = vsel %vm968, %v915, %v954
      %v1037 = vsel %vm968, %v916, %v955
      %v1038 = vsel %vm968, %v917, %v956
      %v1039 = vsel %vm968, %v918, %v957
      %v1040 = vsel %vm968, %v919, %v958
      %v1041 = vld [vmem:[%s1] sm:$0xff]
      %v1042 = vld [vmem:[%s2] sm:$0xff]
      %1044 = vset.pattern.permute.xlu0 0
      %1045 = vperm.xlu0 %1044, %v1042
      %v1046 = vpop.permute.xlu0 %1045
      %vm1048 = vcmask 523264
      %v1050 = vsel %vm1048, %v1041, 0
      %1052 = vmatprep.subr.mxu0 0.0
      %1053 = vmatpush1.msra.mxu0 0.0
      %1054 = vmatprep.subr.mxu0 0.0
      %1055 = vmatpush1.msra.mxu0 0.0
      %1056 = vmatprep.subr.mxu0 0.0
      %1057 = vmatpush1.msra.mxu0 0.0
      %1058 = vmatprep.subr.mxu0 0.0
      %1059 = vmatpush1.msra.mxu0 0.0
      %1060 = vmatprep.subr.mxu0 0.0
      %1061 = vmatpush1.msra.mxu0 0.0
      %1062 = vmatprep.subr.mxu0 0.0
      %1063 = vmatpush1.msra.mxu0 0.0
      %1064 = vmatprep.subr.mxu0 0.0
      %1065 = vmatpush1.msra.mxu0 0.0
      %1066 = vmatprep.subr.mxu0 0.0
      %1067 = vmatpush1.msra.mxu0 0.0
      %1068 = vmatprep.subr.mxu0 %v1033
      %1069 = vmatpush1.msra.mxu0 %v1032
      %1070 = vmatprep.subr.mxu0 %v1024
      %1071 = vmatpush1.msra.mxu0 %v1023
      %1072 = vmatprep.subr.mxu0 %v1015
      %1073 = vmatpush1.msra.mxu0 %v1014
      %1074 = vmatprep.subr.mxu0 %v1006
      %1075 = vmatpush1.msra.mxu0 %v1005
      %1076 = vmatprep.subr.mxu0 %v997
      %1077 = vmatpush1.msra.mxu0 %v996
      %1078 = vmatprep.subr.mxu0 %v988
      %1079 = vmatpush1.msra.mxu0 %v987
      %1080 = vmatprep.subr.mxu0 %v979
      %1081 = vmatpush1.msra.mxu0 %v978
      %1082 = vmatprep.subr.mxu0 %v970
      %1083 = vmatpush1.msra.mxu0 %v969
      %1084 = vmatprep.subr.mxu0 0.0
      %1085 = vmatpush2.msra.mxu0 0.0
      %1086 = vmatprep.subr.mxu0 0.0
      %1087 = vmatpush2.msra.mxu0 0.0
      %1088 = vmatprep.subr.mxu0 0.0
      %1089 = vmatpush2.msra.mxu0 0.0
      %1090 = vmatprep.subr.mxu0 0.0
      %1091 = vmatpush2.msra.mxu0 0.0
      %1092 = vmatprep.subr.mxu0 0.0
      %1093 = vmatpush2.msra.mxu0 0.0
      %1094 = vmatprep.subr.mxu0 0.0
      %1095 = vmatpush2.msra.mxu0 0.0
      %1096 = vmatprep.subr.mxu0 0.0
      %1097 = vmatpush2.msra.mxu0 0.0
      %1098 = vmatprep.subr.mxu0 0.0
      %1099 = vmatpush2.msra.mxu0 0.0
      %1100 = vmatprep.subr.mxu0 0.0
      %1101 = vmatpush2.msra.mxu0 0.0
      %1102 = vmatprep.subr.mxu0 0.0
      %1103 = vmatpush2.msra.mxu0 0.0
      %1104 = vmatprep.subr.mxu0 0.0
      %1105 = vmatpush2.msra.mxu0 0.0
      %1106 = vmatprep.subr.mxu0 0.0
      %1107 = vmatpush2.msra.mxu0 0.0
      %1108 = vmatprep.subr.mxu0 0.0
      %1109 = vmatpush2.msra.mxu0 0.0
      %1110 = vmatprep.subr.mxu0 0.0
      %1111 = vmatpush2.msra.mxu0 0.0
      %1112 = vmatprep.subr.mxu0 0.0
      %1113 = vmatpush2.msra.mxu0 0.0
      %1114 = vmatprep.subr.mxu0 0.0
      %1115 = vmatpush2.msra.mxu0 0.0
      %1116 = vmatprep.mubr.f32.mxu0 0.0
      %1117 = vmatmul.mubr.f32.gmra.mxu0 %v1050
      %v1118 = vpop.f32.mrf.mxu0
      %v1119 = vadd.f32 %v1046, %v1118
      %v1120 = vpop.f32.mrf.mxu0
      %v1121 = vadd.f32 %v1046, %v1120
      %1122 = vdwg.mxu0
      %1123 = vmatprep.subr.mxu0 0.0
      %1124 = vmatpush1.msra.mxu0 0.0
      %1125 = vmatprep.subr.mxu0 0.0
      %1126 = vmatpush1.msra.mxu0 0.0
      %1127 = vmatprep.subr.mxu0 0.0
      %1128 = vmatpush1.msra.mxu0 0.0
      %1129 = vmatprep.subr.mxu0 0.0
      %1130 = vmatpush1.msra.mxu0 0.0
      %1131 = vmatprep.subr.mxu0 0.0
      %1132 = vmatpush1.msra.mxu0 0.0
      %1133 = vmatprep.subr.mxu0 0.0
      %1134 = vmatpush1.msra.mxu0 0.0
      %1135 = vmatprep.subr.mxu0 0.0
      %1136 = vmatpush1.msra.mxu0 0.0
      %1137 = vmatprep.subr.mxu0 0.0
      %1138 = vmatpush1.msra.mxu0 0.0
      %1139 = vmatprep.subr.mxu0 %v1035
      %1140 = vmatpush1.msra.mxu0 %v1034
      %1141 = vmatprep.subr.mxu0 %v1026
      %1142 = vmatpush1.msra.mxu0 %v1025
      %1143 = vmatprep.subr.mxu0 %v1017
      %1144 = vmatpush1.msra.mxu0 %v1016
      %1145 = vmatprep.subr.mxu0 %v1008
      %1146 = vmatpush1.msra.mxu0 %v1007
      %1147 = vmatprep.subr.mxu0 %v999
      %1148 = vmatpush1.msra.mxu0 %v998
      %1149 = vmatprep.subr.mxu0 %v990
      %1150 = vmatpush1.msra.mxu0 %v989
      %1151 = vmatprep.subr.mxu0 %v981
      %1152 = vmatpush1.msra.mxu0 %v980
      %1153 = vmatprep.subr.mxu0 %v972
      %1154 = vmatpush1.msra.mxu0 %v971
      %1155 = vmatprep.subr.mxu0 0.0
      %1156 = vmatpush2.msra.mxu0 0.0
      %1157 = vmatprep.subr.mxu0 0.0
      %1158 = vmatpush2.msra.mxu0 0.0
      %1159 = vmatprep.subr.mxu0 0.0
      %1160 = vmatpush2.msra.mxu0 0.0
      %1161 = vmatprep.subr.mxu0 0.0
      %1162 = vmatpush2.msra.mxu0 0.0
      %1163 = vmatprep.subr.mxu0 0.0
      %1164 = vmatpush2.msra.mxu0 0.0
      %1165 = vmatprep.subr.mxu0 0.0
      %1166 = vmatpush2.msra.mxu0 0.0
      %1167 = vmatprep.subr.mxu0 0.0
      %1168 = vmatpush2.msra.mxu0 0.0
      %1169 = vmatprep.subr.mxu0 0.0
      %1170 = vmatpush2.msra.mxu0 0.0
      %1171 = vmatprep.subr.mxu0 0.0
      %1172 = vmatpush2.msra.mxu0 0.0
      %1173 = vmatprep.subr.mxu0 0.0
      %1174 = vmatpush2.msra.mxu0 0.0
      %1175 = vmatprep.subr.mxu0 0.0
      %1176 = vmatpush2.msra.mxu0 0.0
      %1177 = vmatprep.subr.mxu0 0.0
      %1178 = vmatpush2.msra.mxu0 0.0
      %1179 = vmatprep.subr.mxu0 0.0
      %1180 = vmatpush2.msra.mxu0 0.0
      %1181 = vmatprep.subr.mxu0 0.0
      %1182 = vmatpush2.msra.mxu0 0.0
      %1183 = vmatprep.subr.mxu0 0.0
      %1184 = vmatpush2.msra.mxu0 0.0
      %1185 = vmatprep.subr.mxu0 0.0
      %1186 = vmatpush2.msra.mxu0 0.0
      %1187 = vmatprep.mubr.f32.mxu0 0.0
      %1188 = vmatmul.mubr.f32.gmra.mxu0 %v1050
      %v1189 = vpop.f32.mrf.mxu0
      %v1190 = vadd.f32 %v1046, %v1189
      %v1191 = vpop.f32.mrf.mxu0
      %v1192 = vadd.f32 %v1046, %v1191
      %1193 = vdwg.mxu0
      %1194 = vmatprep.subr.mxu0 0.0
      %1195 = vmatpush1.msra.mxu0 0.0
      %1196 = vmatprep.subr.mxu0 0.0
      %1197 = vmatpush1.msra.mxu0 0.0
      %1198 = vmatprep.subr.mxu0 0.0
      %1199 = vmatpush1.msra.mxu0 0.0
      %1200 = vmatprep.subr.mxu0 0.0
      %1201 = vmatpush1.msra.mxu0 0.0
      %1202 = vmatprep.subr.mxu0 0.0
      %1203 = vmatpush1.msra.mxu0 0.0
      %1204 = vmatprep.subr.mxu0 0.0
      %1205 = vmatpush1.msra.mxu0 0.0
      %1206 = vmatprep.subr.mxu0 0.0
      %1207 = vmatpush1.msra.mxu0 0.0
      %1208 = vmatprep.subr.mxu0 0.0
      %1209 = vmatpush1.msra.mxu0 0.0
      %1210 = vmatprep.subr.mxu0 %v1037
      %1211 = vmatpush1.msra.mxu0 %v1036
      %1212 = vmatprep.subr.mxu0 %v1028
      %1213 = vmatpush1.msra.mxu0 %v1027
      %1214 = vmatprep.subr.mxu0 %v1019
      %1215 = vmatpush1.msra.mxu0 %v1018
      %1216 = vmatprep.subr.mxu0 %v1010
      %1217 = vmatpush1.msra.mxu0 %v1009
      %1218 = vmatprep.subr.mxu0 %v1001
      %1219 = vmatpush1.msra.mxu0 %v1000
      %1220 = vmatprep.subr.mxu0 %v992
      %1221 = vmatpush1.msra.mxu0 %v991
      %1222 = vmatprep.subr.mxu0 %v983
      %1223 = vmatpush1.msra.mxu0 %v982
      %1224 = vmatprep.subr.mxu0 %v974
      %1225 = vmatpush1.msra.mxu0 %v973
      %1226 = vmatprep.subr.mxu0 0.0
      %1227 = vmatpush2.msra.mxu0 0.0
      %1228 = vmatprep.subr.mxu0 0.0
      %1229 = vmatpush2.msra.mxu0 0.0
      %1230 = vmatprep.subr.mxu0 0.0
      %1231 = vmatpush2.msra.mxu0 0.0
      %1232 = vmatprep.subr.mxu0 0.0
      %1233 = vmatpush2.msra.mxu0 0.0
      %1234 = vmatprep.subr.mxu0 0.0
      %1235 = vmatpush2.msra.mxu0 0.0
      %1236 = vmatprep.subr.mxu0 0.0
      %1237 = vmatpush2.msra.mxu0 0.0
      %1238 = vmatprep.subr.mxu0 0.0
      %1239 = vmatpush2.msra.mxu0 0.0
      %1240 = vmatprep.subr.mxu0 0.0
      %1241 = vmatpush2.msra.mxu0 0.0
      %1242 = vmatprep.subr.mxu0 0.0
      %1243 = vmatpush2.msra.mxu0 0.0
      %1244 = vmatprep.subr.mxu0 0.0
      %1245 = vmatpush2.msra.mxu0 0.0
      %1246 = vmatprep.subr.mxu0 0.0
      %1247 = vmatpush2.msra.mxu0 0.0
      %1248 = vmatprep.subr.mxu0 0.0
      %1249 = vmatpush2.msra.mxu0 0.0
      %1250 = vmatprep.subr.mxu0 0.0
      %1251 = vmatpush2.msra.mxu0 0.0
      %1252 = vmatprep.subr.mxu0 0.0
      %1253 = vmatpush2.msra.mxu0 0.0
      %1254 = vmatprep.subr.mxu0 0.0
      %1255 = vmatpush2.msra.mxu0 0.0
      %1256 = vmatprep.subr.mxu0 0.0
      %1257 = vmatpush2.msra.mxu0 0.0
      %1258 = vmatprep.mubr.f32.mxu0 0.0
      %1259 = vmatmul.mubr.f32.gmra.mxu0 %v1050
      %v1260 = vpop.f32.mrf.mxu0
      %v1261 = vadd.f32 %v1046, %v1260
      %v1262 = vpop.f32.mrf.mxu0
      %v1263 = vadd.f32 %v1046, %v1262
      %1264 = vdwg.mxu0
      %1265 = vmatprep.subr.mxu0 0.0
      %1266 = vmatpush1.msra.mxu0 0.0
      %1267 = vmatprep.subr.mxu0 0.0
      %1268 = vmatpush1.msra.mxu0 0.0
      %1269 = vmatprep.subr.mxu0 0.0
      %1270 = vmatpush1.msra.mxu0 0.0
      %1271 = vmatprep.subr.mxu0 0.0
      %1272 = vmatpush1.msra.mxu0 0.0
      %1273 = vmatprep.subr.mxu0 0.0
      %1274 = vmatpush1.msra.mxu0 0.0
      %1275 = vmatprep.subr.mxu0 0.0
      %1276 = vmatpush1.msra.mxu0 0.0
      %1277 = vmatprep.subr.mxu0 0.0
      %1278 = vmatpush1.msra.mxu0 0.0
      %1279 = vmatprep.subr.mxu0 0.0
      %1280 = vmatpush1.msra.mxu0 0.0
      %1281 = vmatprep.subr.mxu0 %v1039
      %1282 = vmatpush1.msra.mxu0 %v1038
      %1283 = vmatprep.subr.mxu0 %v1030
      %1284 = vmatpush1.msra.mxu0 %v1029
      %1285 = vmatprep.subr.mxu0 %v1021
      %1286 = vmatpush1.msra.mxu0 %v1020
      %1287 = vmatprep.subr.mxu0 %v1012
      %1288 = vmatpush1.msra.mxu0 %v1011
      %1289 = vmatprep.subr.mxu0 %v1003
      %1290 = vmatpush1.msra.mxu0 %v1002
      %1291 = vmatprep.subr.mxu0 %v994
      %1292 = vmatpush1.msra.mxu0 %v993
      %1293 = vmatprep.subr.mxu0 %v985
      %1294 = vmatpush1.msra.mxu0 %v984
      %1295 = vmatprep.subr.mxu0 %v976
      %1296 = vmatpush1.msra.mxu0 %v975
      %1297 = vmatprep.subr.mxu0 0.0
      %1298 = vmatpush2.msra.mxu0 0.0
      %1299 = vmatprep.subr.mxu0 0.0
      %1300 = vmatpush2.msra.mxu0 0.0
      %1301 = vmatprep.subr.mxu0 0.0
      %1302 = vmatpush2.msra.mxu0 0.0
      %1303 = vmatprep.subr.mxu0 0.0
      %1304 = vmatpush2.msra.mxu0 0.0
      %1305 = vmatprep.subr.mxu0 0.0
      %1306 = vmatpush2.msra.mxu0 0.0
      %1307 = vmatprep.subr.mxu0 0.0
      %1308 = vmatpush2.msra.mxu0 0.0
      %1309 = vmatprep.subr.mxu0 0.0
      %1310 = vmatpush2.msra.mxu0 0.0
      %1311 = vmatprep.subr.mxu0 0.0
      %1312 = vmatpush2.msra.mxu0 0.0
      %1313 = vmatprep.subr.mxu0 0.0
      %1314 = vmatpush2.msra.mxu0 0.0
      %1315 = vmatprep.subr.mxu0 0.0
      %1316 = vmatpush2.msra.mxu0 0.0
      %1317 = vmatprep.subr.mxu0 0.0
      %1318 = vmatpush2.msra.mxu0 0.0
      %1319 = vmatprep.subr.mxu0 0.0
      %1320 = vmatpush2.msra.mxu0 0.0
      %1321 = vmatprep.subr.mxu0 0.0
      %1322 = vmatpush2.msra.mxu0 0.0
      %1323 = vmatprep.subr.mxu0 0.0
      %1324 = vmatpush2.msra.mxu0 0.0
      %1325 = vmatprep.subr.mxu0 0.0
      %1326 = vmatpush2.msra.mxu0 0.0
      %1327 = vmatprep.subr.mxu0 0.0
      %1328 = vmatpush2.msra.mxu0 0.0
      %1329 = vmatprep.mubr.f32.mxu0 0.0
      %1330 = vmatmul.mubr.f32.gmra.mxu0 %v1050
      %v1331 = vpop.f32.mrf.mxu0
      %v1332 = vadd.f32 %v1046, %v1331
      %v1333 = vpop.f32.mrf.mxu0
      %v1334 = vadd.f32 %v1046, %v1333
      %1335 = vdwg.mxu0
      %1336 = vmatprep.subr.mxu0 0.0
      %1337 = vmatpush1.msra.mxu0 0.0
      %1338 = vmatprep.subr.mxu0 0.0
      %1339 = vmatpush1.msra.mxu0 0.0
      %1340 = vmatprep.subr.mxu0 0.0
      %1341 = vmatpush1.msra.mxu0 0.0
      %1342 = vmatprep.subr.mxu0 0.0
      %1343 = vmatpush1.msra.mxu0 0.0
      %1344 = vmatprep.subr.mxu0 0.0
      %1345 = vmatpush1.msra.mxu0 0.0
      %1346 = vmatprep.subr.mxu0 0.0
      %1347 = vmatpush1.msra.mxu0 0.0
      %1348 = vmatprep.subr.mxu0 0.0
      %1349 = vmatpush1.msra.mxu0 0.0
      %1350 = vmatprep.subr.mxu0 0.0
      %1351 = vmatpush1.msra.mxu0 0.0
      %1352 = vmatprep.subr.mxu0 0.0
      %1353 = vmatpush1.msra.mxu0 %v1040
      %1354 = vmatprep.subr.mxu0 0.0
      %1355 = vmatpush1.msra.mxu0 %v1031
      %1356 = vmatprep.subr.mxu0 0.0
      %1357 = vmatpush1.msra.mxu0 %v1022
      %1358 = vmatprep.subr.mxu0 0.0
      %1359 = vmatpush1.msra.mxu0 %v1013
      %1360 = vmatprep.subr.mxu0 0.0
      %1361 = vmatpush1.msra.mxu0 %v1004
      %1362 = vmatprep.subr.mxu0 0.0
      %1363 = vmatpush1.msra.mxu0 %v995
      %1364 = vmatprep.subr.mxu0 0.0
      %1365 = vmatpush1.msra.mxu0 %v986
      %1366 = vmatprep.subr.mxu0 0.0
      %1367 = vmatpush1.msra.mxu0 %v977
      %1368 = vmatprep.subr.mxu0 0.0
      %1369 = vmatpush2.msra.mxu0 0.0
      %1370 = vmatprep.subr.mxu0 0.0
      %1371 = vmatpush2.msra.mxu0 0.0
      %1372 = vmatprep.subr.mxu0 0.0
      %1373 = vmatpush2.msra.mxu0 0.0
      %1374 = vmatprep.subr.mxu0 0.0
      %1375 = vmatpush2.msra.mxu0 0.0
      %1376 = vmatprep.subr.mxu0 0.0
      %1377 = vmatpush2.msra.mxu0 0.0
      %1378 = vmatprep.subr.mxu0 0.0
      %1379 = vmatpush2.msra.mxu0 0.0
      %1380 = vmatprep.subr.mxu0 0.0
      %1381 = vmatpush2.msra.mxu0 0.0
      %1382 = vmatprep.subr.mxu0 0.0
      %1383 = vmatpush2.msra.mxu0 0.0
      %1384 = vmatprep.subr.mxu0 0.0
      %1385 = vmatpush2.msra.mxu0 0.0
      %1386 = vmatprep.subr.mxu0 0.0
      %1387 = vmatpush2.msra.mxu0 0.0
      %1388 = vmatprep.subr.mxu0 0.0
      %1389 = vmatpush2.msra.mxu0 0.0
      %1390 = vmatprep.subr.mxu0 0.0
      %1391 = vmatpush2.msra.mxu0 0.0
      %1392 = vmatprep.subr.mxu0 0.0
      %1393 = vmatpush2.msra.mxu0 0.0
      %1394 = vmatprep.subr.mxu0 0.0
      %1395 = vmatpush2.msra.mxu0 0.0
      %1396 = vmatprep.subr.mxu0 0.0
      %1397 = vmatpush2.msra.mxu0 0.0
      %1398 = vmatprep.subr.mxu0 0.0
      %1399 = vmatpush2.msra.mxu0 0.0
      %1400 = vmatprep.mubr.f32.mxu0 0.0
      %1401 = vmatmul.mubr.f32.gmra.mxu0 %v1050
      %v1402 = vpop.f32.mrf.mxu0
      %v1403 = vadd.f32 %v1046, %v1402
      %v1404 = vpop.f32.mrf.mxu0
      %1405 = vdwg.mxu0
      %v1406 = vmax.f32 %v1119, 0.0
      %v1407 = vmax.f32 %v1121, 0.0
      %v1408 = vmax.f32 %v1190, 0.0
      %v1409 = vmax.f32 %v1192, 0.0
      %v1410 = vmax.f32 %v1261, 0.0
      %v1411 = vmax.f32 %v1263, 0.0
      %v1412 = vmax.f32 %v1332, 0.0
      %v1413 = vmax.f32 %v1334, 0.0
      %v1414 = vmax.f32 %v1403, 0.0
      %v1417 = vlaneseq
      %v1418 = vshrl.u32 %v1417, 7
      %v1419 = vsub.s32 0, %v1418
      %v1420 = vrot.slane %v333, %v1419
      %v1421 = vlaneseq
      %v1422 = vshrl.u32 %v1421, 7
      %v1423 = vsub.s32 1, %v1422
      %v1424 = vrot.slane %v333, %v1423
      %v1425 = vlaneseq
      %v1426 = vshrl.u32 %v1425, 7
      %v1427 = vsub.s32 2, %v1426
      %v1428 = vrot.slane %v333, %v1427
      %v1429 = vlaneseq
      %v1430 = vshrl.u32 %v1429, 7
      %v1431 = vsub.s32 3, %v1430
      %v1432 = vrot.slane %v333, %v1431
      %v1433 = vlaneseq
      %v1434 = vshrl.u32 %v1433, 7
      %v1435 = vsub.s32 4, %v1434
      %v1436 = vrot.slane %v333, %v1435
      %v1437 = vlaneseq
      %v1438 = vshrl.u32 %v1437, 7
      %v1439 = vsub.s32 5, %v1438
      %v1440 = vrot.slane %v333, %v1439
      %v1441 = vlaneseq
      %v1442 = vshrl.u32 %v1441, 7
      %v1443 = vsub.s32 6, %v1442
      %v1444 = vrot.slane %v333, %v1443
      %v1445 = vlaneseq
      %v1446 = vshrl.u32 %v1445, 7
      %v1447 = vsub.s32 7, %v1446
      %v1448 = vrot.slane %v333, %v1447
      %v1449 = vlaneseq
      %v1450 = vshrl.u32 %v1449, 7
      %v1451 = vsub.s32 0, %v1450
      %v1452 = vrot.slane %v334, %v1451
      %v1462 = vmul.f32 %v1406, %v1420
      %v1463 = vmul.f32 %v1407, %v1424
      %v1464 = vmul.f32 %v1408, %v1428
      %v1465 = vmul.f32 %v1409, %v1432
      %v1466 = vmul.f32 %v1410, %v1436
      %v1467 = vmul.f32 %v1411, %v1440
      %v1468 = vmul.f32 %v1412, %v1444
      %v1469 = vmul.f32 %v1413, %v1448
      %v1470 = vmul.f32 %v1414, %v1452
      %1480 = vrot.lane.b32.xlu0 %v1462, 72
      %v1481 = vpop.permute.xlu0 %1480
      %1482 = vrot.lane.b32.xlu0 %v1463, 72
      %v1483 = vpop.permute.xlu0 %1482
      %1484 = vrot.lane.b32.xlu0 %v1464, 72
      %v1485 = vpop.permute.xlu0 %1484
      %1486 = vrot.lane.b32.xlu0 %v1465, 72
      %v1487 = vpop.permute.xlu0 %1486
      %1488 = vrot.lane.b32.xlu0 %v1466, 72
      %v1489 = vpop.permute.xlu0 %1488
      %1490 = vrot.lane.b32.xlu0 %v1467, 72
      %v1491 = vpop.permute.xlu0 %1490
      %1492 = vrot.lane.b32.xlu0 %v1468, 72
      %v1493 = vpop.permute.xlu0 %1492
      %1494 = vrot.lane.b32.xlu0 %v1469, 72
      %v1495 = vpop.permute.xlu0 %1494
      %1496 = vrot.lane.b32.xlu0 %v1470, 72
      %v1497 = vpop.permute.xlu0 %1496
      %vm1498 = vcmask 588800
      %v1499 = vsel %vm1498, %v1481, %v1483
      %v1500 = vsel %vm1498, %v1483, %v1485
      %v1501 = vsel %vm1498, %v1485, %v1487
      %v1502 = vsel %vm1498, %v1487, %v1489
      %v1503 = vsel %vm1498, %v1489, %v1491
      %v1504 = vsel %vm1498, %v1491, %v1493
      %v1505 = vsel %vm1498, %v1493, %v1495
      %v1506 = vsel %vm1498, %v1495, %v1497
      %vm1517 = vcmask 1048128
      %1518 = vst.msk [vmem:[#allocation2] sm:$0xff] %vm1517, %v1481
      %1519 = vst [vmem:[#allocation2 + $0x8] sm:$0xff] %v1499
      %1520 = vst [vmem:[#allocation2 + $0x10] sm:$0xff] %v1500
      %1521 = vst [vmem:[#allocation2 + $0x18] sm:$0xff] %v1501
      %1522 = vst [vmem:[#allocation2 + $0x20] sm:$0xff] %v1502
      %1523 = vst [vmem:[#allocation2 + $0x28] sm:$0xff] %v1503
      %1524 = vst [vmem:[#allocation2 + $0x30] sm:$0xff] %v1504
      %1525 = vst [vmem:[#allocation2 + $0x38] sm:$0xff] %v1505
      %1526 = vst [vmem:[#allocation2 + $0x40] sm:$0xff] %v1506
      %1527 = vst.msk [vmem:[#allocation2 + $0x48] sm:$0xff] %vm1498, %v1497
      %v1528 = vld [vmem:[#allocation2] sm:$0xff]
      %v1529 = vld [vmem:[#allocation2 + $0x8] sm:$0xff]
      %v1530 = vld [vmem:[#allocation2 + $0x10] sm:$0xff]
      %v1531 = vld [vmem:[#allocation2 + $0x18] sm:$0xff]
      %v1532 = vld [vmem:[#allocation2 + $0x20] sm:$0xff]
      %v1533 = vld [vmem:[#allocation2 + $0x28] sm:$0xff]
      %v1534 = vld [vmem:[#allocation2 + $0x30] sm:$0xff]
      %v1535 = vld [vmem:[#allocation2 + $0x38] sm:$0xff]
      %v1536 = vld [vmem:[#allocation2 + $0x40] sm:$0xff]
      %v1537 = vld [vmem:[#allocation2 + $0x48] sm:$0xff]
      %1548 = vrot.lane.b32.xlu0 %v1528, 127
      %v1549 = vpop.permute.xlu0 %1548
      %1550 = vrot.lane.b32.xlu0 %v1529, 127
      %v1551 = vpop.permute.xlu0 %1550
      %1552 = vrot.lane.b32.xlu0 %v1530, 127
      %v1553 = vpop.permute.xlu0 %1552
      %1554 = vrot.lane.b32.xlu0 %v1531, 127
      %v1555 = vpop.permute.xlu0 %1554
      %1556 = vrot.lane.b32.xlu0 %v1532, 127
      %v1557 = vpop.permute.xlu0 %1556
      %1558 = vrot.lane.b32.xlu0 %v1533, 127
      %v1559 = vpop.permute.xlu0 %1558
      %1560 = vrot.lane.b32.xlu0 %v1534, 127
      %v1561 = vpop.permute.xlu0 %1560
      %1562 = vrot.lane.b32.xlu0 %v1535, 127
      %v1563 = vpop.permute.xlu0 %1562
      %1564 = vrot.lane.b32.xlu0 %v1536, 127
      %v1565 = vpop.permute.xlu0 %1564
      %1566 = vrot.lane.b32.xlu0 %v1537, 127
      %v1567 = vpop.permute.xlu0 %1566
      %v1568 = vsel %vm402, %v1549, %v1551
      %v1569 = vsel %vm402, %v1551, %v1553
      %v1570 = vsel %vm402, %v1553, %v1555
      %v1571 = vsel %vm402, %v1555, %v1557
      %v1572 = vsel %vm402, %v1557, %v1559
      %v1573 = vsel %vm402, %v1559, %v1561
      %v1574 = vsel %vm402, %v1561, %v1563
      %v1575 = vsel %vm402, %v1563, %v1565
      %v1576 = vsel %vm402, %v1565, %v1567
      %1577 = vrot.lane.b32.xlu0 %v1528, 126
      %v1578 = vpop.permute.xlu0 %1577
      %1579 = vrot.lane.b32.xlu0 %v1529, 126
      %v1580 = vpop.permute.xlu0 %1579
      %1581 = vrot.lane.b32.xlu0 %v1530, 126
      %v1582 = vpop.permute.xlu0 %1581
      %1583 = vrot.lane.b32.xlu0 %v1531, 126
      %v1584 = vpop.permute.xlu0 %1583
      %1585 = vrot.lane.b32.xlu0 %v1532, 126
      %v1586 = vpop.permute.xlu0 %1585
      %1587 = vrot.lane.b32.xlu0 %v1533, 126
      %v1588 = vpop.permute.xlu0 %1587
      %1589 = vrot.lane.b32.xlu0 %v1534, 126
      %v1590 = vpop.permute.xlu0 %1589
      %1591 = vrot.lane.b32.xlu0 %v1535, 126
      %v1592 = vpop.permute.xlu0 %1591
      %1593 = vrot.lane.b32.xlu0 %v1536, 126
      %v1594 = vpop.permute.xlu0 %1593
      %1595 = vrot.lane.b32.xlu0 %v1537, 126
      %v1596 = vpop.permute.xlu0 %1595
      %v1597 = vsel %vm442, %v1578, %v1580
      %v1598 = vsel %vm442, %v1580, %v1582
      %v1599 = vsel %vm442, %v1582, %v1584
      %v1600 = vsel %vm442, %v1584, %v1586
      %v1601 = vsel %vm442, %v1586, %v1588
      %v1602 = vsel %vm442, %v1588, %v1590
      %v1603 = vsel %vm442, %v1590, %v1592
      %v1604 = vsel %vm442, %v1592, %v1594
      %v1605 = vsel %vm442, %v1594, %v1596
      %1606 = vrot.lane.b32.xlu0 %v1528, 92
      %v1607 = vpop.permute.xlu0 %1606
      %1608 = vrot.lane.b32.xlu0 %v1529, 92
      %v1609 = vpop.permute.xlu0 %1608
      %1610 = vrot.lane.b32.xlu0 %v1530, 92
      %v1611 = vpop.permute.xlu0 %1610
      %1612 = vrot.lane.b32.xlu0 %v1531, 92
      %v1613 = vpop.permute.xlu0 %1612
      %1614 = vrot.lane.b32.xlu0 %v1532, 92
      %v1615 = vpop.permute.xlu0 %1614
      %1616 = vrot.lane.b32.xlu0 %v1533, 92
      %v1617 = vpop.permute.xlu0 %1616
      %1618 = vrot.lane.b32.xlu0 %v1534, 92
      %v1619 = vpop.permute.xlu0 %1618
      %1620 = vrot.lane.b32.xlu0 %v1535, 92
      %v1621 = vpop.permute.xlu0 %1620
      %1622 = vrot.lane.b32.xlu0 %v1536, 92
      %v1623 = vpop.permute.xlu0 %1622
      %1624 = vrot.lane.b32.xlu0 %v1537, 92
      %v1625 = vpop.permute.xlu0 %1624
      %v1626 = vsel %vm520, %v1607, %v1609
      %v1627 = vsel %vm520, %v1609, %v1611
      %v1628 = vsel %vm520, %v1611, %v1613
      %v1629 = vsel %vm520, %v1613, %v1615
      %v1630 = vsel %vm520, %v1615, %v1617
      %v1631 = vsel %vm520, %v1617, %v1619
      %v1632 = vsel %vm520, %v1619, %v1621
      %v1633 = vsel %vm520, %v1621, %v1623
      %v1634 = vsel %vm520, %v1623, %v1625
      %1635 = vrot.lane.b32.xlu0 %v1528, 91
      %v1636 = vpop.permute.xlu0 %1635
      %1637 = vrot.lane.b32.xlu0 %v1529, 91
      %v1638 = vpop.permute.xlu0 %1637
      %1639 = vrot.lane.b32.xlu0 %v1530, 91
      %v1640 = vpop.permute.xlu0 %1639
      %1641 = vrot.lane.b32.xlu0 %v1531, 91
      %v1642 = vpop.permute.xlu0 %1641
      %1643 = vrot.lane.b32.xlu0 %v1532, 91
      %v1644 = vpop.permute.xlu0 %1643
      %1645 = vrot.lane.b32.xlu0 %v1533, 91
      %v1646 = vpop.permute.xlu0 %1645
      %1647 = vrot.lane.b32.xlu0 %v1534, 91
      %v1648 = vpop.permute.xlu0 %1647
      %1649 = vrot.lane.b32.xlu0 %v1535, 91
      %v1650 = vpop.permute.xlu0 %1649
      %1651 = vrot.lane.b32.xlu0 %v1536, 91
      %v1652 = vpop.permute.xlu0 %1651
      %1653 = vrot.lane.b32.xlu0 %v1537, 91
      %v1654 = vpop.permute.xlu0 %1653
      %v1655 = vsel %vm559, %v1636, %v1638
      %v1656 = vsel %vm559, %v1638, %v1640
      %v1657 = vsel %vm559, %v1640, %v1642
      %v1658 = vsel %vm559, %v1642, %v1644
      %v1659 = vsel %vm559, %v1644, %v1646
      %v1660 = vsel %vm559, %v1646, %v1648
      %v1661 = vsel %vm559, %v1648, %v1650
      %v1662 = vsel %vm559, %v1650, %v1652
      %v1663 = vsel %vm559, %v1652, %v1654
      %1664 = vrot.lane.b32.xlu0 %v1528, 90
      %v1665 = vpop.permute.xlu0 %1664
      %1666 = vrot.lane.b32.xlu0 %v1529, 90
      %v1667 = vpop.permute.xlu0 %1666
      %1668 = vrot.lane.b32.xlu0 %v1530, 90
      %v1669 = vpop.permute.xlu0 %1668
      %1670 = vrot.lane.b32.xlu0 %v1531, 90
      %v1671 = vpop.permute.xlu0 %1670
      %1672 = vrot.lane.b32.xlu0 %v1532, 90
      %v1673 = vpop.permute.xlu0 %1672
      %1674 = vrot.lane.b32.xlu0 %v1533, 90
      %v1675 = vpop.permute.xlu0 %1674
      %1676 = vrot.lane.b32.xlu0 %v1534, 90
      %v1677 = vpop.permute.xlu0 %1676
      %1678 = vrot.lane.b32.xlu0 %v1535, 90
      %v1679 = vpop.permute.xlu0 %1678
      %1680 = vrot.lane.b32.xlu0 %v1536, 90
      %v1681 = vpop.permute.xlu0 %1680
      %1682 = vrot.lane.b32.xlu0 %v1537, 90
      %v1683 = vpop.permute.xlu0 %1682
      %v1684 = vsel %vm598, %v1665, %v1667
      %v1685 = vsel %vm598, %v1667, %v1669
      %v1686 = vsel %vm598, %v1669, %v1671
      %v1687 = vsel %vm598, %v1671, %v1673
      %v1688 = vsel %vm598, %v1673, %v1675
      %v1689 = vsel %vm598, %v1675, %v1677
      %v1690 = vsel %vm598, %v1677, %v1679
      %v1691 = vsel %vm598, %v1679, %v1681
      %v1692 = vsel %vm598, %v1681, %v1683
      %1693 = vrot.lane.b32.xlu0 %v1528, 56
      %v1694 = vpop.permute.xlu0 %1693
      %1695 = vrot.lane.b32.xlu0 %v1529, 56
      %v1696 = vpop.permute.xlu0 %1695
      %1697 = vrot.lane.b32.xlu0 %v1530, 56
      %v1698 = vpop.permute.xlu0 %1697
      %1699 = vrot.lane.b32.xlu0 %v1531, 56
      %v1700 = vpop.permute.xlu0 %1699
      %1701 = vrot.lane.b32.xlu0 %v1532, 56
      %v1702 = vpop.permute.xlu0 %1701
      %1703 = vrot.lane.b32.xlu0 %v1533, 56
      %v1704 = vpop.permute.xlu0 %1703
      %1705 = vrot.lane.b32.xlu0 %v1534, 56
      %v1706 = vpop.permute.xlu0 %1705
      %1707 = vrot.lane.b32.xlu0 %v1535, 56
      %v1708 = vpop.permute.xlu0 %1707
      %1709 = vrot.lane.b32.xlu0 %v1536, 56
      %v1710 = vpop.permute.xlu0 %1709
      %1711 = vrot.lane.b32.xlu0 %v1537, 56
      %v1712 = vpop.permute.xlu0 %1711
      %v1713 = vsel %vm676, %v1694, %v1696
      %v1714 = vsel %vm676, %v1696, %v1698
      %v1715 = vsel %vm676, %v1698, %v1700
      %v1716 = vsel %vm676, %v1700, %v1702
      %v1717 = vsel %vm676, %v1702, %v1704
      %v1718 = vsel %vm676, %v1704, %v1706
      %v1719 = vsel %vm676, %v1706, %v1708
      %v1720 = vsel %vm676, %v1708, %v1710
      %v1721 = vsel %vm676, %v1710, %v1712
      %1722 = vrot.lane.b32.xlu0 %v1528, 55
      %v1723 = vpop.permute.xlu0 %1722
      %1724 = vrot.lane.b32.xlu0 %v1529, 55
      %v1725 = vpop.permute.xlu0 %1724
      %1726 = vrot.lane.b32.xlu0 %v1530, 55
      %v1727 = vpop.permute.xlu0 %1726
      %1728 = vrot.lane.b32.xlu0 %v1531, 55
      %v1729 = vpop.permute.xlu0 %1728
      %1730 = vrot.lane.b32.xlu0 %v1532, 55
      %v1731 = vpop.permute.xlu0 %1730
      %1732 = vrot.lane.b32.xlu0 %v1533, 55
      %v1733 = vpop.permute.xlu0 %1732
      %1734 = vrot.lane.b32.xlu0 %v1534, 55
      %v1735 = vpop.permute.xlu0 %1734
      %1736 = vrot.lane.b32.xlu0 %v1535, 55
      %v1737 = vpop.permute.xlu0 %1736
      %1738 = vrot.lane.b32.xlu0 %v1536, 55
      %v1739 = vpop.permute.xlu0 %1738
      %1740 = vrot.lane.b32.xlu0 %v1537, 55
      %v1741 = vpop.permute.xlu0 %1740
      %v1742 = vsel %vm715, %v1723, %v1725
      %v1743 = vsel %vm715, %v1725, %v1727
      %v1744 = vsel %vm715, %v1727, %v1729
      %v1745 = vsel %vm715, %v1729, %v1731
      %v1746 = vsel %vm715, %v1731, %v1733
      %v1747 = vsel %vm715, %v1733, %v1735
      %v1748 = vsel %vm715, %v1735, %v1737
      %v1749 = vsel %vm715, %v1737, %v1739
      %v1750 = vsel %vm715, %v1739, %v1741
      %1751 = vrot.lane.b32.xlu0 %v1528, 54
      %v1752 = vpop.permute.xlu0 %1751
      %1753 = vrot.lane.b32.xlu0 %v1529, 54
      %v1754 = vpop.permute.xlu0 %1753
      %1755 = vrot.lane.b32.xlu0 %v1530, 54
      %v1756 = vpop.permute.xlu0 %1755
      %1757 = vrot.lane.b32.xlu0 %v1531, 54
      %v1758 = vpop.permute.xlu0 %1757
      %1759 = vrot.lane.b32.xlu0 %v1532, 54
      %v1760 = vpop.permute.xlu0 %1759
      %1761 = vrot.lane.b32.xlu0 %v1533, 54
      %v1762 = vpop.permute.xlu0 %1761
      %1763 = vrot.lane.b32.xlu0 %v1534, 54
      %v1764 = vpop.permute.xlu0 %1763
      %1765 = vrot.lane.b32.xlu0 %v1535, 54
      %v1766 = vpop.permute.xlu0 %1765
      %1767 = vrot.lane.b32.xlu0 %v1536, 54
      %v1768 = vpop.permute.xlu0 %1767
      %1769 = vrot.lane.b32.xlu0 %v1537, 54
      %v1770 = vpop.permute.xlu0 %1769
      %v1771 = vsel %vm754, %v1752, %v1754
      %v1772 = vsel %vm754, %v1754, %v1756
      %v1773 = vsel %vm754, %v1756, %v1758
      %v1774 = vsel %vm754, %v1758, %v1760
      %v1775 = vsel %vm754, %v1760, %v1762
      %v1776 = vsel %vm754, %v1762, %v1764
      %v1777 = vsel %vm754, %v1764, %v1766
      %v1778 = vsel %vm754, %v1766, %v1768
      %v1779 = vsel %vm754, %v1768, %v1770
      %v1780 = vld [vmem:[%s3] sm:$0xff]
      %v1781 = vld [vmem:[%s4] sm:$0xff]
      %1783 = vset.pattern.permute.xlu0 0
      %1784 = vperm.xlu0 %1783, %v1781
      %v1785 = vpop.permute.xlu0 %1784
      %1787 = vrot.lane.b32.xlu0 %v1528, 93
      %v1788 = vpop.permute.xlu0 %1787
      %1789 = vrot.lane.b32.xlu0 %v1529, 93
      %v1790 = vpop.permute.xlu0 %1789
      %1791 = vrot.lane.b32.xlu0 %v1530, 93
      %v1792 = vpop.permute.xlu0 %1791
      %1793 = vrot.lane.b32.xlu0 %v1531, 93
      %v1794 = vpop.permute.xlu0 %1793
      %1795 = vrot.lane.b32.xlu0 %v1532, 93
      %v1796 = vpop.permute.xlu0 %1795
      %1797 = vrot.lane.b32.xlu0 %v1533, 93
      %v1798 = vpop.permute.xlu0 %1797
      %1799 = vrot.lane.b32.xlu0 %v1534, 93
      %v1800 = vpop.permute.xlu0 %1799
      %1801 = vrot.lane.b32.xlu0 %v1535, 93
      %v1802 = vpop.permute.xlu0 %1801
      %1803 = vrot.lane.b32.xlu0 %v1536, 93
      %v1804 = vpop.permute.xlu0 %1803
      %1805 = vrot.lane.b32.xlu0 %v1537, 93
      %v1806 = vpop.permute.xlu0 %1805
      %1807 = vrot.lane.b32.xlu0 %v1568, 93
      %v1808 = vpop.permute.xlu0 %1807
      %1809 = vrot.lane.b32.xlu0 %v1569, 93
      %v1810 = vpop.permute.xlu0 %1809
      %1811 = vrot.lane.b32.xlu0 %v1570, 93
      %v1812 = vpop.permute.xlu0 %1811
      %1813 = vrot.lane.b32.xlu0 %v1571, 93
      %v1814 = vpop.permute.xlu0 %1813
      %1815 = vrot.lane.b32.xlu0 %v1572, 93
      %v1816 = vpop.permute.xlu0 %1815
      %1817 = vrot.lane.b32.xlu0 %v1573, 93
      %v1818 = vpop.permute.xlu0 %1817
      %1819 = vrot.lane.b32.xlu0 %v1574, 93
      %v1820 = vpop.permute.xlu0 %1819
      %1821 = vrot.lane.b32.xlu0 %v1575, 93
      %v1822 = vpop.permute.xlu0 %1821
      %1823 = vrot.lane.b32.xlu0 %v1576, 93
      %v1824 = vpop.permute.xlu0 %1823
      %1825 = vrot.lane.b32.xlu0 %v1567, 93
      %v1826 = vpop.permute.xlu0 %1825
      %1827 = vrot.lane.b32.xlu0 %v1597, 93
      %v1828 = vpop.permute.xlu0 %1827
      %1829 = vrot.lane.b32.xlu0 %v1598, 93
      %v1830 = vpop.permute.xlu0 %1829
      %1831 = vrot.lane.b32.xlu0 %v1599, 93
      %v1832 = vpop.permute.xlu0 %1831
      %1833 = vrot.lane.b32.xlu0 %v1600, 93
      %v1834 = vpop.permute.xlu0 %1833
      %1835 = vrot.lane.b32.xlu0 %v1601, 93
      %v1836 = vpop.permute.xlu0 %1835
      %1837 = vrot.lane.b32.xlu0 %v1602, 93
      %v1838 = vpop.permute.xlu0 %1837
      %1839 = vrot.lane.b32.xlu0 %v1603, 93
      %v1840 = vpop.permute.xlu0 %1839
      %1841 = vrot.lane.b32.xlu0 %v1604, 93
      %v1842 = vpop.permute.xlu0 %1841
      %1843 = vrot.lane.b32.xlu0 %v1605, 93
      %v1844 = vpop.permute.xlu0 %1843
      %1845 = vrot.lane.b32.xlu0 %v1596, 93
      %v1846 = vpop.permute.xlu0 %1845
      %1847 = vrot.lane.b32.xlu0 %v1626, 93
      %v1848 = vpop.permute.xlu0 %1847
      %1849 = vrot.lane.b32.xlu0 %v1627, 93
      %v1850 = vpop.permute.xlu0 %1849
      %1851 = vrot.lane.b32.xlu0 %v1628, 93
      %v1852 = vpop.permute.xlu0 %1851
      %1853 = vrot.lane.b32.xlu0 %v1629, 93
      %v1854 = vpop.permute.xlu0 %1853
      %1855 = vrot.lane.b32.xlu0 %v1630, 93
      %v1856 = vpop.permute.xlu0 %1855
      %1857 = vrot.lane.b32.xlu0 %v1631, 93
      %v1858 = vpop.permute.xlu0 %1857
      %1859 = vrot.lane.b32.xlu0 %v1632, 93
      %v1860 = vpop.permute.xlu0 %1859
      %1861 = vrot.lane.b32.xlu0 %v1633, 93
      %v1862 = vpop.permute.xlu0 %1861
      %1863 = vrot.lane.b32.xlu0 %v1634, 93
      %v1864 = vpop.permute.xlu0 %1863
      %1865 = vrot.lane.b32.xlu0 %v1625, 93
      %v1866 = vpop.permute.xlu0 %1865
      %1867 = vrot.lane.b32.xlu0 %v1655, 93
      %v1868 = vpop.permute.xlu0 %1867
      %1869 = vrot.lane.b32.xlu0 %v1656, 93
      %v1870 = vpop.permute.xlu0 %1869
      %1871 = vrot.lane.b32.xlu0 %v1657, 93
      %v1872 = vpop.permute.xlu0 %1871
      %1873 = vrot.lane.b32.xlu0 %v1658, 93
      %v1874 = vpop.permute.xlu0 %1873
      %1875 = vrot.lane.b32.xlu0 %v1659, 93
      %v1876 = vpop.permute.xlu0 %1875
      %1877 = vrot.lane.b32.xlu0 %v1660, 93
      %v1878 = vpop.permute.xlu0 %1877
      %1879 = vrot.lane.b32.xlu0 %v1661, 93
      %v1880 = vpop.permute.xlu0 %1879
      %1881 = vrot.lane.b32.xlu0 %v1662, 93
      %v1882 = vpop.permute.xlu0 %1881
      %1883 = vrot.lane.b32.xlu0 %v1663, 93
      %v1884 = vpop.permute.xlu0 %1883
      %1885 = vrot.lane.b32.xlu0 %v1654, 93
      %v1886 = vpop.permute.xlu0 %1885
      %1887 = vrot.lane.b32.xlu0 %v1684, 93
      %v1888 = vpop.permute.xlu0 %1887
      %1889 = vrot.lane.b32.xlu0 %v1685, 93
      %v1890 = vpop.permute.xlu0 %1889
      %1891 = vrot.lane.b32.xlu0 %v1686, 93
      %v1892 = vpop.permute.xlu0 %1891
      %1893 = vrot.lane.b32.xlu0 %v1687, 93
      %v1894 = vpop.permute.xlu0 %1893
      %1895 = vrot.lane.b32.xlu0 %v1688, 93
      %v1896 = vpop.permute.xlu0 %1895
      %1897 = vrot.lane.b32.xlu0 %v1689, 93
      %v1898 = vpop.permute.xlu0 %1897
      %1899 = vrot.lane.b32.xlu0 %v1690, 93
      %v1900 = vpop.permute.xlu0 %1899
      %1901 = vrot.lane.b32.xlu0 %v1691, 93
      %v1902 = vpop.permute.xlu0 %1901
      %1903 = vrot.lane.b32.xlu0 %v1692, 93
      %v1904 = vpop.permute.xlu0 %1903
      %1905 = vrot.lane.b32.xlu0 %v1683, 93
      %v1906 = vpop.permute.xlu0 %1905
      %1907 = vrot.lane.b32.xlu0 %v1713, 93
      %v1908 = vpop.permute.xlu0 %1907
      %1909 = vrot.lane.b32.xlu0 %v1714, 93
      %v1910 = vpop.permute.xlu0 %1909
      %1911 = vrot.lane.b32.xlu0 %v1715, 93
      %v1912 = vpop.permute.xlu0 %1911
      %1913 = vrot.lane.b32.xlu0 %v1716, 93
      %v1914 = vpop.permute.xlu0 %1913
      %1915 = vrot.lane.b32.xlu0 %v1717, 93
      %v1916 = vpop.permute.xlu0 %1915
      %1917 = vrot.lane.b32.xlu0 %v1718, 93
      %v1918 = vpop.permute.xlu0 %1917
      %1919 = vrot.lane.b32.xlu0 %v1719, 93
      %v1920 = vpop.permute.xlu0 %1919
      %1921 = vrot.lane.b32.xlu0 %v1720, 93
      %v1922 = vpop.permute.xlu0 %1921
      %1923 = vrot.lane.b32.xlu0 %v1721, 93
      %v1924 = vpop.permute.xlu0 %1923
      %1925 = vrot.lane.b32.xlu0 %v1712, 93
      %v1926 = vpop.permute.xlu0 %1925
      %1927 = vrot.lane.b32.xlu0 %v1742, 93
      %v1928 = vpop.permute.xlu0 %1927
      %1929 = vrot.lane.b32.xlu0 %v1743, 93
      %v1930 = vpop.permute.xlu0 %1929
      %1931 = vrot.lane.b32.xlu0 %v1744, 93
      %v1932 = vpop.permute.xlu0 %1931
      %1933 = vrot.lane.b32.xlu0 %v1745, 93
      %v1934 = vpop.permute.xlu0 %1933
      %1935 = vrot.lane.b32.xlu0 %v1746, 93
      %v1936 = vpop.permute.xlu0 %1935
      %1937 = vrot.lane.b32.xlu0 %v1747, 93
      %v1938 = vpop.permute.xlu0 %1937
      %1939 = vrot.lane.b32.xlu0 %v1748, 93
      %v1940 = vpop.permute.xlu0 %1939
      %1941 = vrot.lane.b32.xlu0 %v1749, 93
      %v1942 = vpop.permute.xlu0 %1941
      %1943 = vrot.lane.b32.xlu0 %v1750, 93
      %v1944 = vpop.permute.xlu0 %1943
      %1945 = vrot.lane.b32.xlu0 %v1741, 93
      %v1946 = vpop.permute.xlu0 %1945
      %1947 = vrot.lane.b32.xlu0 %v1771, 93
      %v1948 = vpop.permute.xlu0 %1947
      %1949 = vrot.lane.b32.xlu0 %v1772, 93
      %v1950 = vpop.permute.xlu0 %1949
      %1951 = vrot.lane.b32.xlu0 %v1773, 93
      %v1952 = vpop.permute.xlu0 %1951
      %1953 = vrot.lane.b32.xlu0 %v1774, 93
      %v1954 = vpop.permute.xlu0 %1953
      %1955 = vrot.lane.b32.xlu0 %v1775, 93
      %v1956 = vpop.permute.xlu0 %1955
      %1957 = vrot.lane.b32.xlu0 %v1776, 93
      %v1958 = vpop.permute.xlu0 %1957
      %1959 = vrot.lane.b32.xlu0 %v1777, 93
      %v1960 = vpop.permute.xlu0 %1959
      %1961 = vrot.lane.b32.xlu0 %v1778, 93
      %v1962 = vpop.permute.xlu0 %1961
      %1963 = vrot.lane.b32.xlu0 %v1779, 93
      %v1964 = vpop.permute.xlu0 %1963
      %1965 = vrot.lane.b32.xlu0 %v1770, 93
      %v1966 = vpop.permute.xlu0 %1965
      %vm1967 = vcmask 760832
      %v1968 = vsel %vm1967, %v1788, %v1790
      %v1969 = vsel %vm1967, %v1790, %v1792
      %v1970 = vsel %vm1967, %v1792, %v1794
      %v1971 = vsel %vm1967, %v1794, %v1796
      %v1972 = vsel %vm1967, %v1796, %v1798
      %v1973 = vsel %vm1967, %v1798, %v1800
      %v1974 = vsel %vm1967, %v1800, %v1802
      %v1975 = vsel %vm1967, %v1802, %v1804
      %v1976 = vsel %vm1967, %v1804, %v1806
      %v1977 = vsel %vm1967, %v1808, %v1810
      %v1978 = vsel %vm1967, %v1810, %v1812
      %v1979 = vsel %vm1967, %v1812, %v1814
      %v1980 = vsel %vm1967, %v1814, %v1816
      %v1981 = vsel %vm1967, %v1816, %v1818
      %v1982 = vsel %vm1967, %v1818, %v1820
      %v1983 = vsel %vm1967, %v1820, %v1822
      %v1984 = vsel %vm1967, %v1822, %v1824
      %v1985 = vsel %vm1967, %v1824, %v1826
      %v1986 = vsel %vm1967, %v1828, %v1830
      %v1987 = vsel %vm1967, %v1830, %v1832
      %v1988 = vsel %vm1967, %v1832, %v1834
      %v1989 = vsel %vm1967, %v1834, %v1836
      %v1990 = vsel %vm1967, %v1836, %v1838
      %v1991 = vsel %vm1967, %v1838, %v1840
      %v1992 = vsel %vm1967, %v1840, %v1842
      %v1993 = vsel %vm1967, %v1842, %v1844
      %v1994 = vsel %vm1967, %v1844, %v1846
      %v1995 = vsel %vm1967, %v1848, %v1850
      %v1996 = vsel %vm1967, %v1850, %v1852
      %v1997 = vsel %vm1967, %v1852, %v1854
      %v1998 = vsel %vm1967, %v1854, %v1856
      %v1999 = vsel %vm1967, %v1856, %v1858
      %v2000 = vsel %vm1967, %v1858, %v1860
      %v2001 = vsel %vm1967, %v1860, %v1862
      %v2002 = vsel %vm1967, %v1862, %v1864
      %v2003 = vsel %vm1967, %v1864, %v1866
      %v2004 = vsel %vm1967, %v1868, %v1870
      %v2005 = vsel %vm1967, %v1870, %v1872
      %v2006 = vsel %vm1967, %v1872, %v1874
      %v2007 = vsel %vm1967, %v1874, %v1876
      %v2008 = vsel %vm1967, %v1876, %v1878
      %v2009 = vsel %vm1967, %v1878, %v1880
      %v2010 = vsel %vm1967, %v1880, %v1882
      %v2011 = vsel %vm1967, %v1882, %v1884
      %v2012 = vsel %vm1967, %v1884, %v1886
      %v2013 = vsel %vm1967, %v1888, %v1890
      %v2014 = vsel %vm1967, %v1890, %v1892
      %v2015 = vsel %vm1967, %v1892, %v1894
      %v2016 = vsel %vm1967, %v1894, %v1896
      %v2017 = vsel %vm1967, %v1896, %v1898
      %v2018 = vsel %vm1967, %v1898, %v1900
      %v2019 = vsel %vm1967, %v1900, %v1902
      %v2020 = vsel %vm1967, %v1902, %v1904
      %v2021 = vsel %vm1967, %v1904, %v1906
      %v2022 = vsel %vm1967, %v1908, %v1910
      %v2023 = vsel %vm1967, %v1910, %v1912
      %v2024 = vsel %vm1967, %v1912, %v1914
      %v2025 = vsel %vm1967, %v1914, %v1916
      %v2026 = vsel %vm1967, %v1916, %v1918
      %v2027 = vsel %vm1967, %v1918, %v1920
      %v2028 = vsel %vm1967, %v1920, %v1922
      %v2029 = vsel %vm1967, %v1922, %v1924
      %v2030 = vsel %vm1967, %v1924, %v1926
      %v2031 = vsel %vm1967, %v1928, %v1930
      %v2032 = vsel %vm1967, %v1930, %v1932
      %v2033 = vsel %vm1967, %v1932, %v1934
      %v2034 = vsel %vm1967, %v1934, %v1936
      %v2035 = vsel %vm1967, %v1936, %v1938
      %v2036 = vsel %vm1967, %v1938, %v1940
      %v2037 = vsel %vm1967, %v1940, %v1942
      %v2038 = vsel %vm1967, %v1942, %v1944
      %v2039 = vsel %vm1967, %v1944, %v1946
      %v2040 = vsel %vm1967, %v1948, %v1950
      %v2041 = vsel %vm1967, %v1950, %v1952
      %v2042 = vsel %vm1967, %v1952, %v1954
      %v2043 = vsel %vm1967, %v1954, %v1956
      %v2044 = vsel %vm1967, %v1956, %v1958
      %v2045 = vsel %vm1967, %v1958, %v1960
      %v2046 = vsel %vm1967, %v1960, %v1962
      %v2047 = vsel %vm1967, %v1962, %v1964
      %v2048 = vsel %vm1967, %v1964, %v1966
      %v2131 = vsel %vm1498, %v1780, 0
      %2133 = vmatprep.subr.mxu0 0.0
      %2134 = vmatpush1.msra.mxu0 0.0
      %2135 = vmatprep.subr.mxu0 0.0
      %2136 = vmatpush1.msra.mxu0 0.0
      %2137 = vmatprep.subr.mxu0 0.0
      %2138 = vmatpush1.msra.mxu0 0.0
      %2139 = vmatprep.subr.mxu0 0.0
      %2140 = vmatpush1.msra.mxu0 0.0
      %2141 = vmatprep.subr.mxu0 0.0
      %2142 = vmatpush1.msra.mxu0 0.0
      %2143 = vmatprep.subr.mxu0 0.0
      %2144 = vmatpush1.msra.mxu0 0.0
      %2145 = vmatprep.subr.mxu0 0.0
      %2146 = vmatpush1.msra.mxu0 0.0
      %2147 = vmatprep.subr.mxu0 %v2041
      %2148 = vmatpush1.msra.mxu0 %v2040
      %2149 = vmatprep.subr.mxu0 %v2032
      %2150 = vmatpush1.msra.mxu0 %v2031
      %2151 = vmatprep.subr.mxu0 %v2023
      %2152 = vmatpush1.msra.mxu0 %v2022
      %2153 = vmatprep.subr.mxu0 %v2014
      %2154 = vmatpush1.msra.mxu0 %v2013
      %2155 = vmatprep.subr.mxu0 %v2005
      %2156 = vmatpush1.msra.mxu0 %v2004
      %2157 = vmatprep.subr.mxu0 %v1996
      %2158 = vmatpush1.msra.mxu0 %v1995
      %2159 = vmatprep.subr.mxu0 %v1987
      %2160 = vmatpush1.msra.mxu0 %v1986
      %2161 = vmatprep.subr.mxu0 %v1978
      %2162 = vmatpush1.msra.mxu0 %v1977
      %2163 = vmatprep.subr.mxu0 %v1969
      %2164 = vmatpush1.msra.mxu0 %v1968
      %2165 = vmatprep.subr.mxu0 0.0
      %2166 = vmatpush2.msra.mxu0 0.0
      %2167 = vmatprep.subr.mxu0 0.0
      %2168 = vmatpush2.msra.mxu0 0.0
      %2169 = vmatprep.subr.mxu0 0.0
      %2170 = vmatpush2.msra.mxu0 0.0
      %2171 = vmatprep.subr.mxu0 0.0
      %2172 = vmatpush2.msra.mxu0 0.0
      %2173 = vmatprep.subr.mxu0 0.0
      %2174 = vmatpush2.msra.mxu0 0.0
      %2175 = vmatprep.subr.mxu0 0.0
      %2176 = vmatpush2.msra.mxu0 0.0
      %2177 = vmatprep.subr.mxu0 0.0
      %2178 = vmatpush2.msra.mxu0 0.0
      %2179 = vmatprep.subr.mxu0 0.0
      %2180 = vmatpush2.msra.mxu0 0.0
      %2181 = vmatprep.subr.mxu0 0.0
      %2182 = vmatpush2.msra.mxu0 0.0
      %2183 = vmatprep.subr.mxu0 0.0
      %2184 = vmatpush2.msra.mxu0 0.0
      %2185 = vmatprep.subr.mxu0 0.0
      %2186 = vmatpush2.msra.mxu0 0.0
      %2187 = vmatprep.subr.mxu0 0.0
      %2188 = vmatpush2.msra.mxu0 0.0
      %2189 = vmatprep.subr.mxu0 0.0
      %2190 = vmatpush2.msra.mxu0 0.0
      %2191 = vmatprep.subr.mxu0 0.0
      %2192 = vmatpush2.msra.mxu0 0.0
      %2193 = vmatprep.subr.mxu0 0.0
      %2194 = vmatpush2.msra.mxu0 0.0
      %2195 = vmatprep.subr.mxu0 0.0
      %2196 = vmatpush2.msra.mxu0 0.0
      %2197 = vmatprep.mubr.f32.mxu0 0.0
      %2198 = vmatmul.mubr.f32.gmra.mxu0 %v2131
      %v2199 = vpop.f32.mrf.mxu0
      %v2200 = vadd.f32 %v1785, %v2199
      %v2201 = vpop.f32.mrf.mxu0
      %v2202 = vadd.f32 %v1785, %v2201
      %2203 = vdwg.mxu0
      %2204 = vmatprep.subr.mxu0 0.0
      %2205 = vmatpush1.msra.mxu0 0.0
      %2206 = vmatprep.subr.mxu0 0.0
      %2207 = vmatpush1.msra.mxu0 0.0
      %2208 = vmatprep.subr.mxu0 0.0
      %2209 = vmatpush1.msra.mxu0 0.0
      %2210 = vmatprep.subr.mxu0 0.0
      %2211 = vmatpush1.msra.mxu0 0.0
      %2212 = vmatprep.subr.mxu0 0.0
      %2213 = vmatpush1.msra.mxu0 0.0
      %2214 = vmatprep.subr.mxu0 0.0
      %2215 = vmatpush1.msra.mxu0 0.0
      %2216 = vmatprep.subr.mxu0 0.0
      %2217 = vmatpush1.msra.mxu0 0.0
      %2218 = vmatprep.subr.mxu0 %v2043
      %2219 = vmatpush1.msra.mxu0 %v2042
      %2220 = vmatprep.subr.mxu0 %v2034
      %2221 = vmatpush1.msra.mxu0 %v2033
      %2222 = vmatprep.subr.mxu0 %v2025
      %2223 = vmatpush1.msra.mxu0 %v2024
      %2224 = vmatprep.subr.mxu0 %v2016
      %2225 = vmatpush1.msra.mxu0 %v2015
      %2226 = vmatprep.subr.mxu0 %v2007
      %2227 = vmatpush1.msra.mxu0 %v2006
      %2228 = vmatprep.subr.mxu0 %v1998
      %2229 = vmatpush1.msra.mxu0 %v1997
      %2230 = vmatprep.subr.mxu0 %v1989
      %2231 = vmatpush1.msra.mxu0 %v1988
      %2232 = vmatprep.subr.mxu0 %v1980
      %2233 = vmatpush1.msra.mxu0 %v1979
      %2234 = vmatprep.subr.mxu0 %v1971
      %2235 = vmatpush1.msra.mxu0 %v1970
      %2236 = vmatprep.subr.mxu0 0.0
      %2237 = vmatpush2.msra.mxu0 0.0
      %2238 = vmatprep.subr.mxu0 0.0
      %2239 = vmatpush2.msra.mxu0 0.0
      %2240 = vmatprep.subr.mxu0 0.0
      %2241 = vmatpush2.msra.mxu0 0.0
      %2242 = vmatprep.subr.mxu0 0.0
      %2243 = vmatpush2.msra.mxu0 0.0
      %2244 = vmatprep.subr.mxu0 0.0
      %2245 = vmatpush2.msra.mxu0 0.0
      %2246 = vmatprep.subr.mxu0 0.0
      %2247 = vmatpush2.msra.mxu0 0.0
      %2248 = vmatprep.subr.mxu0 0.0
      %2249 = vmatpush2.msra.mxu0 0.0
      %2250 = vmatprep.subr.mxu0 0.0
      %2251 = vmatpush2.msra.mxu0 0.0
      %2252 = vmatprep.subr.mxu0 0.0
      %2253 = vmatpush2.msra.mxu0 0.0
      %2254 = vmatprep.subr.mxu0 0.0
      %2255 = vmatpush2.msra.mxu0 0.0
      %2256 = vmatprep.subr.mxu0 0.0
      %2257 = vmatpush2.msra.mxu0 0.0
      %2258 = vmatprep.subr.mxu0 0.0
      %2259 = vmatpush2.msra.mxu0 0.0
      %2260 = vmatprep.subr.mxu0 0.0
      %2261 = vmatpush2.msra.mxu0 0.0
      %2262 = vmatprep.subr.mxu0 0.0
      %2263 = vmatpush2.msra.mxu0 0.0
      %2264 = vmatprep.subr.mxu0 0.0
      %2265 = vmatpush2.msra.mxu0 0.0
      %2266 = vmatprep.subr.mxu0 0.0
      %2267 = vmatpush2.msra.mxu0 0.0
      %2268 = vmatprep.mubr.f32.mxu0 0.0
      %2269 = vmatmul.mubr.f32.gmra.mxu0 %v2131
      %v2270 = vpop.f32.mrf.mxu0
      %v2271 = vadd.f32 %v1785, %v2270
      %v2272 = vpop.f32.mrf.mxu0
      %v2273 = vadd.f32 %v1785, %v2272
      %2274 = vdwg.mxu0
      %2275 = vmatprep.subr.mxu0 0.0
      %2276 = vmatpush1.msra.mxu0 0.0
      %2277 = vmatprep.subr.mxu0 0.0
      %2278 = vmatpush1.msra.mxu0 0.0
      %2279 = vmatprep.subr.mxu0 0.0
      %2280 = vmatpush1.msra.mxu0 0.0
      %2281 = vmatprep.subr.mxu0 0.0
      %2282 = vmatpush1.msra.mxu0 0.0
      %2283 = vmatprep.subr.mxu0 0.0
      %2284 = vmatpush1.msra.mxu0 0.0
      %2285 = vmatprep.subr.mxu0 0.0
      %2286 = vmatpush1.msra.mxu0 0.0
      %2287 = vmatprep.subr.mxu0 0.0
      %2288 = vmatpush1.msra.mxu0 0.0
      %2289 = vmatprep.subr.mxu0 %v2045
      %2290 = vmatpush1.msra.mxu0 %v2044
      %2291 = vmatprep.subr.mxu0 %v2036
      %2292 = vmatpush1.msra.mxu0 %v2035
      %2293 = vmatprep.subr.mxu0 %v2027
      %2294 = vmatpush1.msra.mxu0 %v2026
      %2295 = vmatprep.subr.mxu0 %v2018
      %2296 = vmatpush1.msra.mxu0 %v2017
      %2297 = vmatprep.subr.mxu0 %v2009
      %2298 = vmatpush1.msra.mxu0 %v2008
      %2299 = vmatprep.subr.mxu0 %v2000
      %2300 = vmatpush1.msra.mxu0 %v1999
      %2301 = vmatprep.subr.mxu0 %v1991
      %2302 = vmatpush1.msra.mxu0 %v1990
      %2303 = vmatprep.subr.mxu0 %v1982
      %2304 = vmatpush1.msra.mxu0 %v1981
      %2305 = vmatprep.subr.mxu0 %v1973
      %2306 = vmatpush1.msra.mxu0 %v1972
      %2307 = vmatprep.subr.mxu0 0.0
      %2308 = vmatpush2.msra.mxu0 0.0
      %2309 = vmatprep.subr.mxu0 0.0
      %2310 = vmatpush2.msra.mxu0 0.0
      %2311 = vmatprep.subr.mxu0 0.0
      %2312 = vmatpush2.msra.mxu0 0.0
      %2313 = vmatprep.subr.mxu0 0.0
      %2314 = vmatpush2.msra.mxu0 0.0
      %2315 = vmatprep.subr.mxu0 0.0
      %2316 = vmatpush2.msra.mxu0 0.0
      %2317 = vmatprep.subr.mxu0 0.0
      %2318 = vmatpush2.msra.mxu0 0.0
      %2319 = vmatprep.subr.mxu0 0.0
      %2320 = vmatpush2.msra.mxu0 0.0
      %2321 = vmatprep.subr.mxu0 0.0
      %2322 = vmatpush2.msra.mxu0 0.0
      %2323 = vmatprep.subr.mxu0 0.0
      %2324 = vmatpush2.msra.mxu0 0.0
      %2325 = vmatprep.subr.mxu0 0.0
      %2326 = vmatpush2.msra.mxu0 0.0
      %2327 = vmatprep.subr.mxu0 0.0
      %2328 = vmatpush2.msra.mxu0 0.0
      %2329 = vmatprep.subr.mxu0 0.0
      %2330 = vmatpush2.msra.mxu0 0.0
      %2331 = vmatprep.subr.mxu0 0.0
      %2332 = vmatpush2.msra.mxu0 0.0
      %2333 = vmatprep.subr.mxu0 0.0
      %2334 = vmatpush2.msra.mxu0 0.0
      %2335 = vmatprep.subr.mxu0 0.0
      %2336 = vmatpush2.msra.mxu0 0.0
      %2337 = vmatprep.subr.mxu0 0.0
      %2338 = vmatpush2.msra.mxu0 0.0
      %2339 = vmatprep.mubr.f32.mxu0 0.0
      %2340 = vmatmul.mubr.f32.gmra.mxu0 %v2131
      %v2341 = vpop.f32.mrf.mxu0
      %v2342 = vadd.f32 %v1785, %v2341
      %v2343 = vpop.f32.mrf.mxu0
      %v2344 = vadd.f32 %v1785, %v2343
      %2345 = vdwg.mxu0
      %2346 = vmatprep.subr.mxu0 0.0
      %2347 = vmatpush1.msra.mxu0 0.0
      %2348 = vmatprep.subr.mxu0 0.0
      %2349 = vmatpush1.msra.mxu0 0.0
      %2350 = vmatprep.subr.mxu0 0.0
      %2351 = vmatpush1.msra.mxu0 0.0
      %2352 = vmatprep.subr.mxu0 0.0
      %2353 = vmatpush1.msra.mxu0 0.0
      %2354 = vmatprep.subr.mxu0 0.0
      %2355 = vmatpush1.msra.mxu0 0.0
      %2356 = vmatprep.subr.mxu0 0.0
      %2357 = vmatpush1.msra.mxu0 0.0
      %2358 = vmatprep.subr.mxu0 0.0
      %2359 = vmatpush1.msra.mxu0 0.0
      %2360 = vmatprep.subr.mxu0 %v2047
      %2361 = vmatpush1.msra.mxu0 %v2046
      %2362 = vmatprep.subr.mxu0 %v2038
      %2363 = vmatpush1.msra.mxu0 %v2037
      %2364 = vmatprep.subr.mxu0 %v2029
      %2365 = vmatpush1.msra.mxu0 %v2028
      %2366 = vmatprep.subr.mxu0 %v2020
      %2367 = vmatpush1.msra.mxu0 %v2019
      %2368 = vmatprep.subr.mxu0 %v2011
      %2369 = vmatpush1.msra.mxu0 %v2010
      %2370 = vmatprep.subr.mxu0 %v2002
      %2371 = vmatpush1.msra.mxu0 %v2001
      %2372 = vmatprep.subr.mxu0 %v1993
      %2373 = vmatpush1.msra.mxu0 %v1992
      %2374 = vmatprep.subr.mxu0 %v1984
      %2375 = vmatpush1.msra.mxu0 %v1983
      %2376 = vmatprep.subr.mxu0 %v1975
      %2377 = vmatpush1.msra.mxu0 %v1974
      %2378 = vmatprep.subr.mxu0 0.0
      %2379 = vmatpush2.msra.mxu0 0.0
      %2380 = vmatprep.subr.mxu0 0.0
      %2381 = vmatpush2.msra.mxu0 0.0
      %2382 = vmatprep.subr.mxu0 0.0
      %2383 = vmatpush2.msra.mxu0 0.0
      %2384 = vmatprep.subr.mxu0 0.0
      %2385 = vmatpush2.msra.mxu0 0.0
      %2386 = vmatprep.subr.mxu0 0.0
      %2387 = vmatpush2.msra.mxu0 0.0
      %2388 = vmatprep.subr.mxu0 0.0
      %2389 = vmatpush2.msra.mxu0 0.0
      %2390 = vmatprep.subr.mxu0 0.0
      %2391 = vmatpush2.msra.mxu0 0.0
      %2392 = vmatprep.subr.mxu0 0.0
      %2393 = vmatpush2.msra.mxu0 0.0
      %2394 = vmatprep.subr.mxu0 0.0
      %2395 = vmatpush2.msra.mxu0 0.0
      %2396 = vmatprep.subr.mxu0 0.0
      %2397 = vmatpush2.msra.mxu0 0.0
      %2398 = vmatprep.subr.mxu0 0.0
      %2399 = vmatpush2.msra.mxu0 0.0
      %2400 = vmatprep.subr.mxu0 0.0
      %2401 = vmatpush2.msra.mxu0 0.0
      %2402 = vmatprep.subr.mxu0 0.0
      %2403 = vmatpush2.msra.mxu0 0.0
      %2404 = vmatprep.subr.mxu0 0.0
      %2405 = vmatpush2.msra.mxu0 0.0
      %2406 = vmatprep.subr.mxu0 0.0
      %2407 = vmatpush2.msra.mxu0 0.0
      %2408 = vmatprep.subr.mxu0 0.0
      %2409 = vmatpush2.msra.mxu0 0.0
      %2410 = vmatprep.mubr.f32.mxu0 0.0
      %2411 = vmatmul.mubr.f32.gmra.mxu0 %v2131
      %v2412 = vpop.f32.mrf.mxu0
      %v2413 = vadd.f32 %v1785, %v2412
      %v2414 = vpop.f32.mrf.mxu0
      %v2415 = vadd.f32 %v1785, %v2414
      %2416 = vdwg.mxu0
      %2417 = vmatprep.subr.mxu0 0.0
      %2418 = vmatpush1.msra.mxu0 0.0
      %2419 = vmatprep.subr.mxu0 0.0
      %2420 = vmatpush1.msra.mxu0 0.0
      %2421 = vmatprep.subr.mxu0 0.0
      %2422 = vmatpush1.msra.mxu0 0.0
      %2423 = vmatprep.subr.mxu0 0.0
      %2424 = vmatpush1.msra.mxu0 0.0
      %2425 = vmatprep.subr.mxu0 0.0
      %2426 = vmatpush1.msra.mxu0 0.0
      %2427 = vmatprep.subr.mxu0 0.0
      %2428 = vmatpush1.msra.mxu0 0.0
      %2429 = vmatprep.subr.mxu0 0.0
      %2430 = vmatpush1.msra.mxu0 0.0
      %2431 = vmatprep.subr.mxu0 0.0
      %2432 = vmatpush1.msra.mxu0 %v2048
      %2433 = vmatprep.subr.mxu0 0.0
      %2434 = vmatpush1.msra.mxu0 %v2039
      %2435 = vmatprep.subr.mxu0 0.0
      %2436 = vmatpush1.msra.mxu0 %v2030
      %2437 = vmatprep.subr.mxu0 0.0
      %2438 = vmatpush1.msra.mxu0 %v2021
      %2439 = vmatprep.subr.mxu0 0.0
      %2440 = vmatpush1.msra.mxu0 %v2012
      %2441 = vmatprep.subr.mxu0 0.0
      %2442 = vmatpush1.msra.mxu0 %v2003
      %2443 = vmatprep.subr.mxu0 0.0
      %2444 = vmatpush1.msra.mxu0 %v1994
      %2445 = vmatprep.subr.mxu0 0.0
      %2446 = vmatpush1.msra.mxu0 %v1985
      %2447 = vmatprep.subr.mxu0 0.0
      %2448 = vmatpush1.msra.mxu0 %v1976
      %2449 = vmatprep.subr.mxu0 0.0
      %2450 = vmatpush2.msra.mxu0 0.0
      %2451 = vmatprep.subr.mxu0 0.0
      %2452 = vmatpush2.msra.mxu0 0.0
      %2453 = vmatprep.subr.mxu0 0.0
      %2454 = vmatpush2.msra.mxu0 0.0
      %2455 = vmatprep.subr.mxu0 0.0
      %2456 = vmatpush2.msra.mxu0 0.0
      %2457 = vmatprep.subr.mxu0 0.0
      %2458 = vmatpush2.msra.mxu0 0.0
      %2459 = vmatprep.subr.mxu0 0.0
      %2460 = vmatpush2.msra.mxu0 0.0
      %2461 = vmatprep.subr.mxu0 0.0
      %2462 = vmatpush2.msra.mxu0 0.0
      %2463 = vmatprep.subr.mxu0 0.0
      %2464 = vmatpush2.msra.mxu0 0.0
      %2465 = vmatprep.subr.mxu0 0.0
      %2466 = vmatpush2.msra.mxu0 0.0
      %2467 = vmatprep.subr.mxu0 0.0
      %2468 = vmatpush2.msra.mxu0 0.0
      %2469 = vmatprep.subr.mxu0 0.0
      %2470 = vmatpush2.msra.mxu0 0.0
      %2471 = vmatprep.subr.mxu0 0.0
      %2472 = vmatpush2.msra.mxu0 0.0
      %2473 = vmatprep.subr.mxu0 0.0
      %2474 = vmatpush2.msra.mxu0 0.0
      %2475 = vmatprep.subr.mxu0 0.0
      %2476 = vmatpush2.msra.mxu0 0.0
      %2477 = vmatprep.subr.mxu0 0.0
      %2478 = vmatpush2.msra.mxu0 0.0
      %2479 = vmatprep.subr.mxu0 0.0
      %2480 = vmatpush2.msra.mxu0 0.0
      %2481 = vmatprep.mubr.f32.mxu0 0.0
      %2482 = vmatmul.mubr.f32.gmra.mxu0 %v2131
      %v2483 = vpop.f32.mrf.mxu0
      %v2484 = vadd.f32 %v1785, %v2483
      %v2485 = vpop.f32.mrf.mxu0
      %2486 = vdwg.mxu0
      %v2487 = vmax.f32 %v2200, 0.0
      %v2488 = vmax.f32 %v2202, 0.0
      %v2489 = vmax.f32 %v2271, 0.0
      %v2490 = vmax.f32 %v2273, 0.0
      %v2491 = vmax.f32 %v2342, 0.0
      %v2492 = vmax.f32 %v2344, 0.0
      %v2493 = vmax.f32 %v2413, 0.0
      %v2494 = vmax.f32 %v2415, 0.0
      %v2495 = vmax.f32 %v2484, 0.0
      %v2496 = vmul.f32 %v2487, %v1420
      %v2497 = vmul.f32 %v2488, %v1424
      %v2498 = vmul.f32 %v2489, %v1428
      %v2499 = vmul.f32 %v2490, %v1432
      %v2500 = vmul.f32 %v2491, %v1436
      %v2501 = vmul.f32 %v2492, %v1440
      %v2502 = vmul.f32 %v2493, %v1444
      %v2503 = vmul.f32 %v2494, %v1448
      %v2504 = vmul.f32 %v2495, %v1452
      %2514 = vrot.lane.b32.xlu0 %v2496, 72
      %v2515 = vpop.permute.xlu0 %2514
      %2516 = vrot.lane.b32.xlu0 %v2497, 72
      %v2517 = vpop.permute.xlu0 %2516
      %2518 = vrot.lane.b32.xlu0 %v2498, 72
      %v2519 = vpop.permute.xlu0 %2518
      %2520 = vrot.lane.b32.xlu0 %v2499, 72
      %v2521 = vpop.permute.xlu0 %2520
      %2522 = vrot.lane.b32.xlu0 %v2500, 72
      %v2523 = vpop.permute.xlu0 %2522
      %2524 = vrot.lane.b32.xlu0 %v2501, 72
      %v2525 = vpop.permute.xlu0 %2524
      %2526 = vrot.lane.b32.xlu0 %v2502, 72
      %v2527 = vpop.permute.xlu0 %2526
      %2528 = vrot.lane.b32.xlu0 %v2503, 72
      %v2529 = vpop.permute.xlu0 %2528
      %2530 = vrot.lane.b32.xlu0 %v2504, 72
      %v2531 = vpop.permute.xlu0 %2530
      %v2532 = vsel %vm1498, %v2515, %v2517
      %v2533 = vsel %vm1498, %v2517, %v2519
      %v2534 = vsel %vm1498, %v2519, %v2521
      %v2535 = vsel %vm1498, %v2521, %v2523
      %v2536 = vsel %vm1498, %v2523, %v2525
      %v2537 = vsel %vm1498, %v2525, %v2527
      %v2538 = vsel %vm1498, %v2527, %v2529
      %v2539 = vsel %vm1498, %v2529, %v2531
      %2550 = vst.msk [vmem:[#allocation3] sm:$0xff] %vm1517, %v2515
      %2551 = vst [vmem:[#allocation3 + $0x8] sm:$0xff] %v2532
      %2552 = vst [vmem:[#allocation3 + $0x10] sm:$0xff] %v2533
      %2553 = vst [vmem:[#allocation3 + $0x18] sm:$0xff] %v2534
      %2554 = vst [vmem:[#allocation3 + $0x20] sm:$0xff] %v2535
      %2555 = vst [vmem:[#allocation3 + $0x28] sm:$0xff] %v2536
      %2556 = vst [vmem:[#allocation3 + $0x30] sm:$0xff] %v2537
      %2557 = vst [vmem:[#allocation3 + $0x38] sm:$0xff] %v2538
      %2558 = vst [vmem:[#allocation3 + $0x40] sm:$0xff] %v2539
      %2559 = vst.msk [vmem:[#allocation3 + $0x48] sm:$0xff] %vm1498, %v2531
      %v2560 = vld [vmem:[#allocation3] sm:$0xff]
      %v2561 = vld [vmem:[#allocation3 + $0x8] sm:$0xff]
      %v2562 = vld [vmem:[#allocation3 + $0x10] sm:$0xff]
      %v2563 = vld [vmem:[#allocation3 + $0x18] sm:$0xff]
      %v2564 = vld [vmem:[#allocation3 + $0x20] sm:$0xff]
      %v2565 = vld [vmem:[#allocation3 + $0x28] sm:$0xff]
      %v2566 = vld [vmem:[#allocation3 + $0x30] sm:$0xff]
      %v2567 = vld [vmem:[#allocation3 + $0x38] sm:$0xff]
      %v2568 = vld [vmem:[#allocation3 + $0x40] sm:$0xff]
      %v2569 = vld [vmem:[#allocation3 + $0x48] sm:$0xff]
      %2580 = vrot.lane.b32.xlu0 %v2560, 127
      %v2581 = vpop.permute.xlu0 %2580
      %2582 = vrot.lane.b32.xlu0 %v2561, 127
      %v2583 = vpop.permute.xlu0 %2582
      %2584 = vrot.lane.b32.xlu0 %v2562, 127
      %v2585 = vpop.permute.xlu0 %2584
      %2586 = vrot.lane.b32.xlu0 %v2563, 127
      %v2587 = vpop.permute.xlu0 %2586
      %2588 = vrot.lane.b32.xlu0 %v2564, 127
      %v2589 = vpop.permute.xlu0 %2588
      %2590 = vrot.lane.b32.xlu0 %v2565, 127
      %v2591 = vpop.permute.xlu0 %2590
      %2592 = vrot.lane.b32.xlu0 %v2566, 127
      %v2593 = vpop.permute.xlu0 %2592
      %2594 = vrot.lane.b32.xlu0 %v2567, 127
      %v2595 = vpop.permute.xlu0 %2594
      %2596 = vrot.lane.b32.xlu0 %v2568, 127
      %v2597 = vpop.permute.xlu0 %2596
      %2598 = vrot.lane.b32.xlu0 %v2569, 127
      %v2599 = vpop.permute.xlu0 %2598
      %v2600 = vsel %vm402, %v2581, %v2583
      %v2601 = vsel %vm402, %v2583, %v2585
      %v2602 = vsel %vm402, %v2585, %v2587
      %v2603 = vsel %vm402, %v2587, %v2589
      %v2604 = vsel %vm402, %v2589, %v2591
      %v2605 = vsel %vm402, %v2591, %v2593
      %v2606 = vsel %vm402, %v2593, %v2595
      %v2607 = vsel %vm402, %v2595, %v2597
      %v2608 = vsel %vm402, %v2597, %v2599
      %2609 = vrot.lane.b32.xlu0 %v2560, 126
      %v2610 = vpop.permute.xlu0 %2609
      %2611 = vrot.lane.b32.xlu0 %v2561, 126
      %v2612 = vpop.permute.xlu0 %2611
      %2613 = vrot.lane.b32.xlu0 %v2562, 126
      %v2614 = vpop.permute.xlu0 %2613
      %2615 = vrot.lane.b32.xlu0 %v2563, 126
      %v2616 = vpop.permute.xlu0 %2615
      %2617 = vrot.lane.b32.xlu0 %v2564, 126
      %v2618 = vpop.permute.xlu0 %2617
      %2619 = vrot.lane.b32.xlu0 %v2565, 126
      %v2620 = vpop.permute.xlu0 %2619
      %2621 = vrot.lane.b32.xlu0 %v2566, 126
      %v2622 = vpop.permute.xlu0 %2621
      %2623 = vrot.lane.b32.xlu0 %v2567, 126
      %v2624 = vpop.permute.xlu0 %2623
      %2625 = vrot.lane.b32.xlu0 %v2568, 126
      %v2626 = vpop.permute.xlu0 %2625
      %2627 = vrot.lane.b32.xlu0 %v2569, 126
      %v2628 = vpop.permute.xlu0 %2627
      %v2629 = vsel %vm442, %v2610, %v2612
      %v2630 = vsel %vm442, %v2612, %v2614
      %v2631 = vsel %vm442, %v2614, %v2616
      %v2632 = vsel %vm442, %v2616, %v2618
      %v2633 = vsel %vm442, %v2618, %v2620
      %v2634 = vsel %vm442, %v2620, %v2622
      %v2635 = vsel %vm442, %v2622, %v2624
      %v2636 = vsel %vm442, %v2624, %v2626
      %v2637 = vsel %vm442, %v2626, %v2628
      %2638 = vrot.lane.b32.xlu0 %v2560, 92
      %v2639 = vpop.permute.xlu0 %2638
      %2640 = vrot.lane.b32.xlu0 %v2561, 92
      %v2641 = vpop.permute.xlu0 %2640
      %2642 = vrot.lane.b32.xlu0 %v2562, 92
      %v2643 = vpop.permute.xlu0 %2642
      %2644 = vrot.lane.b32.xlu0 %v2563, 92
      %v2645 = vpop.permute.xlu0 %2644
      %2646 = vrot.lane.b32.xlu0 %v2564, 92
      %v2647 = vpop.permute.xlu0 %2646
      %2648 = vrot.lane.b32.xlu0 %v2565, 92
      %v2649 = vpop.permute.xlu0 %2648
      %2650 = vrot.lane.b32.xlu0 %v2566, 92
      %v2651 = vpop.permute.xlu0 %2650
      %2652 = vrot.lane.b32.xlu0 %v2567, 92
      %v2653 = vpop.permute.xlu0 %2652
      %2654 = vrot.lane.b32.xlu0 %v2568, 92
      %v2655 = vpop.permute.xlu0 %2654
      %2656 = vrot.lane.b32.xlu0 %v2569, 92
      %v2657 = vpop.permute.xlu0 %2656
      %v2658 = vsel %vm520, %v2639, %v2641
      %v2659 = vsel %vm520, %v2641, %v2643
      %v2660 = vsel %vm520, %v2643, %v2645
      %v2661 = vsel %vm520, %v2645, %v2647
      %v2662 = vsel %vm520, %v2647, %v2649
      %v2663 = vsel %vm520, %v2649, %v2651
      %v2664 = vsel %vm520, %v2651, %v2653
      %v2665 = vsel %vm520, %v2653, %v2655
      %v2666 = vsel %vm520, %v2655, %v2657
      %2667 = vrot.lane.b32.xlu0 %v2560, 91
      %v2668 = vpop.permute.xlu0 %2667
      %2669 = vrot.lane.b32.xlu0 %v2561, 91
      %v2670 = vpop.permute.xlu0 %2669
      %2671 = vrot.lane.b32.xlu0 %v2562, 91
      %v2672 = vpop.permute.xlu0 %2671
      %2673 = vrot.lane.b32.xlu0 %v2563, 91
      %v2674 = vpop.permute.xlu0 %2673
      %2675 = vrot.lane.b32.xlu0 %v2564, 91
      %v2676 = vpop.permute.xlu0 %2675
      %2677 = vrot.lane.b32.xlu0 %v2565, 91
      %v2678 = vpop.permute.xlu0 %2677
      %2679 = vrot.lane.b32.xlu0 %v2566, 91
      %v2680 = vpop.permute.xlu0 %2679
      %2681 = vrot.lane.b32.xlu0 %v2567, 91
      %v2682 = vpop.permute.xlu0 %2681
      %2683 = vrot.lane.b32.xlu0 %v2568, 91
      %v2684 = vpop.permute.xlu0 %2683
      %2685 = vrot.lane.b32.xlu0 %v2569, 91
      %v2686 = vpop.permute.xlu0 %2685
      %v2687 = vsel %vm559, %v2668, %v2670
      %v2688 = vsel %vm559, %v2670, %v2672
      %v2689 = vsel %vm559, %v2672, %v2674
      %v2690 = vsel %vm559, %v2674, %v2676
      %v2691 = vsel %vm559, %v2676, %v2678
      %v2692 = vsel %vm559, %v2678, %v2680
      %v2693 = vsel %vm559, %v2680, %v2682
      %v2694 = vsel %vm559, %v2682, %v2684
      %v2695 = vsel %vm559, %v2684, %v2686
      %2696 = vrot.lane.b32.xlu0 %v2560, 90
      %v2697 = vpop.permute.xlu0 %2696
      %2698 = vrot.lane.b32.xlu0 %v2561, 90
      %v2699 = vpop.permute.xlu0 %2698
      %2700 = vrot.lane.b32.xlu0 %v2562, 90
      %v2701 = vpop.permute.xlu0 %2700
      %2702 = vrot.lane.b32.xlu0 %v2563, 90
      %v2703 = vpop.permute.xlu0 %2702
      %2704 = vrot.lane.b32.xlu0 %v2564, 90
      %v2705 = vpop.permute.xlu0 %2704
      %2706 = vrot.lane.b32.xlu0 %v2565, 90
      %v2707 = vpop.permute.xlu0 %2706
      %2708 = vrot.lane.b32.xlu0 %v2566, 90
      %v2709 = vpop.permute.xlu0 %2708
      %2710 = vrot.lane.b32.xlu0 %v2567, 90
      %v2711 = vpop.permute.xlu0 %2710
      %2712 = vrot.lane.b32.xlu0 %v2568, 90
      %v2713 = vpop.permute.xlu0 %2712
      %2714 = vrot.lane.b32.xlu0 %v2569, 90
      %v2715 = vpop.permute.xlu0 %2714
      %v2716 = vsel %vm598, %v2697, %v2699
      %v2717 = vsel %vm598, %v2699, %v2701
      %v2718 = vsel %vm598, %v2701, %v2703
      %v2719 = vsel %vm598, %v2703, %v2705
      %v2720 = vsel %vm598, %v2705, %v2707
      %v2721 = vsel %vm598, %v2707, %v2709
      %v2722 = vsel %vm598, %v2709, %v2711
      %v2723 = vsel %vm598, %v2711, %v2713
      %v2724 = vsel %vm598, %v2713, %v2715
      %2725 = vrot.lane.b32.xlu0 %v2560, 56
      %v2726 = vpop.permute.xlu0 %2725
      %2727 = vrot.lane.b32.xlu0 %v2561, 56
      %v2728 = vpop.permute.xlu0 %2727
      %2729 = vrot.lane.b32.xlu0 %v2562, 56
      %v2730 = vpop.permute.xlu0 %2729
      %2731 = vrot.lane.b32.xlu0 %v2563, 56
      %v2732 = vpop.permute.xlu0 %2731
      %2733 = vrot.lane.b32.xlu0 %v2564, 56
      %v2734 = vpop.permute.xlu0 %2733
      %2735 = vrot.lane.b32.xlu0 %v2565, 56
      %v2736 = vpop.permute.xlu0 %2735
      %2737 = vrot.lane.b32.xlu0 %v2566, 56
      %v2738 = vpop.permute.xlu0 %2737
      %2739 = vrot.lane.b32.xlu0 %v2567, 56
      %v2740 = vpop.permute.xlu0 %2739
      %2741 = vrot.lane.b32.xlu0 %v2568, 56
      %v2742 = vpop.permute.xlu0 %2741
      %2743 = vrot.lane.b32.xlu0 %v2569, 56
      %v2744 = vpop.permute.xlu0 %2743
      %v2745 = vsel %vm676, %v2726, %v2728
      %v2746 = vsel %vm676, %v2728, %v2730
      %v2747 = vsel %vm676, %v2730, %v2732
      %v2748 = vsel %vm676, %v2732, %v2734
      %v2749 = vsel %vm676, %v2734, %v2736
      %v2750 = vsel %vm676, %v2736, %v2738
      %v2751 = vsel %vm676, %v2738, %v2740
      %v2752 = vsel %vm676, %v2740, %v2742
      %v2753 = vsel %vm676, %v2742, %v2744
      %2754 = vrot.lane.b32.xlu0 %v2560, 55
      %v2755 = vpop.permute.xlu0 %2754
      %2756 = vrot.lane.b32.xlu0 %v2561, 55
      %v2757 = vpop.permute.xlu0 %2756
      %2758 = vrot.lane.b32.xlu0 %v2562, 55
      %v2759 = vpop.permute.xlu0 %2758
      %2760 = vrot.lane.b32.xlu0 %v2563, 55
      %v2761 = vpop.permute.xlu0 %2760
      %2762 = vrot.lane.b32.xlu0 %v2564, 55
      %v2763 = vpop.permute.xlu0 %2762
      %2764 = vrot.lane.b32.xlu0 %v2565, 55
      %v2765 = vpop.permute.xlu0 %2764
      %2766 = vrot.lane.b32.xlu0 %v2566, 55
      %v2767 = vpop.permute.xlu0 %2766
      %2768 = vrot.lane.b32.xlu0 %v2567, 55
      %v2769 = vpop.permute.xlu0 %2768
      %2770 = vrot.lane.b32.xlu0 %v2568, 55
      %v2771 = vpop.permute.xlu0 %2770
      %2772 = vrot.lane.b32.xlu0 %v2569, 55
      %v2773 = vpop.permute.xlu0 %2772
      %v2774 = vsel %vm715, %v2755, %v2757
      %v2775 = vsel %vm715, %v2757, %v2759
      %v2776 = vsel %vm715, %v2759, %v2761
      %v2777 = vsel %vm715, %v2761, %v2763
      %v2778 = vsel %vm715, %v2763, %v2765
      %v2779 = vsel %vm715, %v2765, %v2767
      %v2780 = vsel %vm715, %v2767, %v2769
      %v2781 = vsel %vm715, %v2769, %v2771
      %v2782 = vsel %vm715, %v2771, %v2773
      %2783 = vrot.lane.b32.xlu0 %v2560, 54
      %v2784 = vpop.permute.xlu0 %2783
      %2785 = vrot.lane.b32.xlu0 %v2561, 54
      %v2786 = vpop.permute.xlu0 %2785
      %2787 = vrot.lane.b32.xlu0 %v2562, 54
      %v2788 = vpop.permute.xlu0 %2787
      %2789 = vrot.lane.b32.xlu0 %v2563, 54
      %v2790 = vpop.permute.xlu0 %2789
      %2791 = vrot.lane.b32.xlu0 %v2564, 54
      %v2792 = vpop.permute.xlu0 %2791
      %2793 = vrot.lane.b32.xlu0 %v2565, 54
      %v2794 = vpop.permute.xlu0 %2793
      %2795 = vrot.lane.b32.xlu0 %v2566, 54
      %v2796 = vpop.permute.xlu0 %2795
      %2797 = vrot.lane.b32.xlu0 %v2567, 54
      %v2798 = vpop.permute.xlu0 %2797
      %2799 = vrot.lane.b32.xlu0 %v2568, 54
      %v2800 = vpop.permute.xlu0 %2799
      %2801 = vrot.lane.b32.xlu0 %v2569, 54
      %v2802 = vpop.permute.xlu0 %2801
      %v2803 = vsel %vm754, %v2784, %v2786
      %v2804 = vsel %vm754, %v2786, %v2788
      %v2805 = vsel %vm754, %v2788, %v2790
      %v2806 = vsel %vm754, %v2790, %v2792
      %v2807 = vsel %vm754, %v2792, %v2794
      %v2808 = vsel %vm754, %v2794, %v2796
      %v2809 = vsel %vm754, %v2796, %v2798
      %v2810 = vsel %vm754, %v2798, %v2800
      %v2811 = vsel %vm754, %v2800, %v2802
      %v2812 = vld [vmem:[%s5] sm:$0xff]
      %2813 = vrot.lane.b32.xlu0 %v2560, 93
      %v2814 = vpop.permute.xlu0 %2813
      %2815 = vrot.lane.b32.xlu0 %v2561, 93
      %v2816 = vpop.permute.xlu0 %2815
      %2817 = vrot.lane.b32.xlu0 %v2562, 93
      %v2818 = vpop.permute.xlu0 %2817
      %2819 = vrot.lane.b32.xlu0 %v2563, 93
      %v2820 = vpop.permute.xlu0 %2819
      %2821 = vrot.lane.b32.xlu0 %v2564, 93
      %v2822 = vpop.permute.xlu0 %2821
      %2823 = vrot.lane.b32.xlu0 %v2565, 93
      %v2824 = vpop.permute.xlu0 %2823
      %2825 = vrot.lane.b32.xlu0 %v2566, 93
      %v2826 = vpop.permute.xlu0 %2825
      %2827 = vrot.lane.b32.xlu0 %v2567, 93
      %v2828 = vpop.permute.xlu0 %2827
      %2829 = vrot.lane.b32.xlu0 %v2568, 93
      %v2830 = vpop.permute.xlu0 %2829
      %2831 = vrot.lane.b32.xlu0 %v2569, 93
      %v2832 = vpop.permute.xlu0 %2831
      %2833 = vrot.lane.b32.xlu0 %v2600, 93
      %v2834 = vpop.permute.xlu0 %2833
      %2835 = vrot.lane.b32.xlu0 %v2601, 93
      %v2836 = vpop.permute.xlu0 %2835
      %2837 = vrot.lane.b32.xlu0 %v2602, 93
      %v2838 = vpop.permute.xlu0 %2837
      %2839 = vrot.lane.b32.xlu0 %v2603, 93
      %v2840 = vpop.permute.xlu0 %2839
      %2841 = vrot.lane.b32.xlu0 %v2604, 93
      %v2842 = vpop.permute.xlu0 %2841
      %2843 = vrot.lane.b32.xlu0 %v2605, 93
      %v2844 = vpop.permute.xlu0 %2843
      %2845 = vrot.lane.b32.xlu0 %v2606, 93
      %v2846 = vpop.permute.xlu0 %2845
      %2847 = vrot.lane.b32.xlu0 %v2607, 93
      %v2848 = vpop.permute.xlu0 %2847
      %2849 = vrot.lane.b32.xlu0 %v2608, 93
      %v2850 = vpop.permute.xlu0 %2849
      %2851 = vrot.lane.b32.xlu0 %v2599, 93
      %v2852 = vpop.permute.xlu0 %2851
      %2853 = vrot.lane.b32.xlu0 %v2629, 93
      %v2854 = vpop.permute.xlu0 %2853
      %2855 = vrot.lane.b32.xlu0 %v2630, 93
      %v2856 = vpop.permute.xlu0 %2855
      %2857 = vrot.lane.b32.xlu0 %v2631, 93
      %v2858 = vpop.permute.xlu0 %2857
      %2859 = vrot.lane.b32.xlu0 %v2632, 93
      %v2860 = vpop.permute.xlu0 %2859
      %2861 = vrot.lane.b32.xlu0 %v2633, 93
      %v2862 = vpop.permute.xlu0 %2861
      %2863 = vrot.lane.b32.xlu0 %v2634, 93
      %v2864 = vpop.permute.xlu0 %2863
      %2865 = vrot.lane.b32.xlu0 %v2635, 93
      %v2866 = vpop.permute.xlu0 %2865
      %2867 = vrot.lane.b32.xlu0 %v2636, 93
      %v2868 = vpop.permute.xlu0 %2867
      %2869 = vrot.lane.b32.xlu0 %v2637, 93
      %v2870 = vpop.permute.xlu0 %2869
      %2871 = vrot.lane.b32.xlu0 %v2628, 93
      %v2872 = vpop.permute.xlu0 %2871
      %2873 = vrot.lane.b32.xlu0 %v2658, 93
      %v2874 = vpop.permute.xlu0 %2873
      %2875 = vrot.lane.b32.xlu0 %v2659, 93
      %v2876 = vpop.permute.xlu0 %2875
      %2877 = vrot.lane.b32.xlu0 %v2660, 93
      %v2878 = vpop.permute.xlu0 %2877
      %2879 = vrot.lane.b32.xlu0 %v2661, 93
      %v2880 = vpop.permute.xlu0 %2879
      %2881 = vrot.lane.b32.xlu0 %v2662, 93
      %v2882 = vpop.permute.xlu0 %2881
      %2883 = vrot.lane.b32.xlu0 %v2663, 93
      %v2884 = vpop.permute.xlu0 %2883
      %2885 = vrot.lane.b32.xlu0 %v2664, 93
      %v2886 = vpop.permute.xlu0 %2885
      %2887 = vrot.lane.b32.xlu0 %v2665, 93
      %v2888 = vpop.permute.xlu0 %2887
      %2889 = vrot.lane.b32.xlu0 %v2666, 93
      %v2890 = vpop.permute.xlu0 %2889
      %2891 = vrot.lane.b32.xlu0 %v2657, 93
      %v2892 = vpop.permute.xlu0 %2891
      %2893 = vrot.lane.b32.xlu0 %v2687, 93
      %v2894 = vpop.permute.xlu0 %2893
      %2895 = vrot.lane.b32.xlu0 %v2688, 93
      %v2896 = vpop.permute.xlu0 %2895
      %2897 = vrot.lane.b32.xlu0 %v2689, 93
      %v2898 = vpop.permute.xlu0 %2897
      %2899 = vrot.lane.b32.xlu0 %v2690, 93
      %v2900 = vpop.permute.xlu0 %2899
      %2901 = vrot.lane.b32.xlu0 %v2691, 93
      %v2902 = vpop.permute.xlu0 %2901
      %2903 = vrot.lane.b32.xlu0 %v2692, 93
      %v2904 = vpop.permute.xlu0 %2903
      %2905 = vrot.lane.b32.xlu0 %v2693, 93
      %v2906 = vpop.permute.xlu0 %2905
      %2907 = vrot.lane.b32.xlu0 %v2694, 93
      %v2908 = vpop.permute.xlu0 %2907
      %2909 = vrot.lane.b32.xlu0 %v2695, 93
      %v2910 = vpop.permute.xlu0 %2909
      %2911 = vrot.lane.b32.xlu0 %v2686, 93
      %v2912 = vpop.permute.xlu0 %2911
      %2913 = vrot.lane.b32.xlu0 %v2716, 93
      %v2914 = vpop.permute.xlu0 %2913
      %2915 = vrot.lane.b32.xlu0 %v2717, 93
      %v2916 = vpop.permute.xlu0 %2915
      %2917 = vrot.lane.b32.xlu0 %v2718, 93
      %v2918 = vpop.permute.xlu0 %2917
      %2919 = vrot.lane.b32.xlu0 %v2719, 93
      %v2920 = vpop.permute.xlu0 %2919
      %2921 = vrot.lane.b32.xlu0 %v2720, 93
      %v2922 = vpop.permute.xlu0 %2921
      %2923 = vrot.lane.b32.xlu0 %v2721, 93
      %v2924 = vpop.permute.xlu0 %2923
      %2925 = vrot.lane.b32.xlu0 %v2722, 93
      %v2926 = vpop.permute.xlu0 %2925
      %2927 = vrot.lane.b32.xlu0 %v2723, 93
      %v2928 = vpop.permute.xlu0 %2927
      %2929 = vrot.lane.b32.xlu0 %v2724, 93
      %v2930 = vpop.permute.xlu0 %2929
      %2931 = vrot.lane.b32.xlu0 %v2715, 93
      %v2932 = vpop.permute.xlu0 %2931
      %2933 = vrot.lane.b32.xlu0 %v2745, 93
      %v2934 = vpop.permute.xlu0 %2933
      %2935 = vrot.lane.b32.xlu0 %v2746, 93
      %v2936 = vpop.permute.xlu0 %2935
      %2937 = vrot.lane.b32.xlu0 %v2747, 93
      %v2938 = vpop.permute.xlu0 %2937
      %2939 = vrot.lane.b32.xlu0 %v2748, 93
      %v2940 = vpop.permute.xlu0 %2939
      %2941 = vrot.lane.b32.xlu0 %v2749, 93
      %v2942 = vpop.permute.xlu0 %2941
      %2943 = vrot.lane.b32.xlu0 %v2750, 93
      %v2944 = vpop.permute.xlu0 %2943
      %2945 = vrot.lane.b32.xlu0 %v2751, 93
      %v2946 = vpop.permute.xlu0 %2945
      %2947 = vrot.lane.b32.xlu0 %v2752, 93
      %v2948 = vpop.permute.xlu0 %2947
      %2949 = vrot.lane.b32.xlu0 %v2753, 93
      %v2950 = vpop.permute.xlu0 %2949
      %2951 = vrot.lane.b32.xlu0 %v2744, 93
      %v2952 = vpop.permute.xlu0 %2951
      %2953 = vrot.lane.b32.xlu0 %v2774, 93
      %v2954 = vpop.permute.xlu0 %2953
      %2955 = vrot.lane.b32.xlu0 %v2775, 93
      %v2956 = vpop.permute.xlu0 %2955
      %2957 = vrot.lane.b32.xlu0 %v2776, 93
      %v2958 = vpop.permute.xlu0 %2957
      %2959 = vrot.lane.b32.xlu0 %v2777, 93
      %v2960 = vpop.permute.xlu0 %2959
      %2961 = vrot.lane.b32.xlu0 %v2778, 93
      %v2962 = vpop.permute.xlu0 %2961
      %2963 = vrot.lane.b32.xlu0 %v2779, 93
      %v2964 = vpop.permute.xlu0 %2963
      %2965 = vrot.lane.b32.xlu0 %v2780, 93
      %v2966 = vpop.permute.xlu0 %2965
      %2967 = vrot.lane.b32.xlu0 %v2781, 93
      %v2968 = vpop.permute.xlu0 %2967
      %2969 = vrot.lane.b32.xlu0 %v2782, 93
      %v2970 = vpop.permute.xlu0 %2969
      %2971 = vrot.lane.b32.xlu0 %v2773, 93
      %v2972 = vpop.permute.xlu0 %2971
      %2973 = vrot.lane.b32.xlu0 %v2803, 93
      %v2974 = vpop.permute.xlu0 %2973
      %2975 = vrot.lane.b32.xlu0 %v2804, 93
      %v2976 = vpop.permute.xlu0 %2975
      %2977 = vrot.lane.b32.xlu0 %v2805, 93
      %v2978 = vpop.permute.xlu0 %2977
      %2979 = vrot.lane.b32.xlu0 %v2806, 93
      %v2980 = vpop.permute.xlu0 %2979
      %2981 = vrot.lane.b32.xlu0 %v2807, 93
      %v2982 = vpop.permute.xlu0 %2981
      %2983 = vrot.lane.b32.xlu0 %v2808, 93
      %v2984 = vpop.permute.xlu0 %2983
      %2985 = vrot.lane.b32.xlu0 %v2809, 93
      %v2986 = vpop.permute.xlu0 %2985
      %2987 = vrot.lane.b32.xlu0 %v2810, 93
      %v2988 = vpop.permute.xlu0 %2987
      %2989 = vrot.lane.b32.xlu0 %v2811, 93
      %v2990 = vpop.permute.xlu0 %2989
      %2991 = vrot.lane.b32.xlu0 %v2802, 93
      %v2992 = vpop.permute.xlu0 %2991
      %v2993 = vsel %vm1967, %v2814, %v2816
      %v2994 = vsel %vm1967, %v2816, %v2818
      %v2995 = vsel %vm1967, %v2818, %v2820
      %v2996 = vsel %vm1967, %v2820, %v2822
      %v2997 = vsel %vm1967, %v2822, %v2824
      %v2998 = vsel %vm1967, %v2824, %v2826
      %v2999 = vsel %vm1967, %v2826, %v2828
      %v3000 = vsel %vm1967, %v2828, %v2830
      %v3001 = vsel %vm1967, %v2830, %v2832
      %v3002 = vsel %vm1967, %v2834, %v2836
      %v3003 = vsel %vm1967, %v2836, %v2838
      %v3004 = vsel %vm1967, %v2838, %v2840
      %v3005 = vsel %vm1967, %v2840, %v2842
      %v3006 = vsel %vm1967, %v2842, %v2844
      %v3007 = vsel %vm1967, %v2844, %v2846
      %v3008 = vsel %vm1967, %v2846, %v2848
      %v3009 = vsel %vm1967, %v2848, %v2850
      %v3010 = vsel %vm1967, %v2850, %v2852
      %v3011 = vsel %vm1967, %v2854, %v2856
      %v3012 = vsel %vm1967, %v2856, %v2858
      %v3013 = vsel %vm1967, %v2858, %v2860
      %v3014 = vsel %vm1967, %v2860, %v2862
      %v3015 = vsel %vm1967, %v2862, %v2864
      %v3016 = vsel %vm1967, %v2864, %v2866
      %v3017 = vsel %vm1967, %v2866, %v2868
      %v3018 = vsel %vm1967, %v2868, %v2870
      %v3019 = vsel %vm1967, %v2870, %v2872
      %v3020 = vsel %vm1967, %v2874, %v2876
      %v3021 = vsel %vm1967, %v2876, %v2878
      %v3022 = vsel %vm1967, %v2878, %v2880
      %v3023 = vsel %vm1967, %v2880, %v2882
      %v3024 = vsel %vm1967, %v2882, %v2884
      %v3025 = vsel %vm1967, %v2884, %v2886
      %v3026 = vsel %vm1967, %v2886, %v2888
      %v3027 = vsel %vm1967, %v2888, %v2890
      %v3028 = vsel %vm1967, %v2890, %v2892
      %v3029 = vsel %vm1967, %v2894, %v2896
      %v3030 = vsel %vm1967, %v2896, %v2898
      %v3031 = vsel %vm1967, %v2898, %v2900
      %v3032 = vsel %vm1967, %v2900, %v2902
      %v3033 = vsel %vm1967, %v2902, %v2904
      %v3034 = vsel %vm1967, %v2904, %v2906
      %v3035 = vsel %vm1967, %v2906, %v2908
      %v3036 = vsel %vm1967, %v2908, %v2910
      %v3037 = vsel %vm1967, %v2910, %v2912
      %v3038 = vsel %vm1967, %v2914, %v2916
      %v3039 = vsel %vm1967, %v2916, %v2918
      %v3040 = vsel %vm1967, %v2918, %v2920
      %v3041 = vsel %vm1967, %v2920, %v2922
      %v3042 = vsel %vm1967, %v2922, %v2924
      %v3043 = vsel %vm1967, %v2924, %v2926
      %v3044 = vsel %vm1967, %v2926, %v2928
      %v3045 = vsel %vm1967, %v2928, %v2930
      %v3046 = vsel %vm1967, %v2930, %v2932
      %v3047 = vsel %vm1967, %v2934, %v2936
      %v3048 = vsel %vm1967, %v2936, %v2938
      %v3049 = vsel %vm1967, %v2938, %v2940
      %v3050 = vsel %vm1967, %v2940, %v2942
      %v3051 = vsel %vm1967, %v2942, %v2944
      %v3052 = vsel %vm1967, %v2944, %v2946
      %v3053 = vsel %vm1967, %v2946, %v2948
      %v3054 = vsel %vm1967, %v2948, %v2950
      %v3055 = vsel %vm1967, %v2950, %v2952
      %v3056 = vsel %vm1967, %v2954, %v2956
      %v3057 = vsel %vm1967, %v2956, %v2958
      %v3058 = vsel %vm1967, %v2958, %v2960
      %v3059 = vsel %vm1967, %v2960, %v2962
      %v3060 = vsel %vm1967, %v2962, %v2964
      %v3061 = vsel %vm1967, %v2964, %v2966
      %v3062 = vsel %vm1967, %v2966, %v2968
      %v3063 = vsel %vm1967, %v2968, %v2970
      %v3064 = vsel %vm1967, %v2970, %v2972
      %v3065 = vsel %vm1967, %v2974, %v2976
      %v3066 = vsel %vm1967, %v2976, %v2978
      %v3067 = vsel %vm1967, %v2978, %v2980
      %v3068 = vsel %vm1967, %v2980, %v2982
      %v3069 = vsel %vm1967, %v2982, %v2984
      %v3070 = vsel %vm1967, %v2984, %v2986
      %v3071 = vsel %vm1967, %v2986, %v2988
      %v3072 = vsel %vm1967, %v2988, %v2990
      %v3073 = vsel %vm1967, %v2990, %v2992
      %v3156 = vsel %vm1498, %v2812, 0
      %3158 = vmatprep.subr.mxu0 0.0
      %3159 = vmatpush1.msra.mxu0 0.0
      %3160 = vmatprep.subr.mxu0 0.0
      %3161 = vmatpush1.msra.mxu0 0.0
      %3162 = vmatprep.subr.mxu0 0.0
      %3163 = vmatpush1.msra.mxu0 0.0
      %3164 = vmatprep.subr.mxu0 0.0
      %3165 = vmatpush1.msra.mxu0 0.0
      %3166 = vmatprep.subr.mxu0 0.0
      %3167 = vmatpush1.msra.mxu0 0.0
      %3168 = vmatprep.subr.mxu0 0.0
      %3169 = vmatpush1.msra.mxu0 0.0
      %3170 = vmatprep.subr.mxu0 0.0
      %3171 = vmatpush1.msra.mxu0 0.0
      %3172 = vmatprep.subr.mxu0 %v3066
      %3173 = vmatpush1.msra.mxu0 %v3065
      %3174 = vmatprep.subr.mxu0 %v3057
      %3175 = vmatpush1.msra.mxu0 %v3056
      %3176 = vmatprep.subr.mxu0 %v3048
      %3177 = vmatpush1.msra.mxu0 %v3047
      %3178 = vmatprep.subr.mxu0 %v3039
      %3179 = vmatpush1.msra.mxu0 %v3038
      %3180 = vmatprep.subr.mxu0 %v3030
      %3181 = vmatpush1.msra.mxu0 %v3029
      %3182 = vmatprep.subr.mxu0 %v3021
      %3183 = vmatpush1.msra.mxu0 %v3020
      %3184 = vmatprep.subr.mxu0 %v3012
      %3185 = vmatpush1.msra.mxu0 %v3011
      %3186 = vmatprep.subr.mxu0 %v3003
      %3187 = vmatpush1.msra.mxu0 %v3002
      %3188 = vmatprep.subr.mxu0 %v2994
      %3189 = vmatpush1.msra.mxu0 %v2993
      %3190 = vmatprep.subr.mxu0 0.0
      %3191 = vmatpush2.msra.mxu0 0.0
      %3192 = vmatprep.subr.mxu0 0.0
      %3193 = vmatpush2.msra.mxu0 0.0
      %3194 = vmatprep.subr.mxu0 0.0
      %3195 = vmatpush2.msra.mxu0 0.0
      %3196 = vmatprep.subr.mxu0 0.0
      %3197 = vmatpush2.msra.mxu0 0.0
      %3198 = vmatprep.subr.mxu0 0.0
      %3199 = vmatpush2.msra.mxu0 0.0
      %3200 = vmatprep.subr.mxu0 0.0
      %3201 = vmatpush2.msra.mxu0 0.0
      %3202 = vmatprep.subr.mxu0 0.0
      %3203 = vmatpush2.msra.mxu0 0.0
      %3204 = vmatprep.subr.mxu0 0.0
      %3205 = vmatpush2.msra.mxu0 0.0
      %3206 = vmatprep.subr.mxu0 0.0
      %3207 = vmatpush2.msra.mxu0 0.0
      %3208 = vmatprep.subr.mxu0 0.0
      %3209 = vmatpush2.msra.mxu0 0.0
      %3210 = vmatprep.subr.mxu0 0.0
      %3211 = vmatpush2.msra.mxu0 0.0
      %3212 = vmatprep.subr.mxu0 0.0
      %3213 = vmatpush2.msra.mxu0 0.0
      %3214 = vmatprep.subr.mxu0 0.0
      %3215 = vmatpush2.msra.mxu0 0.0
      %3216 = vmatprep.subr.mxu0 0.0
      %3217 = vmatpush2.msra.mxu0 0.0
      %3218 = vmatprep.subr.mxu0 0.0
      %3219 = vmatpush2.msra.mxu0 0.0
      %3220 = vmatprep.subr.mxu0 0.0
      %3221 = vmatpush2.msra.mxu0 0.0
      %3222 = vmatprep.mubr.f32.mxu0 0.0
      %3223 = vmatmul.mubr.f32.gmra.mxu0 %v3156
      %v3224 = vpop.f32.mrf.mxu0
      %v3225 = vadd.f32 0.0, %v3224
      %v3226 = vpop.f32.mrf.mxu0
      %v3227 = vadd.f32 0.0, %v3226
      %3228 = vdwg.mxu0
      %3229 = vmatprep.subr.mxu0 0.0
      %3230 = vmatpush1.msra.mxu0 0.0
      %3231 = vmatprep.subr.mxu0 0.0
      %3232 = vmatpush1.msra.mxu0 0.0
      %3233 = vmatprep.subr.mxu0 0.0
      %3234 = vmatpush1.msra.mxu0 0.0
      %3235 = vmatprep.subr.mxu0 0.0
      %3236 = vmatpush1.msra.mxu0 0.0
      %3237 = vmatprep.subr.mxu0 0.0
      %3238 = vmatpush1.msra.mxu0 0.0
      %3239 = vmatprep.subr.mxu0 0.0
      %3240 = vmatpush1.msra.mxu0 0.0
      %3241 = vmatprep.subr.mxu0 0.0
      %3242 = vmatpush1.msra.mxu0 0.0
      %3243 = vmatprep.subr.mxu0 %v3068
      %3244 = vmatpush1.msra.mxu0 %v3067
      %3245 = vmatprep.subr.mxu0 %v3059
      %3246 = vmatpush1.msra.mxu0 %v3058
      %3247 = vmatprep.subr.mxu0 %v3050
      %3248 = vmatpush1.msra.mxu0 %v3049
      %3249 = vmatprep.subr.mxu0 %v3041
      %3250 = vmatpush1.msra.mxu0 %v3040
      %3251 = vmatprep.subr.mxu0 %v3032
      %3252 = vmatpush1.msra.mxu0 %v3031
      %3253 = vmatprep.subr.mxu0 %v3023
      %3254 = vmatpush1.msra.mxu0 %v3022
      %3255 = vmatprep.subr.mxu0 %v3014
      %3256 = vmatpush1.msra.mxu0 %v3013
      %3257 = vmatprep.subr.mxu0 %v3005
      %3258 = vmatpush1.msra.mxu0 %v3004
      %3259 = vmatprep.subr.mxu0 %v2996
      %3260 = vmatpush1.msra.mxu0 %v2995
      %3261 = vmatprep.subr.mxu0 0.0
      %3262 = vmatpush2.msra.mxu0 0.0
      %3263 = vmatprep.subr.mxu0 0.0
      %3264 = vmatpush2.msra.mxu0 0.0
      %3265 = vmatprep.subr.mxu0 0.0
      %3266 = vmatpush2.msra.mxu0 0.0
      %3267 = vmatprep.subr.mxu0 0.0
      %3268 = vmatpush2.msra.mxu0 0.0
      %3269 = vmatprep.subr.mxu0 0.0
      %3270 = vmatpush2.msra.mxu0 0.0
      %3271 = vmatprep.subr.mxu0 0.0
      %3272 = vmatpush2.msra.mxu0 0.0
      %3273 = vmatprep.subr.mxu0 0.0
      %3274 = vmatpush2.msra.mxu0 0.0
      %3275 = vmatprep.subr.mxu0 0.0
      %3276 = vmatpush2.msra.mxu0 0.0
      %3277 = vmatprep.subr.mxu0 0.0
      %3278 = vmatpush2.msra.mxu0 0.0
      %3279 = vmatprep.subr.mxu0 0.0
      %3280 = vmatpush2.msra.mxu0 0.0
      %3281 = vmatprep.subr.mxu0 0.0
      %3282 = vmatpush2.msra.mxu0 0.0
      %3283 = vmatprep.subr.mxu0 0.0
      %3284 = vmatpush2.msra.mxu0 0.0
      %3285 = vmatprep.subr.mxu0 0.0
      %3286 = vmatpush2.msra.mxu0 0.0
      %3287 = vmatprep.subr.mxu0 0.0
      %3288 = vmatpush2.msra.mxu0 0.0
      %3289 = vmatprep.subr.mxu0 0.0
      %3290 = vmatpush2.msra.mxu0 0.0
      %3291 = vmatprep.subr.mxu0 0.0
      %3292 = vmatpush2.msra.mxu0 0.0
      %3293 = vmatprep.mubr.f32.mxu0 0.0
      %3294 = vmatmul.mubr.f32.gmra.mxu0 %v3156
      %v3295 = vpop.f32.mrf.mxu0
      %v3296 = vadd.f32 0.0, %v3295
      %v3297 = vpop.f32.mrf.mxu0
      %v3298 = vadd.f32 0.0, %v3297
      %3299 = vdwg.mxu0
      %3300 = vmatprep.subr.mxu0 0.0
      %3301 = vmatpush1.msra.mxu0 0.0
      %3302 = vmatprep.subr.mxu0 0.0
      %3303 = vmatpush1.msra.mxu0 0.0
      %3304 = vmatprep.subr.mxu0 0.0
      %3305 = vmatpush1.msra.mxu0 0.0
      %3306 = vmatprep.subr.mxu0 0.0
      %3307 = vmatpush1.msra.mxu0 0.0
      %3308 = vmatprep.subr.mxu0 0.0
      %3309 = vmatpush1.msra.mxu0 0.0
      %3310 = vmatprep.subr.mxu0 0.0
      %3311 = vmatpush1.msra.mxu0 0.0
      %3312 = vmatprep.subr.mxu0 0.0
      %3313 = vmatpush1.msra.mxu0 0.0
      %3314 = vmatprep.subr.mxu0 %v3070
      %3315 = vmatpush1.msra.mxu0 %v3069
      %3316 = vmatprep.subr.mxu0 %v3061
      %3317 = vmatpush1.msra.mxu0 %v3060
      %3318 = vmatprep.subr.mxu0 %v3052
      %3319 = vmatpush1.msra.mxu0 %v3051
      %3320 = vmatprep.subr.mxu0 %v3043
      %3321 = vmatpush1.msra.mxu0 %v3042
      %3322 = vmatprep.subr.mxu0 %v3034
      %3323 = vmatpush1.msra.mxu0 %v3033
      %3324 = vmatprep.subr.mxu0 %v3025
      %3325 = vmatpush1.msra.mxu0 %v3024
      %3326 = vmatprep.subr.mxu0 %v3016
      %3327 = vmatpush1.msra.mxu0 %v3015
      %3328 = vmatprep.subr.mxu0 %v3007
      %3329 = vmatpush1.msra.mxu0 %v3006
      %3330 = vmatprep.subr.mxu0 %v2998
      %3331 = vmatpush1.msra.mxu0 %v2997
      %3332 = vmatprep.subr.mxu0 0.0
      %3333 = vmatpush2.msra.mxu0 0.0
      %3334 = vmatprep.subr.mxu0 0.0
      %3335 = vmatpush2.msra.mxu0 0.0
      %3336 = vmatprep.subr.mxu0 0.0
      %3337 = vmatpush2.msra.mxu0 0.0
      %3338 = vmatprep.subr.mxu0 0.0
      %3339 = vmatpush2.msra.mxu0 0.0
      %3340 = vmatprep.subr.mxu0 0.0
      %3341 = vmatpush2.msra.mxu0 0.0
      %3342 = vmatprep.subr.mxu0 0.0
      %3343 = vmatpush2.msra.mxu0 0.0
      %3344 = vmatprep.subr.mxu0 0.0
      %3345 = vmatpush2.msra.mxu0 0.0
      %3346 = vmatprep.subr.mxu0 0.0
      %3347 = vmatpush2.msra.mxu0 0.0
      %3348 = vmatprep.subr.mxu0 0.0
      %3349 = vmatpush2.msra.mxu0 0.0
      %3350 = vmatprep.subr.mxu0 0.0
      %3351 = vmatpush2.msra.mxu0 0.0
      %3352 = vmatprep.subr.mxu0 0.0
      %3353 = vmatpush2.msra.mxu0 0.0
      %3354 = vmatprep.subr.mxu0 0.0
      %3355 = vmatpush2.msra.mxu0 0.0
      %3356 = vmatprep.subr.mxu0 0.0
      %3357 = vmatpush2.msra.mxu0 0.0
      %3358 = vmatprep.subr.mxu0 0.0
      %3359 = vmatpush2.msra.mxu0 0.0
      %3360 = vmatprep.subr.mxu0 0.0
      %3361 = vmatpush2.msra.mxu0 0.0
      %3362 = vmatprep.subr.mxu0 0.0
      %3363 = vmatpush2.msra.mxu0 0.0
      %3364 = vmatprep.mubr.f32.mxu0 0.0
      %3365 = vmatmul.mubr.f32.gmra.mxu0 %v3156
      %v3366 = vpop.f32.mrf.mxu0
      %v3367 = vadd.f32 0.0, %v3366
      %v3368 = vpop.f32.mrf.mxu0
      %v3369 = vadd.f32 0.0, %v3368
      %3370 = vdwg.mxu0
      %3371 = vmatprep.subr.mxu0 0.0
      %3372 = vmatpush1.msra.mxu0 0.0
      %3373 = vmatprep.subr.mxu0 0.0
      %3374 = vmatpush1.msra.mxu0 0.0
      %3375 = vmatprep.subr.mxu0 0.0
      %3376 = vmatpush1.msra.mxu0 0.0
      %3377 = vmatprep.subr.mxu0 0.0
      %3378 = vmatpush1.msra.mxu0 0.0
      %3379 = vmatprep.subr.mxu0 0.0
      %3380 = vmatpush1.msra.mxu0 0.0
      %3381 = vmatprep.subr.mxu0 0.0
      %3382 = vmatpush1.msra.mxu0 0.0
      %3383 = vmatprep.subr.mxu0 0.0
      %3384 = vmatpush1.msra.mxu0 0.0
      %3385 = vmatprep.subr.mxu0 %v3072
      %3386 = vmatpush1.msra.mxu0 %v3071
      %3387 = vmatprep.subr.mxu0 %v3063
      %3388 = vmatpush1.msra.mxu0 %v3062
      %3389 = vmatprep.subr.mxu0 %v3054
      %3390 = vmatpush1.msra.mxu0 %v3053
      %3391 = vmatprep.subr.mxu0 %v3045
      %3392 = vmatpush1.msra.mxu0 %v3044
      %3393 = vmatprep.subr.mxu0 %v3036
      %3394 = vmatpush1.msra.mxu0 %v3035
      %3395 = vmatprep.subr.mxu0 %v3027
      %3396 = vmatpush1.msra.mxu0 %v3026
      %3397 = vmatprep.subr.mxu0 %v3018
      %3398 = vmatpush1.msra.mxu0 %v3017
      %3399 = vmatprep.subr.mxu0 %v3009
      %3400 = vmatpush1.msra.mxu0 %v3008
      %3401 = vmatprep.subr.mxu0 %v3000
      %3402 = vmatpush1.msra.mxu0 %v2999
      %3403 = vmatprep.subr.mxu0 0.0
      %3404 = vmatpush2.msra.mxu0 0.0
      %3405 = vmatprep.subr.mxu0 0.0
      %3406 = vmatpush2.msra.mxu0 0.0
      %3407 = vmatprep.subr.mxu0 0.0
      %3408 = vmatpush2.msra.mxu0 0.0
      %3409 = vmatprep.subr.mxu0 0.0
      %3410 = vmatpush2.msra.mxu0 0.0
      %3411 = vmatprep.subr.mxu0 0.0
      %3412 = vmatpush2.msra.mxu0 0.0
      %3413 = vmatprep.subr.mxu0 0.0
      %3414 = vmatpush2.msra.mxu0 0.0
      %3415 = vmatprep.subr.mxu0 0.0
      %3416 = vmatpush2.msra.mxu0 0.0
      %3417 = vmatprep.subr.mxu0 0.0
      %3418 = vmatpush2.msra.mxu0 0.0
      %3419 = vmatprep.subr.mxu0 0.0
      %3420 = vmatpush2.msra.mxu0 0.0
      %3421 = vmatprep.subr.mxu0 0.0
      %3422 = vmatpush2.msra.mxu0 0.0
      %3423 = vmatprep.subr.mxu0 0.0
      %3424 = vmatpush2.msra.mxu0 0.0
      %3425 = vmatprep.subr.mxu0 0.0
      %3426 = vmatpush2.msra.mxu0 0.0
      %3427 = vmatprep.subr.mxu0 0.0
      %3428 = vmatpush2.msra.mxu0 0.0
      %3429 = vmatprep.subr.mxu0 0.0
      %3430 = vmatpush2.msra.mxu0 0.0
      %3431 = vmatprep.subr.mxu0 0.0
      %3432 = vmatpush2.msra.mxu0 0.0
      %3433 = vmatprep.subr.mxu0 0.0
      %3434 = vmatpush2.msra.mxu0 0.0
      %3435 = vmatprep.mubr.f32.mxu0 0.0
      %3436 = vmatmul.mubr.f32.gmra.mxu0 %v3156
      %v3437 = vpop.f32.mrf.mxu0
      %v3438 = vadd.f32 0.0, %v3437
      %v3439 = vpop.f32.mrf.mxu0
      %v3440 = vadd.f32 0.0, %v3439
      %3441 = vdwg.mxu0
      %3442 = vmatprep.subr.mxu0 0.0
      %3443 = vmatpush1.msra.mxu0 0.0
      %3444 = vmatprep.subr.mxu0 0.0
      %3445 = vmatpush1.msra.mxu0 0.0
      %3446 = vmatprep.subr.mxu0 0.0
      %3447 = vmatpush1.msra.mxu0 0.0
      %3448 = vmatprep.subr.mxu0 0.0
      %3449 = vmatpush1.msra.mxu0 0.0
      %3450 = vmatprep.subr.mxu0 0.0
      %3451 = vmatpush1.msra.mxu0 0.0
      %3452 = vmatprep.subr.mxu0 0.0
      %3453 = vmatpush1.msra.mxu0 0.0
      %3454 = vmatprep.subr.mxu0 0.0
      %3455 = vmatpush1.msra.mxu0 0.0
      %3456 = vmatprep.subr.mxu0 0.0
      %3457 = vmatpush1.msra.mxu0 %v3073
      %3458 = vmatprep.subr.mxu0 0.0
      %3459 = vmatpush1.msra.mxu0 %v3064
      %3460 = vmatprep.subr.mxu0 0.0
      %3461 = vmatpush1.msra.mxu0 %v3055
      %3462 = vmatprep.subr.mxu0 0.0
      %3463 = vmatpush1.msra.mxu0 %v3046
      %3464 = vmatprep.subr.mxu0 0.0
      %3465 = vmatpush1.msra.mxu0 %v3037
      %3466 = vmatprep.subr.mxu0 0.0
      %3467 = vmatpush1.msra.mxu0 %v3028
      %3468 = vmatprep.subr.mxu0 0.0
      %3469 = vmatpush1.msra.mxu0 %v3019
      %3470 = vmatprep.subr.mxu0 0.0
      %3471 = vmatpush1.msra.mxu0 %v3010
      %3472 = vmatprep.subr.mxu0 0.0
      %3473 = vmatpush1.msra.mxu0 %v3001
      %3474 = vmatprep.subr.mxu0 0.0
      %3475 = vmatpush2.msra.mxu0 0.0
      %3476 = vmatprep.subr.mxu0 0.0
      %3477 = vmatpush2.msra.mxu0 0.0
      %3478 = vmatprep.subr.mxu0 0.0
      %3479 = vmatpush2.msra.mxu0 0.0
      %3480 = vmatprep.subr.mxu0 0.0
      %3481 = vmatpush2.msra.mxu0 0.0
      %3482 = vmatprep.subr.mxu0 0.0
      %3483 = vmatpush2.msra.mxu0 0.0
      %3484 = vmatprep.subr.mxu0 0.0
      %3485 = vmatpush2.msra.mxu0 0.0
      %3486 = vmatprep.subr.mxu0 0.0
      %3487 = vmatpush2.msra.mxu0 0.0
      %3488 = vmatprep.subr.mxu0 0.0
      %3489 = vmatpush2.msra.mxu0 0.0
      %3490 = vmatprep.subr.mxu0 0.0
      %3491 = vmatpush2.msra.mxu0 0.0
      %3492 = vmatprep.subr.mxu0 0.0
      %3493 = vmatpush2.msra.mxu0 0.0
      %3494 = vmatprep.subr.mxu0 0.0
      %3495 = vmatpush2.msra.mxu0 0.0
      %3496 = vmatprep.subr.mxu0 0.0
      %3497 = vmatpush2.msra.mxu0 0.0
      %3498 = vmatprep.subr.mxu0 0.0
      %3499 = vmatpush2.msra.mxu0 0.0
      %3500 = vmatprep.subr.mxu0 0.0
      %3501 = vmatpush2.msra.mxu0 0.0
      %3502 = vmatprep.subr.mxu0 0.0
      %3503 = vmatpush2.msra.mxu0 0.0
      %3504 = vmatprep.subr.mxu0 0.0
      %3505 = vmatpush2.msra.mxu0 0.0
      %3506 = vmatprep.mubr.f32.mxu0 0.0
      %3507 = vmatmul.mubr.f32.gmra.mxu0 %v3156
      %v3508 = vpop.f32.mrf.mxu0
      %v3509 = vadd.f32 0.0, %v3508
      %v3510 = vpop.f32.mrf.mxu0
      %3511 = vdwg.mxu0
      %v3512 = vld [vmem:[%s6] sm:$0xff]
      %3514 = vset.pattern.permute.xlu0 0
      %3515 = vperm.xlu0 %3514, %v3512
      %v3516 = vpop.permute.xlu0 %3515
      %v3518 = vmul.f32 %v3225, %v3516
      %v3519 = vmul.f32 %v3227, %v3516
      %v3520 = vmul.f32 %v3296, %v3516
      %v3521 = vmul.f32 %v3298, %v3516
      %v3522 = vmul.f32 %v3367, %v3516
      %v3523 = vmul.f32 %v3369, %v3516
      %v3524 = vmul.f32 %v3438, %v3516
      %v3525 = vmul.f32 %v3440, %v3516
      %v3526 = vmul.f32 %v3509, %v3516
      %v3527 = vld [vmem:[%s7] sm:$0xff]
      %3529 = vset.pattern.permute.xlu0 0
      %3530 = vperm.xlu0 %3529, %v3527
      %v3531 = vpop.permute.xlu0 %3530
      %v3533 = vadd.f32 %v3518, %v3531
      %v3534 = vadd.f32 %v3519, %v3531
      %v3535 = vadd.f32 %v3520, %v3531
      %v3536 = vadd.f32 %v3521, %v3531
      %v3537 = vadd.f32 %v3522, %v3531
      %v3538 = vadd.f32 %v3523, %v3531
      %v3539 = vadd.f32 %v3524, %v3531
      %v3540 = vadd.f32 %v3525, %v3531
      %v3541 = vadd.f32 %v3526, %v3531
      %v3542 = vmax.f32 %v3533, 0.0
      %v3543 = vmax.f32 %v3534, 0.0
      %v3544 = vmax.f32 %v3535, 0.0
      %v3545 = vmax.f32 %v3536, 0.0
      %v3546 = vmax.f32 %v3537, 0.0
      %v3547 = vmax.f32 %v3538, 0.0
      %v3548 = vmax.f32 %v3539, 0.0
      %v3549 = vmax.f32 %v3540, 0.0
      %v3550 = vmax.f32 %v3541, 0.0
      %3551 = vst [vmem:[%s332] sm:$0xff] %v3542
      %3552 = vst [vmem:[%s332 + $0x8] sm:$0xff] %v3543
      %3553 = vst [vmem:[%s332 + $0x10] sm:$0xff] %v3544
      %3554 = vst [vmem:[%s332 + $0x18] sm:$0xff] %v3545
      %3555 = vst [vmem:[%s332 + $0x20] sm:$0xff] %v3546
      %3556 = vst [vmem:[%s332 + $0x28] sm:$0xff] %v3547
      %3557 = vst [vmem:[%s332 + $0x30] sm:$0xff] %v3548
      %3558 = vst [vmem:[%s332 + $0x38] sm:$0xff] %v3549
      %3559 = vst [vmem:[%s332 + $0x40] sm:$0xff] %v3550
      %p3560 = scmp.lt.s32.totalorder %s20, 1
      %s3561 = scalar_select %p3560, %s20, 1
      %s3562 = smul.addr %s3561, 9
      %s3563 = smul.addr %s3562, 8
      %s3564 = scalar_lea.vmem %s9, %s3563
      // Predicated region
      $region57: #{conv_up_forward.1} parent=55 // pred_check
        %p3565 = pneg %p232
      $region58: #{conv_up_forward.1} parent=55 // pred_check_branch
        %3567 = sbr.rel (%p3565) target = $region60
      $region59: #{conv_up_forward.1} parent=55 // pred_region
        _
      $region60: #{conv_up_forward.1} parent=55 // pred_fallthru
        _
    $region56: #{conv_up_forward.1} parent=5 // pred_fallthru
      _
    %p3568 = scmp.le.s32.totalorder 2, %s15
    // Predicated region
    $region61: #{conv_up_forward.1} parent=5 // pred_check
      %p3569 = pneg %p3568
    $region62: #{conv_up_forward.1} parent=5 // pred_check_branch
      %3571 = sbr.rel (%p3569) target = $region64
    $region63: #{conv_up_forward.1} parent=5 // pred_region
      %s3572 = ssub.s32 %s15, 2
      // Predicated region
      $region65: #{conv_up_forward.1} parent=63 // pred_check
        %p3573 = pneg %p238
      $region66: #{conv_up_forward.1} parent=63 // pred_check_branch
        %3575 = sbr.rel (%p3573) target = $region68
      $region67: #{conv_up_forward.1} parent=63 // pred_region
        %p3576 = scmp.lt.s32.totalorder %s21, 1
        %s3577 = scalar_select %p3576, %s21, 1
        %s3578 = smul.addr %s3577, 9
        %s3579 = smul.addr %s3578, 8
        %s3580 = scalar_lea.vmem %s9, %s3579
      $region68: #{conv_up_forward.1} parent=63 // pred_fallthru
        _
    $region64: #{conv_up_forward.1} parent=5 // pred_fallthru
      _
  $region6: #{conv_up_forward.1} parent=0 // loop_footer
    %s19 = sadd.s32 1, %s15
  $region7: #{conv_up_forward.1} parent=0 // loop_footer_branch
    %14 = sbr.rel target = $region3
  $region8: #{conv_up_forward.1} parent=0 // loop_exit
    _

</llo_original>
